<compile_context>
chip_gen: v6e
topology: v6e:2x2x1
jax: 0.10.0
libtpu: 0.0.40
codegen_flags: <defaults>
</compile_context>

<pallas_src>
import functools

import jax
import jax.numpy as jnp
from jax.experimental import pallas as pl
from jax.experimental.pallas import tpu as pltpu

EPS = 1e-5
ROW_TILE = 1024        # row tile for the 1x1 / elementwise stages (512-1024 sweet spot)
BAND_TARGET = 8        # H-band height for the 3x3 stage


def _default_vmem_limit():
    """Generation-aware scoped-VMEM cap (leave headroom for Mosaic scratch)."""
    try:
        cap = int(pltpu.get_tpu_info().vmem_capacity_bytes)
    except Exception:
        cap = 64 * 1024 * 1024          # assume the smallest (v7x per-TC) if unknown
    return max(16 * 1024 * 1024, min(int(cap * 0.6), 96 * 1024 * 1024))


VMEM_LIMIT = _default_vmem_limit()


def _pick_band(h, target=BAND_TARGET):
    """Largest divisor of `h` that is <= target (band height for the 3x3 conv)."""
    for t in range(min(target, h), 0, -1):
        if h % t == 0:
            return t
    return h


# --------------------------------------------------------------------------
# Kernels
# --------------------------------------------------------------------------
def _conv1_kernel(x_ref, w_ref, y_ref, s1_ref, s2_ref, *, nrows, ragged):
    """conv1 (1x1): y = x @ w1 on the MXU (bf16 operands, f32 acc).
    Emits per-tile (sum, sum^2) bn1 partials from the f32 accumulator,
    then stores the activation tile as bf16."""
    x = x_ref[...].astype(jnp.bfloat16)
    y = jnp.dot(x, w_ref[...], preferred_element_type=jnp.float32)
    ys = y
    if ragged:                                   # mask rows past the true row count
        tr = x_ref.shape[0]
        row = jax.lax.broadcasted_iota(jnp.int32, (tr, 1), 0)
        ys = jnp.where(row < (nrows - pl.program_id(0) * tr), y, 0.0)
    s1_ref[...] = jnp.sum(ys, axis=0).reshape(1, 1, -1)
    s2_ref[...] = jnp.sum(ys * ys, axis=0).reshape(1, 1, -1)
    y_ref[...] = y.astype(y_ref.dtype)


def _conv2_kernel(top_ref, mid_ref, bot_ref, w_ref, sc_ref, sh_ref,
                  o_ref, s1_ref, s2_ref, *, nb, fuse_k):
    """bn1 (precomputed scale/shift) + relu + 3x3 'same' conv for one H-band of
    one image.  Halo rows arrive as separate 1-row blocks and are zeroed at the
    true image edges.  P % 128 == 0 -> single large-K matmul over the 9 taps;
    otherwise 9 accumulated matmuls (no lane-axis concatenate).  Emits bn2
    stat partials from the f32 accumulator before the bf16 store."""
    b = pl.program_id(1)
    _, hb, w, p = mid_ref.shape
    sc = sc_ref[...]
    sh = sh_ref[...]

    def bnrelu(v):                               # f32 BN+ReLU, cast to bf16 right away
        return jnp.maximum(v.astype(jnp.float32) * sc + sh, 0.0).astype(jnp.bfloat16)

    zero_row = jnp.zeros((1, w, p), jnp.bfloat16)
    top = jnp.where(b > 0, bnrelu(top_ref[0]), zero_row)
    bot = jnp.where(b < nb - 1, bnrelu(bot_ref[0]), zero_row)
    mid = bnrelu(mid_ref[0])
    yslab = jnp.concatenate([top, mid, bot], axis=0)           # (hb+2, w, p) bf16
    zcol = jnp.zeros((hb + 2, 1, p), jnp.bfloat16)
    ypad = jnp.concatenate([zcol, yslab, zcol], axis=1)        # (hb+2, w+2, p) bf16

    taps = [ypad[dy:dy + hb, dx:dx + w, :].reshape(hb * w, p)
            for dy in range(3) for dx in range(3)]
    if fuse_k:
        stacked = jnp.concatenate(taps, axis=-1)               # (hb*w, 9p) bf16
        out = jnp.dot(stacked, w_ref[...], preferred_element_type=jnp.float32)
    else:
        out = None
        for t, tap in enumerate(taps):
            d = jnp.dot(tap, w_ref[t * p:(t + 1) * p, :],
                        preferred_element_type=jnp.float32)
            out = d if out is None else out + d

    s1_ref[...] = jnp.sum(out, axis=0).reshape(1, 1, 1, -1)
    s2_ref[...] = jnp.sum(out * out, axis=0).reshape(1, 1, 1, -1)
    o_ref[...] = out.reshape(1, hb, w, p).astype(o_ref.dtype)


def _conv3_kernel(y_ref, w_ref, sc_ref, sh_ref, z_ref, s1_ref, s2_ref, *, nrows, ragged):
    """bn2 (precomputed scale/shift) + relu + conv3 (1x1) on the MXU.
    Emits bn3 stat partials from the f32 accumulator, stores bf16."""
    y = jnp.maximum(y_ref[...].astype(jnp.float32) * sc_ref[...] + sh_ref[...], 0.0)
    z = jnp.dot(y.astype(jnp.bfloat16), w_ref[...], preferred_element_type=jnp.float32)
    zs = z
    if ragged:
        tr = y_ref.shape[0]
        row = jax.lax.broadcasted_iota(jnp.int32, (tr, 1), 0)
        zs = jnp.where(row < (nrows - pl.program_id(0) * tr), z, 0.0)
    s1_ref[...] = jnp.sum(zs, axis=0).reshape(1, 1, -1)
    s2_ref[...] = jnp.sum(zs * zs, axis=0).reshape(1, 1, -1)
    z_ref[...] = z.astype(z_ref.dtype)


def _bn3_residual_kernel(z_ref, x_ref, sc_ref, sh_ref, o_ref):
    """bn3 (precomputed scale/shift) + residual add + final relu."""
    z = z_ref[...].astype(jnp.float32)
    out = jnp.maximum(z * sc_ref[...] + sh_ref[...] + x_ref[...], 0.0)
    o_ref[...] = out.astype(o_ref.dtype)


# --------------------------------------------------------------------------
# Wrapper
# --------------------------------------------------------------------------
def _bn_scale_shift(sum_p, sumsq_p, count, gamma, beta):
    """Fold global batch statistics + affine params into per-channel scale/shift."""
    c = gamma.size
    s1 = jnp.sum(sum_p.reshape(-1, c), axis=0)
    s2 = jnp.sum(sumsq_p.reshape(-1, c), axis=0)
    mean = s1 / count
    # TODO(synk): E[y^2]-mean^2 in f32 can cancel for extreme NHW/means; a
    # per-tile-shifted/Welford merge would be more robust if needed.
    var = jnp.maximum(s2 / count - mean * mean, 0.0)      # biased (training mode)
    scale = gamma.reshape(-1) * jax.lax.rsqrt(var + EPS)
    shift = beta.reshape(-1) - mean * scale
    return scale.reshape(1, -1), shift.reshape(1, -1)


@jax.jit
def bottleneck(x_nhwc, params):
    N, H, W, Cin = x_nhwc.shape
    P = params["w1"].shape[1]
    NHW = N * H * W
    bf16, f32 = jnp.bfloat16, jnp.float32

    TR = NHW if NHW <= ROW_TILE else ROW_TILE
    nt = (NHW + TR - 1) // TR
    ragged = (NHW % TR) != 0
    HB = _pick_band(H)
    nb = H // HB

    # bf16 weights: native MXU operand dtype, halves weight DMA bytes.
    w1 = params["w1"].astype(bf16)          # (Cin, P)
    w2 = params["w2"].astype(bf16)          # (9*P, P)
    w3 = params["w3"].astype(bf16)          # (P, Cin)

    x_flat = x_nhwc.reshape(NHW, Cin)
    cp1 = pltpu.CompilerParams(dimension_semantics=("parallel",),
                               vmem_limit_bytes=VMEM_LIMIT)
    cp2 = pltpu.CompilerParams(dimension_semantics=("parallel", "parallel"),
                               vmem_limit_bytes=VMEM_LIMIT)

    # ---- stage 1: conv1 (1x1) + bn1 partial statistics -------------------
    y1, p1a, p1b = pl.pallas_call(
        functools.partial(_conv1_kernel, nrows=NHW, ragged=ragged),
        out_shape=(jax.ShapeDtypeStruct((NHW, P), bf16),
                   jax.ShapeDtypeStruct((nt, 1, P), f32),
                   jax.ShapeDtypeStruct((nt, 1, P), f32)),
        grid=(nt,),
        in_specs=[pl.BlockSpec((TR, Cin), lambda i: (i, 0)),
                  pl.BlockSpec((Cin, P), lambda i: (0, 0))],
        out_specs=(pl.BlockSpec((TR, P), lambda i: (i, 0)),
                   pl.BlockSpec((1, 1, P), lambda i: (i, 0, 0)),
                   pl.BlockSpec((1, 1, P), lambda i: (i, 0, 0))),
        compiler_params=cp1,
        cost_estimate=pl.CostEstimate(
            flops=2 * NHW * Cin * P, transcendentals=0,
            bytes_accessed=NHW * Cin * 4 + Cin * P * 2 + NHW * P * 2),
    )(x_flat, w1)
    sc1, sh1 = _bn_scale_shift(p1a, p1b, float(NHW), params["g1"], params["b1"])

    # ---- stage 2: bn1 + relu + conv2 (3x3, per image x H-band) + bn2 stats
    y1_4d = y1.reshape(N, H, W, P)
    y2, p2a, p2b = pl.pallas_call(
        functools.partial(_conv2_kernel, nb=nb, fuse_k=(P % 128 == 0)),
        out_shape=(jax.ShapeDtypeStruct((N, H, W, P), bf16),
                   jax.ShapeDtypeStruct((N, nb, 1, P), f32),
                   jax.ShapeDtypeStruct((N, nb, 1, P), f32)),
        grid=(N, nb),
        in_specs=[
            # 1-row halo above the band (clamped; zeroed in-kernel at the top edge)
            pl.BlockSpec((1, 1, W, P),
                         lambda n, b: (n, jnp.maximum(b * HB - 1, 0), 0, 0)),
            # the band itself
            pl.BlockSpec((1, HB, W, P), lambda n, b: (n, b, 0, 0)),
            # 1-row halo below the band (clamped; zeroed in-kernel at the bottom edge)
            pl.BlockSpec((1, 1, W, P),
                         lambda n, b: (n, jnp.minimum((b + 1) * HB, H - 1), 0, 0)),
            pl.BlockSpec((9 * P, P), lambda n, b: (0, 0)),
            pl.BlockSpec((1, P), lambda n, b: (0, 0)),
            pl.BlockSpec((1, P), lambda n, b: (0, 0)),
        ],
        out_specs=(pl.BlockSpec((1, HB, W, P), lambda n, b: (n, b, 0, 0)),
                   pl.BlockSpec((1, 1, 1, P), lambda n, b: (n, b, 0, 0)),
                   pl.BlockSpec((1, 1, 1, P), lambda n, b: (n, b, 0, 0))),
        compiler_params=cp2,
        cost_estimate=pl.CostEstimate(
            flops=2 * NHW * 9 * P * P, transcendentals=0,
            bytes_accessed=2 * NHW * P * 2 + 9 * P * P * 2),
    )(y1_4d, y1_4d, y1_4d, w2, sc1, sh1)
    sc2, sh2 = _bn_scale_shift(p2a, p2b, float(NHW), params["g2"], params["b2"])

    # ---- stage 3: bn2 + relu + conv3 (1x1) + bn3 partial statistics ------
    z, p3a, p3b = pl.pallas_call(
        functools.partial(_conv3_kernel, nrows=NHW, ragged=ragged),
        out_shape=(jax.ShapeDtypeStruct((NHW, Cin), bf16),
                   jax.ShapeDtypeStruct((nt, 1, Cin), f32),
                   jax.ShapeDtypeStruct((nt, 1, Cin), f32)),
        grid=(nt,),
        in_specs=[pl.BlockSpec((TR, P), lambda i: (i, 0)),
                  pl.BlockSpec((P, Cin), lambda i: (0, 0)),
                  pl.BlockSpec((1, P), lambda i: (0, 0)),
                  pl.BlockSpec((1, P), lambda i: (0, 0))],
        out_specs=(pl.BlockSpec((TR, Cin), lambda i: (i, 0)),
                   pl.BlockSpec((1, 1, Cin), lambda i: (i, 0, 0)),
                   pl.BlockSpec((1, 1, Cin), lambda i: (i, 0, 0))),
        compiler_params=cp1,
        cost_estimate=pl.CostEstimate(
            flops=2 * NHW * P * Cin, transcendentals=0,
            bytes_accessed=NHW * P * 2 + P * Cin * 2 + NHW * Cin * 2),
    )(y2.reshape(NHW, P), w3, sc2, sh2)
    sc3, sh3 = _bn_scale_shift(p3a, p3b, float(NHW), params["g3"], params["b3"])

    # ---- stage 4: bn3 + residual + relu ----------------------------------
    out = pl.pallas_call(
        _bn3_residual_kernel,
        out_shape=jax.ShapeDtypeStruct((NHW, Cin), x_nhwc.dtype),
        grid=(nt,),
        in_specs=[pl.BlockSpec((TR, Cin), lambda i: (i, 0)),
                  pl.BlockSpec((TR, Cin), lambda i: (i, 0)),
                  pl.BlockSpec((1, Cin), lambda i: (0, 0)),
                  pl.BlockSpec((1, Cin), lambda i: (0, 0))],
        out_specs=pl.BlockSpec((TR, Cin), lambda i: (i, 0)),
        compiler_params=cp1,
        cost_estimate=pl.CostEstimate(
            flops=3 * NHW * Cin, transcendentals=0,
            bytes_accessed=NHW * Cin * (2 + 4 + 4)),
    )(z, x_flat, sc3, sh3)

    return out.reshape(N, H, W, Cin)


# --------------------------------------------------------------------------
# Reference + params
# --------------------------------------------------------------------------
def reference(x_nhwc, params):
    """Pure-JAX f32 reference (lax convolutions), used only for validation."""
    def bn(y, g, b):
        mean = jnp.mean(y, axis=(0, 1, 2), keepdims=True)
        var = jnp.mean((y - mean) ** 2, axis=(0, 1, 2), keepdims=True)
        return ((y - mean) * jax.lax.rsqrt(var + EPS)
                * g.reshape(1, 1, 1, -1) + b.reshape(1, 1, 1, -1))

    dn = ("NHWC", "HWIO", "NHWC")
    planes = params["w1"].shape[1]
    w1 = params["w1"][None, None]                            # (1,1,Cin,P)
    w2 = params["w2"].reshape(3, 3, planes, planes)          # HWIO
    w3 = params["w3"][None, None]                            # (1,1,P,Cin)

    y = jax.lax.conv_general_dilated(x_nhwc, w1, (1, 1), "VALID",
                                     dimension_numbers=dn)
    y = jax.nn.relu(bn(y, params["g1"], params["b1"]))
    y = jax.lax.conv_general_dilated(y, w2, (1, 1), [(1, 1), (1, 1)],
                                     dimension_numbers=dn)
    y = jax.nn.relu(bn(y, params["g2"], params["b2"]))
    y = jax.lax.conv_general_dilated(y, w3, (1, 1), "VALID",
                                     dimension_numbers=dn)
    y = bn(y, params["g3"], params["b3"])
    return jax.nn.relu(y + x_nhwc)


def make_params(key, inplanes, planes):
    ks = jax.random.split(key, 9)
    # Emulate PyTorch conv weight layouts (Cout, Cin, kh, kw), then convert.
    w1_t = jax.random.normal(ks[0], (planes, inplanes, 1, 1), jnp.float32) * 0.1
    w2_t = jax.random.normal(ks[1], (planes, planes, 3, 3), jnp.float32) * 0.1
    w3_t = jax.random.normal(ks[2], (inplanes, planes, 1, 1), jnp.float32) * 0.1
    return {
        "w1": jnp.transpose(w1_t[:, :, 0, 0], (1, 0)),                            # (Cin, P)
        "w2": jnp.transpose(w2_t, (2, 3, 1, 0)).reshape(9 * planes, planes),      # (9P, P)
        "w3": jnp.transpose(w3_t[:, :, 0, 0], (1, 0)),                            # (P, Cin)
        "g1": 1.0 + 0.1 * jax.random.normal(ks[3], (1, planes), jnp.float32),
        "b1": 0.1 * jax.random.normal(ks[4], (1, planes), jnp.float32),
        "g2": 1.0 + 0.1 * jax.random.normal(ks[5], (1, planes), jnp.float32),
        "b2": 0.1 * jax.random.normal(ks[6], (1, planes), jnp.float32),
        "g3": 1.0 + 0.1 * jax.random.normal(ks[7], (1, inplanes), jnp.float32),
        "b3": 0.1 * jax.random.normal(ks[8], (1, inplanes), jnp.float32),
    }
    # TODO(synk): BatchNorm running-stat buffer updates (module state mutation)
    # are not reproduced; they do not affect the training-mode forward output.


if __name__ == "__main__":
    key = jax.random.PRNGKey(0)
    kx, kp = jax.random.split(key)

    N, inplanes, planes, H, W = 2, 4, 8, 16, 16
    x_nchw = jax.random.normal(kx, (N, inplanes, H, W), jnp.float32)  # PyTorch layout
    x = jnp.transpose(x_nchw, (0, 2, 3, 1))                           # NHWC for kernel

    params = make_params(kp, inplanes, planes)

    out = bottleneck(x, params)
    jax.block_until_ready(out)

    ref = reference(x, params)
    max_err = float(jnp.max(jnp.abs(out - ref)))
    mean_err = float(jnp.mean(jnp.abs(out - ref)))
    # bf16 inter-stage activations + bf16 MXU operands (f32 accumulation) +
    # three BN re-normalizations => bf16-aware tolerance vs the f32 reference.
    assert max_err < 4e-1 and mean_err < 4e-2, (max_err, mean_err)

    print("KERNEL_OK")
</pallas_src>

<mosaic_0001>
module attributes {stable_mosaic.version = 11 : i64} {
  func.func @_conv2_kernel(%arg0: i32, %arg1: i32, %arg2: memref<1x1x16x8xbf16, #tpu.memory_space<vmem>>, %arg3: memref<1x8x16x8xbf16, #tpu.memory_space<vmem>>, %arg4: memref<1x1x16x8xbf16, #tpu.memory_space<vmem>>, %arg5: memref<72x8xbf16, #tpu.memory_space<vmem>>, %arg6: memref<1x8xf32, #tpu.memory_space<vmem>>, %arg7: memref<1x8xf32, #tpu.memory_space<vmem>>, %arg8: memref<1x8x16x8xbf16, #tpu.memory_space<vmem>>, %arg9: memref<1x1x1x8xf32, #tpu.memory_space<vmem>>, %arg10: memref<1x1x1x8xf32, #tpu.memory_space<vmem>>) attributes {dimension_semantics = [#tpu.dimension_semantics<parallel>, #tpu.dimension_semantics<parallel>], iteration_bounds = array<i64: 2, 2>, scalar_prefetch = 0 : i64, scratch_operands = 0 : i64, tpu.core_type = #tpu.core_type<tc>, window_params = [{transform_indices = @transform_0, window_bounds = array<i64: 1, 1, 16, 8>}, {transform_indices = @transform_1, window_bounds = array<i64: 1, 8, 16, 8>}, {transform_indices = @transform_2, window_bounds = array<i64: 1, 1, 16, 8>}, {pipeline_mode = #tpu.pipeline_mode<synchronous>, transform_indices = @transform_3, window_bounds = array<i64: 72, 8>}, {pipeline_mode = #tpu.pipeline_mode<synchronous>, transform_indices = @transform_4, window_bounds = array<i64: 1, 8>}, {pipeline_mode = #tpu.pipeline_mode<synchronous>, transform_indices = @transform_5, window_bounds = array<i64: 1, 8>}, {transform_indices = @transform_6, window_bounds = array<i64: 1, 8, 16, 8>}, {transform_indices = @transform_7, window_bounds = array<i64: 1, 1, 1, 8>}, {transform_indices = @transform_8, window_bounds = array<i64: 1, 1, 1, 8>}]} {
    %c0 = arith.constant 0 : index
    %c0_0 = arith.constant 0 : index
    %0 = vector.load %arg6[%c0, %c0_0] : memref<1x8xf32, #tpu.memory_space<vmem>>, vector<1x8xf32>
    %c0_1 = arith.constant 0 : index
    %c0_2 = arith.constant 0 : index
    %1 = vector.load %arg7[%c0_1, %c0_2] : memref<1x8xf32, #tpu.memory_space<vmem>>, vector<1x8xf32>
    %cst = arith.constant 0.000000e+00 : bf16
    %2 = vector.broadcast %cst : bf16 to vector<1x16x8xbf16>
    %c0_i32 = arith.constant 0 : i32
    %3 = arith.cmpi sgt, %arg1, %c0_i32 : i32
    %c0_3 = arith.constant 0 : index
    %c0_4 = arith.constant 0 : index
    %c0_5 = arith.constant 0 : index
    %c0_6 = arith.constant 0 : index
    %4 = vector.load %arg2[%c0_3, %c0_4, %c0_5, %c0_6] : memref<1x1x16x8xbf16, #tpu.memory_space<vmem>>, vector<1x1x16x8xbf16>
    %5 = vector.shape_cast %4 : vector<1x1x16x8xbf16> to vector<1x16x8xbf16>
    %6 = arith.extf %5 : vector<1x16x8xbf16> to vector<1x16x8xf32>
    %7 = vector.shape_cast %0 : vector<1x8xf32> to vector<1x1x8xf32>
    %8 = vector.broadcast %7 : vector<1x1x8xf32> to vector<1x16x8xf32>
    %9 = arith.mulf %6, %8 : vector<1x16x8xf32>
    %10 = vector.shape_cast %1 : vector<1x8xf32> to vector<1x1x8xf32>
    %11 = vector.broadcast %10 : vector<1x1x8xf32> to vector<1x16x8xf32>
    %12 = arith.addf %9, %11 : vector<1x16x8xf32>
    %cst_7 = arith.constant 0.000000e+00 : f32
    %13 = vector.broadcast %cst_7 : f32 to vector<1x16x8xf32>
    %14 = arith.maximumf %12, %13 : vector<1x16x8xf32>
    %15 = arith.truncf %14 : vector<1x16x8xf32> to vector<1x16x8xbf16>
    %16 = arith.select %3, %15, %2 : vector<1x16x8xbf16>
    %c1_i32 = arith.constant 1 : i32
    %17 = arith.cmpi slt, %arg1, %c1_i32 : i32
    %c0_8 = arith.constant 0 : index
    %c0_9 = arith.constant 0 : index
    %c0_10 = arith.constant 0 : index
    %c0_11 = arith.constant 0 : index
    %18 = vector.load %arg4[%c0_8, %c0_9, %c0_10, %c0_11] : memref<1x1x16x8xbf16, #tpu.memory_space<vmem>>, vector<1x1x16x8xbf16>
    %19 = vector.shape_cast %18 : vector<1x1x16x8xbf16> to vector<1x16x8xbf16>
    %20 = arith.extf %19 : vector<1x16x8xbf16> to vector<1x16x8xf32>
    %21 = vector.shape_cast %0 : vector<1x8xf32> to vector<1x1x8xf32>
    %22 = vector.broadcast %21 : vector<1x1x8xf32> to vector<1x16x8xf32>
    %23 = arith.mulf %20, %22 : vector<1x16x8xf32>
    %24 = vector.shape_cast %1 : vector<1x8xf32> to vector<1x1x8xf32>
    %25 = vector.broadcast %24 : vector<1x1x8xf32> to vector<1x16x8xf32>
    %26 = arith.addf %23, %25 : vector<1x16x8xf32>
    %cst_12 = arith.constant 0.000000e+00 : f32
    %27 = vector.broadcast %cst_12 : f32 to vector<1x16x8xf32>
    %28 = arith.maximumf %26, %27 : vector<1x16x8xf32>
    %29 = arith.truncf %28 : vector<1x16x8xf32> to vector<1x16x8xbf16>
    %30 = arith.select %17, %29, %2 : vector<1x16x8xbf16>
    %c0_13 = arith.constant 0 : index
    %c0_14 = arith.constant 0 : index
    %c0_15 = arith.constant 0 : index
    %c0_16 = arith.constant 0 : index
    %31 = vector.load %arg3[%c0_13, %c0_14, %c0_15, %c0_16] : memref<1x8x16x8xbf16, #tpu.memory_space<vmem>>, vector<1x8x16x8xbf16>
    %32 = vector.shape_cast %31 : vector<1x8x16x8xbf16> to vector<8x16x8xbf16>
    %33 = arith.extf %32 : vector<8x16x8xbf16> to vector<8x16x8xf32>
    %34 = vector.shape_cast %0 : vector<1x8xf32> to vector<1x1x8xf32>
    %35 = vector.broadcast %34 : vector<1x1x8xf32> to vector<8x16x8xf32>
    %36 = arith.mulf %33, %35 : vector<8x16x8xf32>
    %37 = vector.shape_cast %1 : vector<1x8xf32> to vector<1x1x8xf32>
    %38 = vector.broadcast %37 : vector<1x1x8xf32> to vector<8x16x8xf32>
    %39 = arith.addf %36, %38 : vector<8x16x8xf32>
    %cst_17 = arith.constant 0.000000e+00 : f32
    %40 = vector.broadcast %cst_17 : f32 to vector<8x16x8xf32>
    %41 = arith.maximumf %39, %40 : vector<8x16x8xf32>
    %42 = arith.truncf %41 : vector<8x16x8xf32> to vector<8x16x8xbf16>
    %43 = tpu.concatenate %16, %42, %30 in 0 : vector<1x16x8xbf16>, vector<8x16x8xbf16>, vector<1x16x8xbf16> -> vector<10x16x8xbf16>
    %cst_18 = arith.constant 0.000000e+00 : bf16
    %44 = vector.broadcast %cst_18 : bf16 to vector<10x1x8xbf16>
    %45 = tpu.concatenate %44, %43, %44 in 1 : vector<10x1x8xbf16>, vector<10x16x8xbf16>, vector<10x1x8xbf16> -> vector<10x18x8xbf16>
    %46 = vector.extract_strided_slice %45 {offsets = [0, 0, 0], sizes = [8, 16, 8], strides = [1, 1, 1]} : vector<10x18x8xbf16> to vector<8x16x8xbf16>
    %47 = vector.shape_cast %46 : vector<8x16x8xbf16> to vector<128x8xbf16>
    %48 = vector.extract_strided_slice %45 {offsets = [0, 1, 0], sizes = [8, 16, 8], strides = [1, 1, 1]} : vector<10x18x8xbf16> to vector<8x16x8xbf16>
    %49 = vector.shape_cast %48 : vector<8x16x8xbf16> to vector<128x8xbf16>
    %50 = vector.extract_strided_slice %45 {offsets = [0, 2, 0], sizes = [8, 16, 8], strides = [1, 1, 1]} : vector<10x18x8xbf16> to vector<8x16x8xbf16>
    %51 = vector.shape_cast %50 : vector<8x16x8xbf16> to vector<128x8xbf16>
    %52 = vector.extract_strided_slice %45 {offsets = [1, 0, 0], sizes = [8, 16, 8], strides = [1, 1, 1]} : vector<10x18x8xbf16> to vector<8x16x8xbf16>
    %53 = vector.shape_cast %52 : vector<8x16x8xbf16> to vector<128x8xbf16>
    %54 = vector.extract_strided_slice %45 {offsets = [1, 1, 0], sizes = [8, 16, 8], strides = [1, 1, 1]} : vector<10x18x8xbf16> to vector<8x16x8xbf16>
    %55 = vector.shape_cast %54 : vector<8x16x8xbf16> to vector<128x8xbf16>
    %56 = vector.extract_strided_slice %45 {offsets = [1, 2, 0], sizes = [8, 16, 8], strides = [1, 1, 1]} : vector<10x18x8xbf16> to vector<8x16x8xbf16>
    %57 = vector.shape_cast %56 : vector<8x16x8xbf16> to vector<128x8xbf16>
    %58 = vector.extract_strided_slice %45 {offsets = [2, 0, 0], sizes = [8, 16, 8], strides = [1, 1, 1]} : vector<10x18x8xbf16> to vector<8x16x8xbf16>
    %59 = vector.shape_cast %58 : vector<8x16x8xbf16> to vector<128x8xbf16>
    %60 = vector.extract_strided_slice %45 {offsets = [2, 1, 0], sizes = [8, 16, 8], strides = [1, 1, 1]} : vector<10x18x8xbf16> to vector<8x16x8xbf16>
    %61 = vector.shape_cast %60 : vector<8x16x8xbf16> to vector<128x8xbf16>
    %62 = vector.extract_strided_slice %45 {offsets = [2, 2, 0], sizes = [8, 16, 8], strides = [1, 1, 1]} : vector<10x18x8xbf16> to vector<8x16x8xbf16>
    %63 = vector.shape_cast %62 : vector<8x16x8xbf16> to vector<128x8xbf16>
    %c0_19 = arith.constant 0 : index
    %c0_20 = arith.constant 0 : index
    %64 = vector.load %arg5[%c0_19, %c0_20] : memref<72x8xbf16, #tpu.memory_space<vmem>>, vector<8x8xbf16>
    %cst_21 = arith.constant dense<0.000000e+00> : vector<128x8xf32>
    %65 = tpu.matmul %47, %64, %cst_21 {dimension_numbers = #tpu.dot_dimension_numbers<[1], [0], [0], [1], [0, 0, 1, 1], [], []>} : vector<128x8xbf16>, vector<8x8xbf16>, vector<128x8xf32> -> vector<128x8xf32>
    %c8 = arith.constant 8 : index
    %c0_22 = arith.constant 0 : index
    %66 = vector.load %arg5[%c8, %c0_22] : memref<72x8xbf16, #tpu.memory_space<vmem>>, vector<8x8xbf16>
    %cst_23 = arith.constant dense<0.000000e+00> : vector<128x8xf32>
    %67 = tpu.matmul %49, %66, %cst_23 {dimension_numbers = #tpu.dot_dimension_numbers<[1], [0], [0], [1], [0, 0, 1, 1], [], []>} : vector<128x8xbf16>, vector<8x8xbf16>, vector<128x8xf32> -> vector<128x8xf32>
    %68 = arith.addf %65, %67 : vector<128x8xf32>
    %c16 = arith.constant 16 : index
    %c0_24 = arith.constant 0 : index
    %69 = vector.load %arg5[%c16, %c0_24] : memref<72x8xbf16, #tpu.memory_space<vmem>>, vector<8x8xbf16>
    %cst_25 = arith.constant dense<0.000000e+00> : vector<128x8xf32>
    %70 = tpu.matmul %51, %69, %cst_25 {dimension_numbers = #tpu.dot_dimension_numbers<[1], [0], [0], [1], [0, 0, 1, 1], [], []>} : vector<128x8xbf16>, vector<8x8xbf16>, vector<128x8xf32> -> vector<128x8xf32>
    %71 = arith.addf %68, %70 : vector<128x8xf32>
    %c24 = arith.constant 24 : index
    %c0_26 = arith.constant 0 : index
    %72 = vector.load %arg5[%c24, %c0_26] : memref<72x8xbf16, #tpu.memory_space<vmem>>, vector<8x8xbf16>
    %cst_27 = arith.constant dense<0.000000e+00> : vector<128x8xf32>
    %73 = tpu.matmul %53, %72, %cst_27 {dimension_numbers = #tpu.dot_dimension_numbers<[1], [0], [0], [1], [0, 0, 1, 1], [], []>} : vector<128x8xbf16>, vector<8x8xbf16>, vector<128x8xf32> -> vector<128x8xf32>
    %74 = arith.addf %71, %73 : vector<128x8xf32>
    %c32 = arith.constant 32 : index
    %c0_28 = arith.constant 0 : index
    %75 = vector.load %arg5[%c32, %c0_28] : memref<72x8xbf16, #tpu.memory_space<vmem>>, vector<8x8xbf16>
    %cst_29 = arith.constant dense<0.000000e+00> : vector<128x8xf32>
    %76 = tpu.matmul %55, %75, %cst_29 {dimension_numbers = #tpu.dot_dimension_numbers<[1], [0], [0], [1], [0, 0, 1, 1], [], []>} : vector<128x8xbf16>, vector<8x8xbf16>, vector<128x8xf32> -> vector<128x8xf32>
    %77 = arith.addf %74, %76 : vector<128x8xf32>
    %c40 = arith.constant 40 : index
    %c0_30 = arith.constant 0 : index
    %78 = vector.load %arg5[%c40, %c0_30] : memref<72x8xbf16, #tpu.memory_space<vmem>>, vector<8x8xbf16>
    %cst_31 = arith.constant dense<0.000000e+00> : vector<128x8xf32>
    %79 = tpu.matmul %57, %78, %cst_31 {dimension_numbers = #tpu.dot_dimension_numbers<[1], [0], [0], [1], [0, 0, 1, 1], [], []>} : vector<128x8xbf16>, vector<8x8xbf16>, vector<128x8xf32> -> vector<128x8xf32>
    %80 = arith.addf %77, %79 : vector<128x8xf32>
    %c48 = arith.constant 48 : index
    %c0_32 = arith.constant 0 : index
    %81 = vector.load %arg5[%c48, %c0_32] : memref<72x8xbf16, #tpu.memory_space<vmem>>, vector<8x8xbf16>
    %cst_33 = arith.constant dense<0.000000e+00> : vector<128x8xf32>
    %82 = tpu.matmul %59, %81, %cst_33 {dimension_numbers = #tpu.dot_dimension_numbers<[1], [0], [0], [1], [0, 0, 1, 1], [], []>} : vector<128x8xbf16>, vector<8x8xbf16>, vector<128x8xf32> -> vector<128x8xf32>
    %83 = arith.addf %80, %82 : vector<128x8xf32>
    %c56 = arith.constant 56 : index
    %c0_34 = arith.constant 0 : index
    %84 = vector.load %arg5[%c56, %c0_34] : memref<72x8xbf16, #tpu.memory_space<vmem>>, vector<8x8xbf16>
    %cst_35 = arith.constant dense<0.000000e+00> : vector<128x8xf32>
    %85 = tpu.matmul %61, %84, %cst_35 {dimension_numbers = #tpu.dot_dimension_numbers<[1], [0], [0], [1], [0, 0, 1, 1], [], []>} : vector<128x8xbf16>, vector<8x8xbf16>, vector<128x8xf32> -> vector<128x8xf32>
    %86 = arith.addf %83, %85 : vector<128x8xf32>
    %c64 = arith.constant 64 : index
    %c0_36 = arith.constant 0 : index
    %87 = vector.load %arg5[%c64, %c0_36] : memref<72x8xbf16, #tpu.memory_space<vmem>>, vector<8x8xbf16>
    %cst_37 = arith.constant dense<0.000000e+00> : vector<128x8xf32>
    %88 = tpu.matmul %63, %87, %cst_37 {dimension_numbers = #tpu.dot_dimension_numbers<[1], [0], [0], [1], [0, 0, 1, 1], [], []>} : vector<128x8xbf16>, vector<8x8xbf16>, vector<128x8xf32> -> vector<128x8xf32>
    %89 = arith.addf %86, %88 : vector<128x8xf32>
    %cst_38 = arith.constant dense<0.000000e+00> : vector<8xf32>
    %90 = vector.multi_reduction <add>, %89, %cst_38 [0] : vector<128x8xf32> to vector<8xf32>
    %91 = vector.shape_cast %90 : vector<8xf32> to vector<1x1x1x8xf32>
    %c0_39 = arith.constant 0 : index
    %c0_40 = arith.constant 0 : index
    %c0_41 = arith.constant 0 : index
    %c0_42 = arith.constant 0 : index
    %92 = vector.load %arg9[%c0_39, %c0_40, %c0_41, %c0_42] : memref<1x1x1x8xf32, #tpu.memory_space<vmem>>, vector<1x1x1x8xf32>
    tpu.vector_store %arg9[%c0_39, %c0_40, %c0_41, %c0_42], %91 {strides = array<i32>} : memref<1x1x1x8xf32, #tpu.memory_space<vmem>>, vector<1x1x1x8xf32>,
    %93 = arith.mulf %89, %89 : vector<128x8xf32>
    %cst_43 = arith.constant dense<0.000000e+00> : vector<8xf32>
    %94 = vector.multi_reduction <add>, %93, %cst_43 [0] : vector<128x8xf32> to vector<8xf32>
    %95 = vector.shape_cast %94 : vector<8xf32> to vector<1x1x1x8xf32>
    %c0_44 = arith.constant 0 : index
    %c0_45 = arith.constant 0 : index
    %c0_46 = arith.constant 0 : index
    %c0_47 = arith.constant 0 : index
    %96 = vector.load %arg10[%c0_44, %c0_45, %c0_46, %c0_47] : memref<1x1x1x8xf32, #tpu.memory_space<vmem>>, vector<1x1x1x8xf32>
    tpu.vector_store %arg10[%c0_44, %c0_45, %c0_46, %c0_47], %95 {strides = array<i32>} : memref<1x1x1x8xf32, #tpu.memory_space<vmem>>, vector<1x1x1x8xf32>,
    %97 = vector.shape_cast %89 : vector<128x8xf32> to vector<1x8x16x8xf32>
    %98 = arith.truncf %97 : vector<1x8x16x8xf32> to vector<1x8x16x8xbf16>
    %c0_48 = arith.constant 0 : index
    %c0_49 = arith.constant 0 : index
    %c0_50 = arith.constant 0 : index
    %c0_51 = arith.constant 0 : index
    %99 = vector.load %arg8[%c0_48, %c0_49, %c0_50, %c0_51] : memref<1x8x16x8xbf16, #tpu.memory_space<vmem>>, vector<1x8x16x8xbf16>
    tpu.vector_store %arg8[%c0_48, %c0_49, %c0_50, %c0_51], %98 {strides = array<i32>} : memref<1x8x16x8xbf16, #tpu.memory_space<vmem>>, vector<1x8x16x8xbf16>,
    return
  }
  func.func @transform_0(%arg0: i32, %arg1: i32) -> (i32, i32, i32, i32) {
    %c8_i32 = arith.constant 8 : i32
    %0 = arith.muli %arg1, %c8_i32 : i32
    %c1_i32 = arith.constant 1 : i32
    %1 = arith.subi %0, %c1_i32 : i32
    %c0_i32 = arith.constant 0 : i32
    %2 = arith.maxsi %1, %c0_i32 : i32
    %c0_i32_0 = arith.constant 0 : i32
    %c0_i32_1 = arith.constant 0 : i32
    %c0_i32_2 = arith.constant 0 : i32
    return %arg0, %2, %c0_i32_0, %c0_i32_1 : i32, i32, i32, i32
  }
  func.func @transform_1(%arg0: i32, %arg1: i32) -> (i32, i32, i32, i32) {
    %c0_i32 = arith.constant 0 : i32
    %c0_i32_0 = arith.constant 0 : i32
    %c0_i32_1 = arith.constant 0 : i32
    return %arg0, %arg1, %c0_i32, %c0_i32_0 : i32, i32, i32, i32
  }
  func.func @transform_2(%arg0: i32, %arg1: i32) -> (i32, i32, i32, i32) {
    %c1_i32 = arith.constant 1 : i32
    %0 = arith.addi %arg1, %c1_i32 : i32
    %c8_i32 = arith.constant 8 : i32
    %1 = arith.muli %0, %c8_i32 : i32
    %c15_i32 = arith.constant 15 : i32
    %2 = arith.minsi %1, %c15_i32 : i32
    %c0_i32 = arith.constant 0 : i32
    %c0_i32_0 = arith.constant 0 : i32
    %c0_i32_1 = arith.constant 0 : i32
    return %arg0, %2, %c0_i32, %c0_i32_0 : i32, i32, i32, i32
  }
  func.func @transform_3(%arg0: i32, %arg1: i32) -> (i32, i32) {
    %c0_i32 = arith.constant 0 : i32
    %c0_i32_0 = arith.constant 0 : i32
    %c0_i32_1 = arith.constant 0 : i32
    return %c0_i32, %c0_i32_0 : i32, i32
  }
  func.func @transform_4(%arg0: i32, %arg1: i32) -> (i32, i32) {
    %c0_i32 = arith.constant 0 : i32
    %c0_i32_0 = arith.constant 0 : i32
    %c0_i32_1 = arith.constant 0 : i32
    return %c0_i32, %c0_i32_0 : i32, i32
  }
  func.func @transform_5(%arg0: i32, %arg1: i32) -> (i32, i32) {
    %c0_i32 = arith.constant 0 : i32
    %c0_i32_0 = arith.constant 0 : i32
    %c0_i32_1 = arith.constant 0 : i32
    return %c0_i32, %c0_i32_0 : i32, i32
  }
  func.func @transform_6(%arg0: i32, %arg1: i32) -> (i32, i32, i32, i32) {
    %c0_i32 = arith.constant 0 : i32
    %c0_i32_0 = arith.constant 0 : i32
    %c0_i32_1 = arith.constant 0 : i32
    return %arg0, %arg1, %c0_i32, %c0_i32_0 : i32, i32, i32, i32
  }
  func.func @transform_7(%arg0: i32, %arg1: i32) -> (i32, i32, i32, i32) {
    %c0_i32 = arith.constant 0 : i32
    %c0_i32_0 = arith.constant 0 : i32
    %c0_i32_1 = arith.constant 0 : i32
    return %arg0, %arg1, %c0_i32, %c0_i32_0 : i32, i32, i32, i32
  }
  func.func @transform_8(%arg0: i32, %arg1: i32) -> (i32, i32, i32, i32) {
    %c0_i32 = arith.constant 0 : i32
    %c0_i32_0 = arith.constant 0 : i32
    %c0_i32_1 = arith.constant 0 : i32
    return %arg0, %arg1, %c0_i32, %c0_i32_0 : i32, i32, i32, i32
  }
}

module attributes {stable_mosaic.version = 11 : i64} {
  func.func @_conv1_kernel(%arg0: i32, %arg1: memref<512x4xf32, #tpu.memory_space<vmem>>, %arg2: memref<4x8xbf16, #tpu.memory_space<vmem>>, %arg3: memref<512x8xbf16, #tpu.memory_space<vmem>>, %arg4: memref<1x1x8xf32, #tpu.memory_space<vmem>>, %arg5: memref<1x1x8xf32, #tpu.memory_space<vmem>>) attributes {dimension_semantics = [#tpu.dimension_semantics<parallel>], iteration_bounds = array<i64: 1>, scalar_prefetch = 0 : i64, scratch_operands = 0 : i64, tpu.core_type = #tpu.core_type<tc>, window_params = [{transform_indices = @transform_0, window_bounds = array<i64: 512, 4>}, {pipeline_mode = #tpu.pipeline_mode<synchronous>, transform_indices = @transform_1, window_bounds = array<i64: 4, 8>}, {transform_indices = @transform_2, window_bounds = array<i64: 512, 8>}, {transform_indices = @transform_3, window_bounds = array<i64: 1, 1, 8>}, {transform_indices = @transform_4, window_bounds = array<i64: 1, 1, 8>}]} {
    %c0 = arith.constant 0 : index
    %c0_0 = arith.constant 0 : index
    %0 = vector.load %arg1[%c0, %c0_0] : memref<512x4xf32, #tpu.memory_space<vmem>>, vector<512x4xf32>
    %1 = arith.truncf %0 : vector<512x4xf32> to vector<512x4xbf16>
    %c0_1 = arith.constant 0 : index
    %c0_2 = arith.constant 0 : index
    %2 = vector.load %arg2[%c0_1, %c0_2] : memref<4x8xbf16, #tpu.memory_space<vmem>>, vector<4x8xbf16>
    %cst = arith.constant dense<0.000000e+00> : vector<512x8xf32>
    %3 = tpu.matmul %1, %2, %cst {dimension_numbers = #tpu.dot_dimension_numbers<[1], [0], [0], [1], [0, 0, 1, 1], [], []>} : vector<512x4xbf16>, vector<4x8xbf16>, vector<512x8xf32> -> vector<512x8xf32>
    %cst_3 = arith.constant dense<0.000000e+00> : vector<8xf32>
    %4 = vector.multi_reduction <add>, %3, %cst_3 [0] : vector<512x8xf32> to vector<8xf32>
    %5 = vector.shape_cast %4 : vector<8xf32> to vector<1x1x8xf32>
    %c0_4 = arith.constant 0 : index
    %c0_5 = arith.constant 0 : index
    %c0_6 = arith.constant 0 : index
    %6 = vector.load %arg4[%c0_4, %c0_5, %c0_6] : memref<1x1x8xf32, #tpu.memory_space<vmem>>, vector<1x1x8xf32>
    tpu.vector_store %arg4[%c0_4, %c0_5, %c0_6], %5 {strides = array<i32>} : memref<1x1x8xf32, #tpu.memory_space<vmem>>, vector<1x1x8xf32>,
    %7 = arith.mulf %3, %3 : vector<512x8xf32>
    %cst_7 = arith.constant dense<0.000000e+00> : vector<8xf32>
    %8 = vector.multi_reduction <add>, %7, %cst_7 [0] : vector<512x8xf32> to vector<8xf32>
    %9 = vector.shape_cast %8 : vector<8xf32> to vector<1x1x8xf32>
    %c0_8 = arith.constant 0 : index
    %c0_9 = arith.constant 0 : index
    %c0_10 = arith.constant 0 : index
    %10 = vector.load %arg5[%c0_8, %c0_9, %c0_10] : memref<1x1x8xf32, #tpu.memory_space<vmem>>, vector<1x1x8xf32>
    tpu.vector_store %arg5[%c0_8, %c0_9, %c0_10], %9 {strides = array<i32>} : memref<1x1x8xf32, #tpu.memory_space<vmem>>, vector<1x1x8xf32>,
    %11 = arith.truncf %3 : vector<512x8xf32> to vector<512x8xbf16>
    %c0_11 = arith.constant 0 : index
    %c0_12 = arith.constant 0 : index
    %12 = vector.load %arg3[%c0_11, %c0_12] : memref<512x8xbf16, #tpu.memory_space<vmem>>, vector<512x8xbf16>
    tpu.vector_store %arg3[%c0_11, %c0_12], %11 {strides = array<i32>} : memref<512x8xbf16, #tpu.memory_space<vmem>>, vector<512x8xbf16>,
    return
  }
  func.func @transform_0(%arg0: i32) -> (i32, i32) {
    %c0_i32 = arith.constant 0 : i32
    %c0_i32_0 = arith.constant 0 : i32
    return %arg0, %c0_i32 : i32, i32
  }
  func.func @transform_1(%arg0: i32) -> (i32, i32) {
    %c0_i32 = arith.constant 0 : i32
    %c0_i32_0 = arith.constant 0 : i32
    %c0_i32_1 = arith.constant 0 : i32
    return %c0_i32, %c0_i32_0 : i32, i32
  }
  func.func @transform_2(%arg0: i32) -> (i32, i32) {
    %c0_i32 = arith.constant 0 : i32
    %c0_i32_0 = arith.constant 0 : i32
    return %arg0, %c0_i32 : i32, i32
  }
  func.func @transform_3(%arg0: i32) -> (i32, i32, i32) {
    %c0_i32 = arith.constant 0 : i32
    %c0_i32_0 = arith.constant 0 : i32
    %c0_i32_1 = arith.constant 0 : i32
    return %arg0, %c0_i32, %c0_i32_0 : i32, i32, i32
  }
  func.func @transform_4(%arg0: i32) -> (i32, i32, i32) {
    %c0_i32 = arith.constant 0 : i32
    %c0_i32_0 = arith.constant 0 : i32
    %c0_i32_1 = arith.constant 0 : i32
    return %arg0, %c0_i32, %c0_i32_0 : i32, i32, i32
  }
}

module attributes {stable_mosaic.version = 11 : i64} {
  func.func @_conv3_kernel(%arg0: i32, %arg1: memref<512x8xbf16, #tpu.memory_space<vmem>>, %arg2: memref<8x4xbf16, #tpu.memory_space<vmem>>, %arg3: memref<1x8xf32, #tpu.memory_space<vmem>>, %arg4: memref<1x8xf32, #tpu.memory_space<vmem>>, %arg5: memref<512x4xbf16, #tpu.memory_space<vmem>>, %arg6: memref<1x1x4xf32, #tpu.memory_space<vmem>>, %arg7: memref<1x1x4xf32, #tpu.memory_space<vmem>>) attributes {dimension_semantics = [#tpu.dimension_semantics<parallel>], iteration_bounds = array<i64: 1>, scalar_prefetch = 0 : i64, scratch_operands = 0 : i64, tpu.core_type = #tpu.core_type<tc>, window_params = [{transform_indices = @transform_0, window_bounds = array<i64: 512, 8>}, {pipeline_mode = #tpu.pipeline_mode<synchronous>, transform_indices = @transform_1, window_bounds = array<i64: 8, 4>}, {pipeline_mode = #tpu.pipeline_mode<synchronous>, transform_indices = @transform_2, window_bounds = array<i64: 1, 8>}, {pipeline_mode = #tpu.pipeline_mode<synchronous>, transform_indices = @transform_3, window_bounds = array<i64: 1, 8>}, {transform_indices = @transform_4, window_bounds = array<i64: 512, 4>}, {transform_indices = @transform_5, window_bounds = array<i64: 1, 1, 4>}, {transform_indices = @transform_6, window_bounds = array<i64: 1, 1, 4>}]} {
    %c0 = arith.constant 0 : index
    %c0_0 = arith.constant 0 : index
    %0 = vector.load %arg1[%c0, %c0_0] : memref<512x8xbf16, #tpu.memory_space<vmem>>, vector<512x8xbf16>
    %1 = arith.extf %0 : vector<512x8xbf16> to vector<512x8xf32>
    %c0_1 = arith.constant 0 : index
    %c0_2 = arith.constant 0 : index
    %2 = vector.load %arg3[%c0_1, %c0_2] : memref<1x8xf32, #tpu.memory_space<vmem>>, vector<1x8xf32>
    %3 = vector.broadcast %2 : vector<1x8xf32> to vector<512x8xf32>
    %4 = arith.mulf %1, %3 : vector<512x8xf32>
    %c0_3 = arith.constant 0 : index
    %c0_4 = arith.constant 0 : index
    %5 = vector.load %arg4[%c0_3, %c0_4] : memref<1x8xf32, #tpu.memory_space<vmem>>, vector<1x8xf32>
    %6 = vector.broadcast %5 : vector<1x8xf32> to vector<512x8xf32>
    %7 = arith.addf %4, %6 : vector<512x8xf32>
    %cst = arith.constant 0.000000e+00 : f32
    %8 = vector.broadcast %cst : f32 to vector<512x8xf32>
    %9 = arith.maximumf %7, %8 : vector<512x8xf32>
    %10 = arith.truncf %9 : vector<512x8xf32> to vector<512x8xbf16>
    %c0_5 = arith.constant 0 : index
    %c0_6 = arith.constant 0 : index
    %11 = vector.load %arg2[%c0_5, %c0_6] : memref<8x4xbf16, #tpu.memory_space<vmem>>, vector<8x4xbf16>
    %cst_7 = arith.constant dense<0.000000e+00> : vector<512x4xf32>
    %12 = tpu.matmul %10, %11, %cst_7 {dimension_numbers = #tpu.dot_dimension_numbers<[1], [0], [0], [1], [0, 0, 1, 1], [], []>} : vector<512x8xbf16>, vector<8x4xbf16>, vector<512x4xf32> -> vector<512x4xf32>
    %cst_8 = arith.constant dense<0.000000e+00> : vector<4xf32>
    %13 = vector.multi_reduction <add>, %12, %cst_8 [0] : vector<512x4xf32> to vector<4xf32>
    %14 = vector.shape_cast %13 : vector<4xf32> to vector<1x1x4xf32>
    %c0_9 = arith.constant 0 : index
    %c0_10 = arith.constant 0 : index
    %c0_11 = arith.constant 0 : index
    %15 = vector.load %arg6[%c0_9, %c0_10, %c0_11] : memref<1x1x4xf32, #tpu.memory_space<vmem>>, vector<1x1x4xf32>
    tpu.vector_store %arg6[%c0_9, %c0_10, %c0_11], %14 {strides = array<i32>} : memref<1x1x4xf32, #tpu.memory_space<vmem>>, vector<1x1x4xf32>,
    %16 = arith.mulf %12, %12 : vector<512x4xf32>
    %cst_12 = arith.constant dense<0.000000e+00> : vector<4xf32>
    %17 = vector.multi_reduction <add>, %16, %cst_12 [0] : vector<512x4xf32> to vector<4xf32>
    %18 = vector.shape_cast %17 : vector<4xf32> to vector<1x1x4xf32>
    %c0_13 = arith.constant 0 : index
    %c0_14 = arith.constant 0 : index
    %c0_15 = arith.constant 0 : index
    %19 = vector.load %arg7[%c0_13, %c0_14, %c0_15] : memref<1x1x4xf32, #tpu.memory_space<vmem>>, vector<1x1x4xf32>
    tpu.vector_store %arg7[%c0_13, %c0_14, %c0_15], %18 {strides = array<i32>} : memref<1x1x4xf32, #tpu.memory_space<vmem>>, vector<1x1x4xf32>,
    %20 = arith.truncf %12 : vector<512x4xf32> to vector<512x4xbf16>
    %c0_16 = arith.constant 0 : index
    %c0_17 = arith.constant 0 : index
    %21 = vector.load %arg5[%c0_16, %c0_17] : memref<512x4xbf16, #tpu.memory_space<vmem>>, vector<512x4xbf16>
    tpu.vector_store %arg5[%c0_16, %c0_17], %20 {strides = array<i32>} : memref<512x4xbf16, #tpu.memory_space<vmem>>, vector<512x4xbf16>,
    return
  }
  func.func @transform_0(%arg0: i32) -> (i32, i32) {
    %c0_i32 = arith.constant 0 : i32
    %c0_i32_0 = arith.constant 0 : i32
    return %arg0, %c0_i32 : i32, i32
  }
  func.func @transform_1(%arg0: i32) -> (i32, i32) {
    %c0_i32 = arith.constant 0 : i32
    %c0_i32_0 = arith.constant 0 : i32
    %c0_i32_1 = arith.constant 0 : i32
    return %c0_i32, %c0_i32_0 : i32, i32
  }
  func.func @transform_2(%arg0: i32) -> (i32, i32) {
    %c0_i32 = arith.constant 0 : i32
    %c0_i32_0 = arith.constant 0 : i32
    %c0_i32_1 = arith.constant 0 : i32
    return %c0_i32, %c0_i32_0 : i32, i32
  }
  func.func @transform_3(%arg0: i32) -> (i32, i32) {
    %c0_i32 = arith.constant 0 : i32
    %c0_i32_0 = arith.constant 0 : i32
    %c0_i32_1 = arith.constant 0 : i32
    return %c0_i32, %c0_i32_0 : i32, i32
  }
  func.func @transform_4(%arg0: i32) -> (i32, i32) {
    %c0_i32 = arith.constant 0 : i32
    %c0_i32_0 = arith.constant 0 : i32
    return %arg0, %c0_i32 : i32, i32
  }
  func.func @transform_5(%arg0: i32) -> (i32, i32, i32) {
    %c0_i32 = arith.constant 0 : i32
    %c0_i32_0 = arith.constant 0 : i32
    %c0_i32_1 = arith.constant 0 : i32
    return %arg0, %c0_i32, %c0_i32_0 : i32, i32, i32
  }
  func.func @transform_6(%arg0: i32) -> (i32, i32, i32) {
    %c0_i32 = arith.constant 0 : i32
    %c0_i32_0 = arith.constant 0 : i32
    %c0_i32_1 = arith.constant 0 : i32
    return %arg0, %c0_i32, %c0_i32_0 : i32, i32, i32
  }
}

module attributes {stable_mosaic.version = 11 : i64} {
  func.func @_bn3_residual_kernel(%arg0: i32, %arg1: memref<512x4xbf16, #tpu.memory_space<vmem>>, %arg2: memref<512x4xf32, #tpu.memory_space<vmem>>, %arg3: memref<1x4xf32, #tpu.memory_space<vmem>>, %arg4: memref<1x4xf32, #tpu.memory_space<vmem>>, %arg5: memref<512x4xf32, #tpu.memory_space<vmem>>) attributes {dimension_semantics = [#tpu.dimension_semantics<parallel>], iteration_bounds = array<i64: 1>, scalar_prefetch = 0 : i64, scratch_operands = 0 : i64, tpu.core_type = #tpu.core_type<tc>, window_params = [{transform_indices = @transform_0, window_bounds = array<i64: 512, 4>}, {transform_indices = @transform_1, window_bounds = array<i64: 512, 4>}, {pipeline_mode = #tpu.pipeline_mode<synchronous>, transform_indices = @transform_2, window_bounds = array<i64: 1, 4>}, {pipeline_mode = #tpu.pipeline_mode<synchronous>, transform_indices = @transform_3, window_bounds = array<i64: 1, 4>}, {transform_indices = @transform_4, window_bounds = array<i64: 512, 4>}]} {
    %c0 = arith.constant 0 : index
    %c0_0 = arith.constant 0 : index
    %0 = vector.load %arg1[%c0, %c0_0] : memref<512x4xbf16, #tpu.memory_space<vmem>>, vector<512x4xbf16>
    %1 = arith.extf %0 : vector<512x4xbf16> to vector<512x4xf32>
    %c0_1 = arith.constant 0 : index
    %c0_2 = arith.constant 0 : index
    %2 = vector.load %arg3[%c0_1, %c0_2] : memref<1x4xf32, #tpu.memory_space<vmem>>, vector<1x4xf32>
    %3 = vector.broadcast %2 : vector<1x4xf32> to vector<512x4xf32>
    %4 = arith.mulf %1, %3 : vector<512x4xf32>
    %c0_3 = arith.constant 0 : index
    %c0_4 = arith.constant 0 : index
    %5 = vector.load %arg4[%c0_3, %c0_4] : memref<1x4xf32, #tpu.memory_space<vmem>>, vector<1x4xf32>
    %6 = vector.broadcast %5 : vector<1x4xf32> to vector<512x4xf32>
    %7 = arith.addf %4, %6 : vector<512x4xf32>
    %c0_5 = arith.constant 0 : index
    %c0_6 = arith.constant 0 : index
    %8 = vector.load %arg2[%c0_5, %c0_6] : memref<512x4xf32, #tpu.memory_space<vmem>>, vector<512x4xf32>
    %9 = arith.addf %7, %8 : vector<512x4xf32>
    %cst = arith.constant 0.000000e+00 : f32
    %10 = vector.broadcast %cst : f32 to vector<512x4xf32>
    %11 = arith.maximumf %9, %10 : vector<512x4xf32>
    %c0_7 = arith.constant 0 : index
    %c0_8 = arith.constant 0 : index
    %12 = vector.load %arg5[%c0_7, %c0_8] : memref<512x4xf32, #tpu.memory_space<vmem>>, vector<512x4xf32>
    tpu.vector_store %arg5[%c0_7, %c0_8], %11 {strides = array<i32>} : memref<512x4xf32, #tpu.memory_space<vmem>>, vector<512x4xf32>,
    return
  }
  func.func @transform_0(%arg0: i32) -> (i32, i32) {
    %c0_i32 = arith.constant 0 : i32
    %c0_i32_0 = arith.constant 0 : i32
    return %arg0, %c0_i32 : i32, i32
  }
  func.func @transform_1(%arg0: i32) -> (i32, i32) {
    %c0_i32 = arith.constant 0 : i32
    %c0_i32_0 = arith.constant 0 : i32
    return %arg0, %c0_i32 : i32, i32
  }
  func.func @transform_2(%arg0: i32) -> (i32, i32) {
    %c0_i32 = arith.constant 0 : i32
    %c0_i32_0 = arith.constant 0 : i32
    %c0_i32_1 = arith.constant 0 : i32
    return %c0_i32, %c0_i32_0 : i32, i32
  }
  func.func @transform_3(%arg0: i32) -> (i32, i32) {
    %c0_i32 = arith.constant 0 : i32
    %c0_i32_0 = arith.constant 0 : i32
    %c0_i32_1 = arith.constant 0 : i32
    return %c0_i32, %c0_i32_0 : i32, i32
  }
  func.func @transform_4(%arg0: i32) -> (i32, i32) {
    %c0_i32 = arith.constant 0 : i32
    %c0_i32_0 = arith.constant 0 : i32
    return %arg0, %c0_i32 : i32, i32
  }
}

</mosaic_0001>

<llo_original>
// kernel: bottleneck.7
$region0: #{bottleneck.7}
  #allocation0 [shape = 'u32[]', space=smem, size = 0x4, offset = 0x4, fixed_abs, tag = 'smem constant byte address 0x4 - core index']
  #allocation1 [shape = 'u32[144,128]{1,0:T(1,128)}', space=vmem, size = 0x12000, scoped, tag = 'internal scratch']
  %s0 = inlined_call_operand.vmem [shape: bf16[512,4], index: 0, kind: input, shape index: {}]
  %s1 = inlined_call_operand.vmem [shape: f32[512,4], index: 1, kind: input, shape index: {}]
  %s2 = inlined_call_operand.vmem [shape: f32[1,4], index: 2, kind: input, shape index: {}]
  %s3 = inlined_call_operand.vmem [shape: f32[1,4], index: 3, kind: input, shape index: {}]
  %s4 = inlined_call_operand.vmem [shape: f32[512,4], index: 4, kind: output, shape index: {}]
  %s5 = sld [smem:[#allocation0]]
  $region26: #{bottleneck.7} parent=0
    _
  %s7 = ssub.s32 1, %s5
  %s8 = scalar_select 0, %s7, %s5
  // Predicated region
  $region2: #{bottleneck.7} parent=0 // pred_check
    _
  $region3: #{bottleneck.7} parent=0 // pred_check_branch
    %10 = sbr.rel (0) target = $region5
  $region4: #{bottleneck.7} parent=0 // pred_region
    _
  $region5: #{bottleneck.7} parent=0 // pred_fallthru
    _
  // Predicated region
  $region6: #{bottleneck.7} parent=0 // pred_check
    _
  $region7: #{bottleneck.7} parent=0 // pred_check_branch
    %12 = sbr.rel (0) target = $region9
  $region8: #{bottleneck.7} parent=0 // pred_region
    _
  $region9: #{bottleneck.7} parent=0 // pred_fallthru
    _
  // Predicated region
  $region10: #{bottleneck.7} parent=0 // pred_check
    _
  $region11: #{bottleneck.7} parent=0 // pred_check_branch
    %14 = sbr.rel (0) target = $region13
  $region12: #{bottleneck.7} parent=0 // pred_region
    _
  $region13: #{bottleneck.7} parent=0 // pred_fallthru
    _
  // Predicated region
  $region14: #{bottleneck.7} parent=0 // pred_check
    _
  $region15: #{bottleneck.7} parent=0 // pred_check_branch
    %16 = sbr.rel (0) target = $region17
  $region16: #{bottleneck.7} parent=0 // pred_region
    _
  $region17: #{bottleneck.7} parent=0 // pred_fallthru
    _
  %v17 = vld [vmem:[%s0] sm:$0xf]
  %v18 = vld [vmem:[%s0 + $0x4] sm:$0xf]
  %v19 = vld [vmem:[%s0 + $0x8] sm:$0xf]
  %v20 = vld [vmem:[%s0 + $0xc] sm:$0xf]
  %v21 = vld [vmem:[%s0 + $0x10] sm:$0xf]
  %v22 = vld [vmem:[%s0 + $0x14] sm:$0xf]
  %v23 = vld [vmem:[%s0 + $0x18] sm:$0xf]
  %v24 = vld [vmem:[%s0 + $0x1c] sm:$0xf]
  %v25 = vld [vmem:[%s0 + $0x20] sm:$0xf]
  %v26 = vld [vmem:[%s0 + $0x24] sm:$0xf]
  %v27 = vld [vmem:[%s0 + $0x28] sm:$0xf]
  %v28 = vld [vmem:[%s0 + $0x2c] sm:$0xf]
  %v29 = vld [vmem:[%s0 + $0x30] sm:$0xf]
  %v30 = vld [vmem:[%s0 + $0x34] sm:$0xf]
  %v31 = vld [vmem:[%s0 + $0x38] sm:$0xf]
  %v32 = vld [vmem:[%s0 + $0x3c] sm:$0xf]
  %v33 = vld [vmem:[%s0 + $0x40] sm:$0xf]
  %v34 = vld [vmem:[%s0 + $0x44] sm:$0xf]
  %v35 = vld [vmem:[%s0 + $0x48] sm:$0xf]
  %v36 = vld [vmem:[%s0 + $0x4c] sm:$0xf]
  %v37 = vld [vmem:[%s0 + $0x50] sm:$0xf]
  %v38 = vld [vmem:[%s0 + $0x54] sm:$0xf]
  %v39 = vld [vmem:[%s0 + $0x58] sm:$0xf]
  %v40 = vld [vmem:[%s0 + $0x5c] sm:$0xf]
  %v41 = vld [vmem:[%s0 + $0x60] sm:$0xf]
  %v42 = vld [vmem:[%s0 + $0x64] sm:$0xf]
  %v43 = vld [vmem:[%s0 + $0x68] sm:$0xf]
  %v44 = vld [vmem:[%s0 + $0x6c] sm:$0xf]
  %v45 = vld [vmem:[%s0 + $0x70] sm:$0xf]
  %v46 = vld [vmem:[%s0 + $0x74] sm:$0xf]
  %v47 = vld [vmem:[%s0 + $0x78] sm:$0xf]
  %v48 = vld [vmem:[%s0 + $0x7c] sm:$0xf]
  %v49 = vld [vmem:[%s0 + $0x80] sm:$0xf]
  %v50 = vld [vmem:[%s0 + $0x84] sm:$0xf]
  %v51 = vld [vmem:[%s0 + $0x88] sm:$0xf]
  %v52 = vld [vmem:[%s0 + $0x8c] sm:$0xf]
  %v53 = vld [vmem:[%s0 + $0x90] sm:$0xf]
  %v54 = vld [vmem:[%s0 + $0x94] sm:$0xf]
  %v55 = vld [vmem:[%s0 + $0x98] sm:$0xf]
  %v56 = vld [vmem:[%s0 + $0x9c] sm:$0xf]
  %v57 = vld [vmem:[%s0 + $0xa0] sm:$0xf]
  %v58 = vld [vmem:[%s0 + $0xa4] sm:$0xf]
  %v59 = vld [vmem:[%s0 + $0xa8] sm:$0xf]
  %v60 = vld [vmem:[%s0 + $0xac] sm:$0xf]
  %v61 = vld [vmem:[%s0 + $0xb0] sm:$0xf]
  %v62 = vld [vmem:[%s0 + $0xb4] sm:$0xf]
  %v63 = vld [vmem:[%s0 + $0xb8] sm:$0xf]
  %v64 = vld [vmem:[%s0 + $0xbc] sm:$0xf]
  %v65 = vld [vmem:[%s0 + $0xc0] sm:$0xf]
  %v66 = vld [vmem:[%s0 + $0xc4] sm:$0xf]
  %v67 = vld [vmem:[%s0 + $0xc8] sm:$0xf]
  %v68 = vld [vmem:[%s0 + $0xcc] sm:$0xf]
  %v69 = vld [vmem:[%s0 + $0xd0] sm:$0xf]
  %v70 = vld [vmem:[%s0 + $0xd4] sm:$0xf]
  %v71 = vld [vmem:[%s0 + $0xd8] sm:$0xf]
  %v72 = vld [vmem:[%s0 + $0xdc] sm:$0xf]
  %v73 = vld [vmem:[%s0 + $0xe0] sm:$0xf]
  %v74 = vld [vmem:[%s0 + $0xe4] sm:$0xf]
  %v75 = vld [vmem:[%s0 + $0xe8] sm:$0xf]
  %v76 = vld [vmem:[%s0 + $0xec] sm:$0xf]
  %v77 = vld [vmem:[%s0 + $0xf0] sm:$0xf]
  %v78 = vld [vmem:[%s0 + $0xf4] sm:$0xf]
  %v79 = vld [vmem:[%s0 + $0xf8] sm:$0xf]
  %v80 = vld [vmem:[%s0 + $0xfc] sm:$0xf]
  %v81 = vunpack.c.l.bf16 %v17
  %v82 = vunpack.c.l.bf16 %v18
  %v83 = vunpack.c.l.bf16 %v19
  %v84 = vunpack.c.l.bf16 %v20
  %v85 = vunpack.c.l.bf16 %v21
  %v86 = vunpack.c.l.bf16 %v22
  %v87 = vunpack.c.l.bf16 %v23
  %v88 = vunpack.c.l.bf16 %v24
  %v89 = vunpack.c.l.bf16 %v25
  %v90 = vunpack.c.l.bf16 %v26
  %v91 = vunpack.c.l.bf16 %v27
  %v92 = vunpack.c.l.bf16 %v28
  %v93 = vunpack.c.l.bf16 %v29
  %v94 = vunpack.c.l.bf16 %v30
  %v95 = vunpack.c.l.bf16 %v31
  %v96 = vunpack.c.l.bf16 %v32
  %v97 = vunpack.c.l.bf16 %v33
  %v98 = vunpack.c.l.bf16 %v34
  %v99 = vunpack.c.l.bf16 %v35
  %v100 = vunpack.c.l.bf16 %v36
  %v101 = vunpack.c.l.bf16 %v37
  %v102 = vunpack.c.l.bf16 %v38
  %v103 = vunpack.c.l.bf16 %v39
  %v104 = vunpack.c.l.bf16 %v40
  %v105 = vunpack.c.l.bf16 %v41
  %v106 = vunpack.c.l.bf16 %v42
  %v107 = vunpack.c.l.bf16 %v43
  %v108 = vunpack.c.l.bf16 %v44
  %v109 = vunpack.c.l.bf16 %v45
  %v110 = vunpack.c.l.bf16 %v46
  %v111 = vunpack.c.l.bf16 %v47
  %v112 = vunpack.c.l.bf16 %v48
  %v113 = vunpack.c.l.bf16 %v49
  %v114 = vunpack.c.l.bf16 %v50
  %v115 = vunpack.c.l.bf16 %v51
  %v116 = vunpack.c.l.bf16 %v52
  %v117 = vunpack.c.l.bf16 %v53
  %v118 = vunpack.c.l.bf16 %v54
  %v119 = vunpack.c.l.bf16 %v55
  %v120 = vunpack.c.l.bf16 %v56
  %v121 = vunpack.c.l.bf16 %v57
  %v122 = vunpack.c.l.bf16 %v58
  %v123 = vunpack.c.l.bf16 %v59
  %v124 = vunpack.c.l.bf16 %v60
  %v125 = vunpack.c.l.bf16 %v61
  %v126 = vunpack.c.l.bf16 %v62
  %v127 = vunpack.c.l.bf16 %v63
  %v128 = vunpack.c.l.bf16 %v64
  %v129 = vunpack.c.l.bf16 %v65
  %v130 = vunpack.c.l.bf16 %v66
  %v131 = vunpack.c.l.bf16 %v67
  %v132 = vunpack.c.l.bf16 %v68
  %v133 = vunpack.c.l.bf16 %v69
  %v134 = vunpack.c.l.bf16 %v70
  %v135 = vunpack.c.l.bf16 %v71
  %v136 = vunpack.c.l.bf16 %v72
  %v137 = vunpack.c.l.bf16 %v73
  %v138 = vunpack.c.l.bf16 %v74
  %v139 = vunpack.c.l.bf16 %v75
  %v140 = vunpack.c.l.bf16 %v76
  %v141 = vunpack.c.l.bf16 %v77
  %v142 = vunpack.c.l.bf16 %v78
  %v143 = vunpack.c.l.bf16 %v79
  %v144 = vunpack.c.l.bf16 %v80
  %v145 = vld [vmem:[%s2] sm:$0x1]
  %v147 = vlaneseq
  %v148 = vshrl.u32 %v147, 7
  %v149 = vsub.s32 0, %v148
  %v150 = vrot.slane %v145, %v149
  %v152 = vmul.f32 %v81, %v150
  %v153 = vmul.f32 %v82, %v150
  %v154 = vmul.f32 %v83, %v150
  %v155 = vmul.f32 %v84, %v150
  %v156 = vmul.f32 %v85, %v150
  %v157 = vmul.f32 %v86, %v150
  %v158 = vmul.f32 %v87, %v150
  %v159 = vmul.f32 %v88, %v150
  %v160 = vmul.f32 %v89, %v150
  %v161 = vmul.f32 %v90, %v150
  %v162 = vmul.f32 %v91, %v150
  %v163 = vmul.f32 %v92, %v150
  %v164 = vmul.f32 %v93, %v150
  %v165 = vmul.f32 %v94, %v150
  %v166 = vmul.f32 %v95, %v150
  %v167 = vmul.f32 %v96, %v150
  %v168 = vmul.f32 %v97, %v150
  %v169 = vmul.f32 %v98, %v150
  %v170 = vmul.f32 %v99, %v150
  %v171 = vmul.f32 %v100, %v150
  %v172 = vmul.f32 %v101, %v150
  %v173 = vmul.f32 %v102, %v150
  %v174 = vmul.f32 %v103, %v150
  %v175 = vmul.f32 %v104, %v150
  %v176 = vmul.f32 %v105, %v150
  %v177 = vmul.f32 %v106, %v150
  %v178 = vmul.f32 %v107, %v150
  %v179 = vmul.f32 %v108, %v150
  %v180 = vmul.f32 %v109, %v150
  %v181 = vmul.f32 %v110, %v150
  %v182 = vmul.f32 %v111, %v150
  %v183 = vmul.f32 %v112, %v150
  %v184 = vmul.f32 %v113, %v150
  %v185 = vmul.f32 %v114, %v150
  %v186 = vmul.f32 %v115, %v150
  %v187 = vmul.f32 %v116, %v150
  %v188 = vmul.f32 %v117, %v150
  %v189 = vmul.f32 %v118, %v150
  %v190 = vmul.f32 %v119, %v150
  %v191 = vmul.f32 %v120, %v150
  %v192 = vmul.f32 %v121, %v150
  %v193 = vmul.f32 %v122, %v150
  %v194 = vmul.f32 %v123, %v150
  %v195 = vmul.f32 %v124, %v150
  %v196 = vmul.f32 %v125, %v150
  %v197 = vmul.f32 %v126, %v150
  %v198 = vmul.f32 %v127, %v150
  %v199 = vmul.f32 %v128, %v150
  %v200 = vmul.f32 %v129, %v150
  %v201 = vmul.f32 %v130, %v150
  %v202 = vmul.f32 %v131, %v150
  %v203 = vmul.f32 %v132, %v150
  %v204 = vmul.f32 %v133, %v150
  %v205 = vmul.f32 %v134, %v150
  %v206 = vmul.f32 %v135, %v150
  %v207 = vmul.f32 %v136, %v150
  %v208 = vmul.f32 %v137, %v150
  %v209 = vmul.f32 %v138, %v150
  %v210 = vmul.f32 %v139, %v150
  %v211 = vmul.f32 %v140, %v150
  %v212 = vmul.f32 %v141, %v150
  %v213 = vmul.f32 %v142, %v150
  %v214 = vmul.f32 %v143, %v150
  %v215 = vmul.f32 %v144, %v150
  %v216 = vld [vmem:[%s3] sm:$0x1]
  %v218 = vlaneseq
  %v219 = vshrl.u32 %v218, 7
  %v220 = vsub.s32 0, %v219
  %v221 = vrot.slane %v216, %v220
  %v223 = vadd.f32 %v152, %v221
  %v224 = vadd.f32 %v153, %v221
  %v225 = vadd.f32 %v154, %v221
  %v226 = vadd.f32 %v155, %v221
  %v227 = vadd.f32 %v156, %v221
  %v228 = vadd.f32 %v157, %v221
  %v229 = vadd.f32 %v158, %v221
  %v230 = vadd.f32 %v159, %v221
  %v231 = vadd.f32 %v160, %v221
  %v232 = vadd.f32 %v161, %v221
  %v233 = vadd.f32 %v162, %v221
  %v234 = vadd.f32 %v163, %v221
  %v235 = vadd.f32 %v164, %v221
  %v236 = vadd.f32 %v165, %v221
  %v237 = vadd.f32 %v166, %v221
  %v238 = vadd.f32 %v167, %v221
  %v239 = vadd.f32 %v168, %v221
  %v240 = vadd.f32 %v169, %v221
  %v241 = vadd.f32 %v170, %v221
  %v242 = vadd.f32 %v171, %v221
  %v243 = vadd.f32 %v172, %v221
  %v244 = vadd.f32 %v173, %v221
  %v245 = vadd.f32 %v174, %v221
  %v246 = vadd.f32 %v175, %v221
  %v247 = vadd.f32 %v176, %v221
  %v248 = vadd.f32 %v177, %v221
  %v249 = vadd.f32 %v178, %v221
  %v250 = vadd.f32 %v179, %v221
  %v251 = vadd.f32 %v180, %v221
  %v252 = vadd.f32 %v181, %v221
  %v253 = vadd.f32 %v182, %v221
  %v254 = vadd.f32 %v183, %v221
  %v255 = vadd.f32 %v184, %v221
  %v256 = vadd.f32 %v185, %v221
  %v257 = vadd.f32 %v186, %v221
  %v258 = vadd.f32 %v187, %v221
  %v259 = vadd.f32 %v188, %v221
  %v260 = vadd.f32 %v189, %v221
  %v261 = vadd.f32 %v190, %v221
  %v262 = vadd.f32 %v191, %v221
  %v263 = vadd.f32 %v192, %v221
  %v264 = vadd.f32 %v193, %v221
  %v265 = vadd.f32 %v194, %v221
  %v266 = vadd.f32 %v195, %v221
  %v267 = vadd.f32 %v196, %v221
  %v268 = vadd.f32 %v197, %v221
  %v269 = vadd.f32 %v198, %v221
  %v270 = vadd.f32 %v199, %v221
  %v271 = vadd.f32 %v200, %v221
  %v272 = vadd.f32 %v201, %v221
  %v273 = vadd.f32 %v202, %v221
  %v274 = vadd.f32 %v203, %v221
  %v275 = vadd.f32 %v204, %v221
  %v276 = vadd.f32 %v205, %v221
  %v277 = vadd.f32 %v206, %v221
  %v278 = vadd.f32 %v207, %v221
  %v279 = vadd.f32 %v208, %v221
  %v280 = vadd.f32 %v209, %v221
  %v281 = vadd.f32 %v210, %v221
  %v282 = vadd.f32 %v211, %v221
  %v283 = vadd.f32 %v212, %v221
  %v284 = vadd.f32 %v213, %v221
  %v285 = vadd.f32 %v214, %v221
  %v286 = vadd.f32 %v215, %v221
  %v287 = vld [vmem:[%s1] sm:$0xff]
  %v288 = vld [vmem:[%s1 + $0x8] sm:$0xff]
  %v289 = vld [vmem:[%s1 + $0x10] sm:$0xff]
  %v290 = vld [vmem:[%s1 + $0x18] sm:$0xff]
  %v291 = vld [vmem:[%s1 + $0x20] sm:$0xff]
  %v292 = vld [vmem:[%s1 + $0x28] sm:$0xff]
  %v293 = vld [vmem:[%s1 + $0x30] sm:$0xff]
  %v294 = vld [vmem:[%s1 + $0x38] sm:$0xff]
  %v295 = vld [vmem:[%s1 + $0x40] sm:$0xff]
  %v296 = vld [vmem:[%s1 + $0x48] sm:$0xff]
  %v297 = vld [vmem:[%s1 + $0x50] sm:$0xff]
  %v298 = vld [vmem:[%s1 + $0x58] sm:$0xff]
  %v299 = vld [vmem:[%s1 + $0x60] sm:$0xff]
  %v300 = vld [vmem:[%s1 + $0x68] sm:$0xff]
  %v301 = vld [vmem:[%s1 + $0x70] sm:$0xff]
  %v302 = vld [vmem:[%s1 + $0x78] sm:$0xff]
  %v303 = vld [vmem:[%s1 + $0x80] sm:$0xff]
  %v304 = vld [vmem:[%s1 + $0x88] sm:$0xff]
  %v305 = vld [vmem:[%s1 + $0x90] sm:$0xff]
  %v306 = vld [vmem:[%s1 + $0x98] sm:$0xff]
  %v307 = vld [vmem:[%s1 + $0xa0] sm:$0xff]
  %v308 = vld [vmem:[%s1 + $0xa8] sm:$0xff]
  %v309 = vld [vmem:[%s1 + $0xb0] sm:$0xff]
  %v310 = vld [vmem:[%s1 + $0xb8] sm:$0xff]
  %v311 = vld [vmem:[%s1 + $0xc0] sm:$0xff]
  %v312 = vld [vmem:[%s1 + $0xc8] sm:$0xff]
  %v313 = vld [vmem:[%s1 + $0xd0] sm:$0xff]
  %v314 = vld [vmem:[%s1 + $0xd8] sm:$0xff]
  %v315 = vld [vmem:[%s1 + $0xe0] sm:$0xff]
  %v316 = vld [vmem:[%s1 + $0xe8] sm:$0xff]
  %v317 = vld [vmem:[%s1 + $0xf0] sm:$0xff]
  %v318 = vld [vmem:[%s1 + $0xf8] sm:$0xff]
  %v319 = vld [vmem:[%s1 + $0x100] sm:$0xff]
  %v320 = vld [vmem:[%s1 + $0x108] sm:$0xff]
  %v321 = vld [vmem:[%s1 + $0x110] sm:$0xff]
  %v322 = vld [vmem:[%s1 + $0x118] sm:$0xff]
  %v323 = vld [vmem:[%s1 + $0x120] sm:$0xff]
  %v324 = vld [vmem:[%s1 + $0x128] sm:$0xff]
  %v325 = vld [vmem:[%s1 + $0x130] sm:$0xff]
  %v326 = vld [vmem:[%s1 + $0x138] sm:$0xff]
  %v327 = vld [vmem:[%s1 + $0x140] sm:$0xff]
  %v328 = vld [vmem:[%s1 + $0x148] sm:$0xff]
  %v329 = vld [vmem:[%s1 + $0x150] sm:$0xff]
  %v330 = vld [vmem:[%s1 + $0x158] sm:$0xff]
  %v331 = vld [vmem:[%s1 + $0x160] sm:$0xff]
  %v332 = vld [vmem:[%s1 + $0x168] sm:$0xff]
  %v333 = vld [vmem:[%s1 + $0x170] sm:$0xff]
  %v334 = vld [vmem:[%s1 + $0x178] sm:$0xff]
  %v335 = vld [vmem:[%s1 + $0x180] sm:$0xff]
  %v336 = vld [vmem:[%s1 + $0x188] sm:$0xff]
  %v337 = vld [vmem:[%s1 + $0x190] sm:$0xff]
  %v338 = vld [vmem:[%s1 + $0x198] sm:$0xff]
  %v339 = vld [vmem:[%s1 + $0x1a0] sm:$0xff]
  %v340 = vld [vmem:[%s1 + $0x1a8] sm:$0xff]
  %v341 = vld [vmem:[%s1 + $0x1b0] sm:$0xff]
  %v342 = vld [vmem:[%s1 + $0x1b8] sm:$0xff]
  %v343 = vld [vmem:[%s1 + $0x1c0] sm:$0xff]
  %v344 = vld [vmem:[%s1 + $0x1c8] sm:$0xff]
  %v345 = vld [vmem:[%s1 + $0x1d0] sm:$0xff]
  %v346 = vld [vmem:[%s1 + $0x1d8] sm:$0xff]
  %v347 = vld [vmem:[%s1 + $0x1e0] sm:$0xff]
  %v348 = vld [vmem:[%s1 + $0x1e8] sm:$0xff]
  %v349 = vld [vmem:[%s1 + $0x1f0] sm:$0xff]
  %v350 = vld [vmem:[%s1 + $0x1f8] sm:$0xff]
  %v351 = vadd.f32 %v223, %v287
  %v352 = vadd.f32 %v224, %v288
  %v353 = vadd.f32 %v225, %v289
  %v354 = vadd.f32 %v226, %v290
  %v355 = vadd.f32 %v227, %v291
  %v356 = vadd.f32 %v228, %v292
  %v357 = vadd.f32 %v229, %v293
  %v358 = vadd.f32 %v230, %v294
  %v359 = vadd.f32 %v231, %v295
  %v360 = vadd.f32 %v232, %v296
  %v361 = vadd.f32 %v233, %v297
  %v362 = vadd.f32 %v234, %v298
  %v363 = vadd.f32 %v235, %v299
  %v364 = vadd.f32 %v236, %v300
  %v365 = vadd.f32 %v237, %v301
  %v366 = vadd.f32 %v238, %v302
  %v367 = vadd.f32 %v239, %v303
  %v368 = vadd.f32 %v240, %v304
  %v369 = vadd.f32 %v241, %v305
  %v370 = vadd.f32 %v242, %v306
  %v371 = vadd.f32 %v243, %v307
  %v372 = vadd.f32 %v244, %v308
  %v373 = vadd.f32 %v245, %v309
  %v374 = vadd.f32 %v246, %v310
  %v375 = vadd.f32 %v247, %v311
  %v376 = vadd.f32 %v248, %v312
  %v377 = vadd.f32 %v249, %v313
  %v378 = vadd.f32 %v250, %v314
  %v379 = vadd.f32 %v251, %v315
  %v380 = vadd.f32 %v252, %v316
  %v381 = vadd.f32 %v253, %v317
  %v382 = vadd.f32 %v254, %v318
  %v383 = vadd.f32 %v255, %v319
  %v384 = vadd.f32 %v256, %v320
  %v385 = vadd.f32 %v257, %v321
  %v386 = vadd.f32 %v258, %v322
  %v387 = vadd.f32 %v259, %v323
  %v388 = vadd.f32 %v260, %v324
  %v389 = vadd.f32 %v261, %v325
  %v390 = vadd.f32 %v262, %v326
  %v391 = vadd.f32 %v263, %v327
  %v392 = vadd.f32 %v264, %v328
  %v393 = vadd.f32 %v265, %v329
  %v394 = vadd.f32 %v266, %v330
  %v395 = vadd.f32 %v267, %v331
  %v396 = vadd.f32 %v268, %v332
  %v397 = vadd.f32 %v269, %v333
  %v398 = vadd.f32 %v270, %v334
  %v399 = vadd.f32 %v271, %v335
  %v400 = vadd.f32 %v272, %v336
  %v401 = vadd.f32 %v273, %v337
  %v402 = vadd.f32 %v274, %v338
  %v403 = vadd.f32 %v275, %v339
  %v404 = vadd.f32 %v276, %v340
  %v405 = vadd.f32 %v277, %v341
  %v406 = vadd.f32 %v278, %v342
  %v407 = vadd.f32 %v279, %v343
  %v408 = vadd.f32 %v280, %v344
  %v409 = vadd.f32 %v281, %v345
  %v410 = vadd.f32 %v282, %v346
  %v411 = vadd.f32 %v283, %v347
  %v412 = vadd.f32 %v284, %v348
  %v413 = vadd.f32 %v285, %v349
  %v414 = vadd.f32 %v286, %v350
  %v415 = vmax.f32 %v351, 0.0
  %v416 = vmax.f32 %v352, 0.0
  %v417 = vmax.f32 %v353, 0.0
  %v418 = vmax.f32 %v354, 0.0
  %v419 = vmax.f32 %v355, 0.0
  %v420 = vmax.f32 %v356, 0.0
  %v421 = vmax.f32 %v357, 0.0
  %v422 = vmax.f32 %v358, 0.0
  %v423 = vmax.f32 %v359, 0.0
  %v424 = vmax.f32 %v360, 0.0
  %v425 = vmax.f32 %v361, 0.0
  %v426 = vmax.f32 %v362, 0.0
  %v427 = vmax.f32 %v363, 0.0
  %v428 = vmax.f32 %v364, 0.0
  %v429 = vmax.f32 %v365, 0.0
  %v430 = vmax.f32 %v366, 0.0
  %v431 = vmax.f32 %v367, 0.0
  %v432 = vmax.f32 %v368, 0.0
  %v433 = vmax.f32 %v369, 0.0
  %v434 = vmax.f32 %v370, 0.0
  %v435 = vmax.f32 %v371, 0.0
  %v436 = vmax.f32 %v372, 0.0
  %v437 = vmax.f32 %v373, 0.0
  %v438 = vmax.f32 %v374, 0.0
  %v439 = vmax.f32 %v375, 0.0
  %v440 = vmax.f32 %v376, 0.0
  %v441 = vmax.f32 %v377, 0.0
  %v442 = vmax.f32 %v378, 0.0
  %v443 = vmax.f32 %v379, 0.0
  %v444 = vmax.f32 %v380, 0.0
  %v445 = vmax.f32 %v381, 0.0
  %v446 = vmax.f32 %v382, 0.0
  %v447 = vmax.f32 %v383, 0.0
  %v448 = vmax.f32 %v384, 0.0
  %v449 = vmax.f32 %v385, 0.0
  %v450 = vmax.f32 %v386, 0.0
  %v451 = vmax.f32 %v387, 0.0
  %v452 = vmax.f32 %v388, 0.0
  %v453 = vmax.f32 %v389, 0.0
  %v454 = vmax.f32 %v390, 0.0
  %v455 = vmax.f32 %v391, 0.0
  %v456 = vmax.f32 %v392, 0.0
  %v457 = vmax.f32 %v393, 0.0
  %v458 = vmax.f32 %v394, 0.0
  %v459 = vmax.f32 %v395, 0.0
  %v460 = vmax.f32 %v396, 0.0
  %v461 = vmax.f32 %v397, 0.0
  %v462 = vmax.f32 %v398, 0.0
  %v463 = vmax.f32 %v399, 0.0
  %v464 = vmax.f32 %v400, 0.0
  %v465 = vmax.f32 %v401, 0.0
  %v466 = vmax.f32 %v402, 0.0
  %v467 = vmax.f32 %v403, 0.0
  %v468 = vmax.f32 %v404, 0.0
  %v469 = vmax.f32 %v405, 0.0
  %v470 = vmax.f32 %v406, 0.0
  %v471 = vmax.f32 %v407, 0.0
  %v472 = vmax.f32 %v408, 0.0
  %v473 = vmax.f32 %v409, 0.0
  %v474 = vmax.f32 %v410, 0.0
  %v475 = vmax.f32 %v411, 0.0
  %v476 = vmax.f32 %v412, 0.0
  %v477 = vmax.f32 %v413, 0.0
  %v478 = vmax.f32 %v414, 0.0
  %vm479 = vcmask 31744
  %480 = vst.msk [vmem:[%s4] sm:$0xff] %vm479, %v415
  %481 = vst.msk [vmem:[%s4 + $0x8] sm:$0xff] %vm479, %v416
  %482 = vst.msk [vmem:[%s4 + $0x10] sm:$0xff] %vm479, %v417
  %483 = vst.msk [vmem:[%s4 + $0x18] sm:$0xff] %vm479, %v418
  %484 = vst.msk [vmem:[%s4 + $0x20] sm:$0xff] %vm479, %v419
  %485 = vst.msk [vmem:[%s4 + $0x28] sm:$0xff] %vm479, %v420
  %486 = vst.msk [vmem:[%s4 + $0x30] sm:$0xff] %vm479, %v421
  %487 = vst.msk [vmem:[%s4 + $0x38] sm:$0xff] %vm479, %v422
  %488 = vst.msk [vmem:[%s4 + $0x40] sm:$0xff] %vm479, %v423
  %489 = vst.msk [vmem:[%s4 + $0x48] sm:$0xff] %vm479, %v424
  %490 = vst.msk [vmem:[%s4 + $0x50] sm:$0xff] %vm479, %v425
  %491 = vst.msk [vmem:[%s4 + $0x58] sm:$0xff] %vm479, %v426
  %492 = vst.msk [vmem:[%s4 + $0x60] sm:$0xff] %vm479, %v427
  %493 = vst.msk [vmem:[%s4 + $0x68] sm:$0xff] %vm479, %v428
  %494 = vst.msk [vmem:[%s4 + $0x70] sm:$0xff] %vm479, %v429
  %495 = vst.msk [vmem:[%s4 + $0x78] sm:$0xff] %vm479, %v430
  %496 = vst.msk [vmem:[%s4 + $0x80] sm:$0xff] %vm479, %v431
  %497 = vst.msk [vmem:[%s4 + $0x88] sm:$0xff] %vm479, %v432
  %498 = vst.msk [vmem:[%s4 + $0x90] sm:$0xff] %vm479, %v433
  %499 = vst.msk [vmem:[%s4 + $0x98] sm:$0xff] %vm479, %v434
  %500 = vst.msk [vmem:[%s4 + $0xa0] sm:$0xff] %vm479, %v435
  %501 = vst.msk [vmem:[%s4 + $0xa8] sm:$0xff] %vm479, %v436
  %502 = vst.msk [vmem:[%s4 + $0xb0] sm:$0xff] %vm479, %v437
  %503 = vst.msk [vmem:[%s4 + $0xb8] sm:$0xff] %vm479, %v438
  %504 = vst.msk [vmem:[%s4 + $0xc0] sm:$0xff] %vm479, %v439
  %505 = vst.msk [vmem:[%s4 + $0xc8] sm:$0xff] %vm479, %v440
  %506 = vst.msk [vmem:[%s4 + $0xd0] sm:$0xff] %vm479, %v441
  %507 = vst.msk [vmem:[%s4 + $0xd8] sm:$0xff] %vm479, %v442
  %508 = vst.msk [vmem:[%s4 + $0xe0] sm:$0xff] %vm479, %v443
  %509 = vst.msk [vmem:[%s4 + $0xe8] sm:$0xff] %vm479, %v444
  %510 = vst.msk [vmem:[%s4 + $0xf0] sm:$0xff] %vm479, %v445
  %511 = vst.msk [vmem:[%s4 + $0xf8] sm:$0xff] %vm479, %v446
  %512 = vst.msk [vmem:[%s4 + $0x100] sm:$0xff] %vm479, %v447
  %513 = vst.msk [vmem:[%s4 + $0x108] sm:$0xff] %vm479, %v448
  %514 = vst.msk [vmem:[%s4 + $0x110] sm:$0xff] %vm479, %v449
  %515 = vst.msk [vmem:[%s4 + $0x118] sm:$0xff] %vm479, %v450
  %516 = vst.msk [vmem:[%s4 + $0x120] sm:$0xff] %vm479, %v451
  %517 = vst.msk [vmem:[%s4 + $0x128] sm:$0xff] %vm479, %v452
  %518 = vst.msk [vmem:[%s4 + $0x130] sm:$0xff] %vm479, %v453
  %519 = vst.msk [vmem:[%s4 + $0x138] sm:$0xff] %vm479, %v454
  %520 = vst.msk [vmem:[%s4 + $0x140] sm:$0xff] %vm479, %v455
  %521 = vst.msk [vmem:[%s4 + $0x148] sm:$0xff] %vm479, %v456
  %522 = vst.msk [vmem:[%s4 + $0x150] sm:$0xff] %vm479, %v457
  %523 = vst.msk [vmem:[%s4 + $0x158] sm:$0xff] %vm479, %v458
  %524 = vst.msk [vmem:[%s4 + $0x160] sm:$0xff] %vm479, %v459
  %525 = vst.msk [vmem:[%s4 + $0x168] sm:$0xff] %vm479, %v460
  %526 = vst.msk [vmem:[%s4 + $0x170] sm:$0xff] %vm479, %v461
  %527 = vst.msk [vmem:[%s4 + $0x178] sm:$0xff] %vm479, %v462
  %528 = vst.msk [vmem:[%s4 + $0x180] sm:$0xff] %vm479, %v463
  %529 = vst.msk [vmem:[%s4 + $0x188] sm:$0xff] %vm479, %v464
  %530 = vst.msk [vmem:[%s4 + $0x190] sm:$0xff] %vm479, %v465
  %531 = vst.msk [vmem:[%s4 + $0x198] sm:$0xff] %vm479, %v466
  %532 = vst.msk [vmem:[%s4 + $0x1a0] sm:$0xff] %vm479, %v467
  %533 = vst.msk [vmem:[%s4 + $0x1a8] sm:$0xff] %vm479, %v468
  %534 = vst.msk [vmem:[%s4 + $0x1b0] sm:$0xff] %vm479, %v469
  %535 = vst.msk [vmem:[%s4 + $0x1b8] sm:$0xff] %vm479, %v470
  %536 = vst.msk [vmem:[%s4 + $0x1c0] sm:$0xff] %vm479, %v471
  %537 = vst.msk [vmem:[%s4 + $0x1c8] sm:$0xff] %vm479, %v472
  %538 = vst.msk [vmem:[%s4 + $0x1d0] sm:$0xff] %vm479, %v473
  %539 = vst.msk [vmem:[%s4 + $0x1d8] sm:$0xff] %vm479, %v474
  %540 = vst.msk [vmem:[%s4 + $0x1e0] sm:$0xff] %vm479, %v475
  %541 = vst.msk [vmem:[%s4 + $0x1e8] sm:$0xff] %vm479, %v476
  %542 = vst.msk [vmem:[%s4 + $0x1f0] sm:$0xff] %vm479, %v477
  %543 = vst.msk [vmem:[%s4 + $0x1f8] sm:$0xff] %vm479, %v478
  // Predicated region
  $region18: #{bottleneck.7} parent=0 // pred_check
    _
  $region19: #{bottleneck.7} parent=0 // pred_check_branch
    %545 = sbr.rel (0) target = $region21
  $region20: #{bottleneck.7} parent=0 // pred_region
    _
  $region21: #{bottleneck.7} parent=0 // pred_fallthru
    _
  // Predicated region
  $region22: #{bottleneck.7} parent=0 // pred_check
    _
  $region23: #{bottleneck.7} parent=0 // pred_check_branch
    %547 = sbr.rel (0) target = $region25
  $region24: #{bottleneck.7} parent=0 // pred_region
    _
  $region25: #{bottleneck.7} parent=0 // pred_fallthru
    _

// kernel: bottleneck.4
$region0: #{bottleneck.4}
  #allocation0 [shape = 'u32[]', space=smem, size = 0x4, offset = 0x4, fixed_abs, tag = 'smem constant byte address 0x4 - core index']
  #allocation1 [shape = 'u32[144,128]{1,0:T(1,128)}', space=vmem, size = 0x12000, scoped, tag = 'internal scratch']
  %s0 = inlined_call_operand.vmem [shape: f32[512,4], index: 0, kind: input, shape index: {}]
  %s1 = inlined_call_operand.vmem [shape: bf16[4,8], index: 1, kind: input, shape index: {}]
  %s2 = inlined_call_operand.vmem [shape: bf16[512,8], index: 2, kind: output, shape index: {0}]
  %s3 = inlined_call_operand.vmem [shape: f32[1,1,8], index: 3, kind: output, shape index: {1}]
  %s4 = inlined_call_operand.vmem [shape: f32[1,1,8], index: 4, kind: output, shape index: {2}]
  %5 = xla_tuple %s2, %s3, %s4
  %s6 = sld [smem:[#allocation0]]
  $region34: #{bottleneck.4} parent=0
    _
  %s8 = ssub.s32 1, %s6
  %s9 = scalar_select 0, %s8, %s6
  // Predicated region
  $region2: #{bottleneck.4} parent=0 // pred_check
    _
  $region3: #{bottleneck.4} parent=0 // pred_check_branch
    %11 = sbr.rel (0) target = $region5
  $region4: #{bottleneck.4} parent=0 // pred_region
    _
  $region5: #{bottleneck.4} parent=0 // pred_fallthru
    _
  // Predicated region
  $region6: #{bottleneck.4} parent=0 // pred_check
    _
  $region7: #{bottleneck.4} parent=0 // pred_check_branch
    %13 = sbr.rel (0) target = $region9
  $region8: #{bottleneck.4} parent=0 // pred_region
    _
  $region9: #{bottleneck.4} parent=0 // pred_fallthru
    _
  %v15 = vld [vmem:[%s0] sm:$0xff]
  %v16 = vld [vmem:[%s0 + $0x8] sm:$0xff]
  %v17 = vld [vmem:[%s0 + $0x10] sm:$0xff]
  %v18 = vld [vmem:[%s0 + $0x18] sm:$0xff]
  %v19 = vld [vmem:[%s0 + $0x20] sm:$0xff]
  %v20 = vld [vmem:[%s0 + $0x28] sm:$0xff]
  %v21 = vld [vmem:[%s0 + $0x30] sm:$0xff]
  %v22 = vld [vmem:[%s0 + $0x38] sm:$0xff]
  %v23 = vld [vmem:[%s0 + $0x40] sm:$0xff]
  %v24 = vld [vmem:[%s0 + $0x48] sm:$0xff]
  %v25 = vld [vmem:[%s0 + $0x50] sm:$0xff]
  %v26 = vld [vmem:[%s0 + $0x58] sm:$0xff]
  %v27 = vld [vmem:[%s0 + $0x60] sm:$0xff]
  %v28 = vld [vmem:[%s0 + $0x68] sm:$0xff]
  %v29 = vld [vmem:[%s0 + $0x70] sm:$0xff]
  %v30 = vld [vmem:[%s0 + $0x78] sm:$0xff]
  %v31 = vld [vmem:[%s0 + $0x80] sm:$0xff]
  %v32 = vld [vmem:[%s0 + $0x88] sm:$0xff]
  %v33 = vld [vmem:[%s0 + $0x90] sm:$0xff]
  %v34 = vld [vmem:[%s0 + $0x98] sm:$0xff]
  %v35 = vld [vmem:[%s0 + $0xa0] sm:$0xff]
  %v36 = vld [vmem:[%s0 + $0xa8] sm:$0xff]
  %v37 = vld [vmem:[%s0 + $0xb0] sm:$0xff]
  %v38 = vld [vmem:[%s0 + $0xb8] sm:$0xff]
  %v39 = vld [vmem:[%s0 + $0xc0] sm:$0xff]
  %v40 = vld [vmem:[%s0 + $0xc8] sm:$0xff]
  %v41 = vld [vmem:[%s0 + $0xd0] sm:$0xff]
  %v42 = vld [vmem:[%s0 + $0xd8] sm:$0xff]
  %v43 = vld [vmem:[%s0 + $0xe0] sm:$0xff]
  %v44 = vld [vmem:[%s0 + $0xe8] sm:$0xff]
  %v45 = vld [vmem:[%s0 + $0xf0] sm:$0xff]
  %v46 = vld [vmem:[%s0 + $0xf8] sm:$0xff]
  %v47 = vld [vmem:[%s0 + $0x100] sm:$0xff]
  %v48 = vld [vmem:[%s0 + $0x108] sm:$0xff]
  %v49 = vld [vmem:[%s0 + $0x110] sm:$0xff]
  %v50 = vld [vmem:[%s0 + $0x118] sm:$0xff]
  %v51 = vld [vmem:[%s0 + $0x120] sm:$0xff]
  %v52 = vld [vmem:[%s0 + $0x128] sm:$0xff]
  %v53 = vld [vmem:[%s0 + $0x130] sm:$0xff]
  %v54 = vld [vmem:[%s0 + $0x138] sm:$0xff]
  %v55 = vld [vmem:[%s0 + $0x140] sm:$0xff]
  %v56 = vld [vmem:[%s0 + $0x148] sm:$0xff]
  %v57 = vld [vmem:[%s0 + $0x150] sm:$0xff]
  %v58 = vld [vmem:[%s0 + $0x158] sm:$0xff]
  %v59 = vld [vmem:[%s0 + $0x160] sm:$0xff]
  %v60 = vld [vmem:[%s0 + $0x168] sm:$0xff]
  %v61 = vld [vmem:[%s0 + $0x170] sm:$0xff]
  %v62 = vld [vmem:[%s0 + $0x178] sm:$0xff]
  %v63 = vld [vmem:[%s0 + $0x180] sm:$0xff]
  %v64 = vld [vmem:[%s0 + $0x188] sm:$0xff]
  %v65 = vld [vmem:[%s0 + $0x190] sm:$0xff]
  %v66 = vld [vmem:[%s0 + $0x198] sm:$0xff]
  %v67 = vld [vmem:[%s0 + $0x1a0] sm:$0xff]
  %v68 = vld [vmem:[%s0 + $0x1a8] sm:$0xff]
  %v69 = vld [vmem:[%s0 + $0x1b0] sm:$0xff]
  %v70 = vld [vmem:[%s0 + $0x1b8] sm:$0xff]
  %v71 = vld [vmem:[%s0 + $0x1c0] sm:$0xff]
  %v72 = vld [vmem:[%s0 + $0x1c8] sm:$0xff]
  %v73 = vld [vmem:[%s0 + $0x1d0] sm:$0xff]
  %v74 = vld [vmem:[%s0 + $0x1d8] sm:$0xff]
  %v75 = vld [vmem:[%s0 + $0x1e0] sm:$0xff]
  %v76 = vld [vmem:[%s0 + $0x1e8] sm:$0xff]
  %v77 = vld [vmem:[%s0 + $0x1f0] sm:$0xff]
  %v78 = vld [vmem:[%s0 + $0x1f8] sm:$0xff]
  %v79 = vpack.c.bf16 %v16, %v15
  %v80 = vpack.c.bf16 %v18, %v17
  %v81 = vpack.c.bf16 %v20, %v19
  %v82 = vpack.c.bf16 %v22, %v21
  %v83 = vpack.c.bf16 %v24, %v23
  %v84 = vpack.c.bf16 %v26, %v25
  %v85 = vpack.c.bf16 %v28, %v27
  %v86 = vpack.c.bf16 %v30, %v29
  %v87 = vpack.c.bf16 %v32, %v31
  %v88 = vpack.c.bf16 %v34, %v33
  %v89 = vpack.c.bf16 %v36, %v35
  %v90 = vpack.c.bf16 %v38, %v37
  %v91 = vpack.c.bf16 %v40, %v39
  %v92 = vpack.c.bf16 %v42, %v41
  %v93 = vpack.c.bf16 %v44, %v43
  %v94 = vpack.c.bf16 %v46, %v45
  %v95 = vpack.c.bf16 %v48, %v47
  %v96 = vpack.c.bf16 %v50, %v49
  %v97 = vpack.c.bf16 %v52, %v51
  %v98 = vpack.c.bf16 %v54, %v53
  %v99 = vpack.c.bf16 %v56, %v55
  %v100 = vpack.c.bf16 %v58, %v57
  %v101 = vpack.c.bf16 %v60, %v59
  %v102 = vpack.c.bf16 %v62, %v61
  %v103 = vpack.c.bf16 %v64, %v63
  %v104 = vpack.c.bf16 %v66, %v65
  %v105 = vpack.c.bf16 %v68, %v67
  %v106 = vpack.c.bf16 %v70, %v69
  %v107 = vpack.c.bf16 %v72, %v71
  %v108 = vpack.c.bf16 %v74, %v73
  %v109 = vpack.c.bf16 %v76, %v75
  %v110 = vpack.c.bf16 %v78, %v77
  %v111 = vld [vmem:[%s1] sm:$0x3]
  %vm112 = vcmask 31744
  %v114 = vsel %vm112, %v79, 0
  %v117 = vsel %vm112, %v80, 0
  %v120 = vsel %vm112, %v81, 0
  %v123 = vsel %vm112, %v82, 0
  %v126 = vsel %vm112, %v83, 0
  %v129 = vsel %vm112, %v84, 0
  %v132 = vsel %vm112, %v85, 0
  %v135 = vsel %vm112, %v86, 0
  %v138 = vsel %vm112, %v87, 0
  %v141 = vsel %vm112, %v88, 0
  %v144 = vsel %vm112, %v89, 0
  %v147 = vsel %vm112, %v90, 0
  %v150 = vsel %vm112, %v91, 0
  %v153 = vsel %vm112, %v92, 0
  %v156 = vsel %vm112, %v93, 0
  %v159 = vsel %vm112, %v94, 0
  %v162 = vsel %vm112, %v95, 0
  %v165 = vsel %vm112, %v96, 0
  %v168 = vsel %vm112, %v97, 0
  %v171 = vsel %vm112, %v98, 0
  %v174 = vsel %vm112, %v99, 0
  %v177 = vsel %vm112, %v100, 0
  %v180 = vsel %vm112, %v101, 0
  %v183 = vsel %vm112, %v102, 0
  %v186 = vsel %vm112, %v103, 0
  %v189 = vsel %vm112, %v104, 0
  %v192 = vsel %vm112, %v105, 0
  %v195 = vsel %vm112, %v106, 0
  %v198 = vsel %vm112, %v107, 0
  %v201 = vsel %vm112, %v108, 0
  %v204 = vsel %vm112, %v109, 0
  %v207 = vsel %vm112, %v110, 0
  %vm209 = vcmask 1041408
  %v211 = vsel %vm209, %v111, 0
  %213 = vmatprep.subr.bf16.mxu0 0
  %214 = vmatpush1.bf16.msra.mxu0 0
  %215 = vmatprep.subr.bf16.mxu0 0
  %216 = vmatpush1.bf16.msra.mxu0 0
  %217 = vmatprep.subr.bf16.mxu0 0
  %218 = vmatpush1.bf16.msra.mxu0 0
  %219 = vmatprep.subr.bf16.mxu0 0
  %220 = vmatpush1.bf16.msra.mxu0 0
  %221 = vmatprep.subr.bf16.mxu0 0
  %222 = vmatpush1.bf16.msra.mxu0 0
  %223 = vmatprep.subr.bf16.mxu0 0
  %224 = vmatpush1.bf16.msra.mxu0 0
  %225 = vmatprep.subr.bf16.mxu0 0
  %226 = vmatpush1.bf16.msra.mxu0 0
  %227 = vmatprep.subr.bf16.mxu0 0
  %228 = vmatpush1.bf16.msra.mxu0 %v211
  %229 = vmatprep.subr.bf16.mxu0 0
  %230 = vmatpush2.bf16.msra.mxu0 0
  %231 = vmatprep.subr.bf16.mxu0 0
  %232 = vmatpush2.bf16.msra.mxu0 0
  %233 = vmatprep.subr.bf16.mxu0 0
  %234 = vmatpush2.bf16.msra.mxu0 0
  %235 = vmatprep.subr.bf16.mxu0 0
  %236 = vmatpush2.bf16.msra.mxu0 0
  %237 = vmatprep.subr.bf16.mxu0 0
  %238 = vmatpush2.bf16.msra.mxu0 0
  %239 = vmatprep.subr.bf16.mxu0 0
  %240 = vmatpush2.bf16.msra.mxu0 0
  %241 = vmatprep.subr.bf16.mxu0 0
  %242 = vmatpush2.bf16.msra.mxu0 0
  %243 = vmatprep.subr.bf16.mxu0 0
  %244 = vmatpush2.bf16.msra.mxu0 0
  %245 = vmatprep.mubr.bf16.mxu0 0
  %246 = vmatmul.mubr.bf16.gmra.mxu0 %v114
  %v247 = vpop.f32.mrf.mxu0
  %v248 = vadd.f32 0.0, %v247
  %v249 = vpop.f32.mrf.mxu0
  %v250 = vpop.f32.mrf.mxu0
  %v251 = vadd.f32 0.0, %v250
  %v252 = vpop.f32.mrf.mxu0
  %253 = vmatprep.mubr.bf16.mxu0 0
  %254 = vmatmul.mubr.bf16.gmra.mxu0 %v117
  %v255 = vpop.f32.mrf.mxu0
  %v256 = vadd.f32 0.0, %v255
  %v257 = vpop.f32.mrf.mxu0
  %v258 = vpop.f32.mrf.mxu0
  %v259 = vadd.f32 0.0, %v258
  %v260 = vpop.f32.mrf.mxu0
  %261 = vmatprep.mubr.bf16.mxu0 0
  %262 = vmatmul.mubr.bf16.gmra.mxu0 %v120
  %v263 = vpop.f32.mrf.mxu0
  %v264 = vadd.f32 0.0, %v263
  %v265 = vpop.f32.mrf.mxu0
  %v266 = vpop.f32.mrf.mxu0
  %v267 = vadd.f32 0.0, %v266
  %v268 = vpop.f32.mrf.mxu0
  %269 = vmatprep.mubr.bf16.mxu0 0
  %270 = vmatmul.mubr.bf16.gmra.mxu0 %v123
  %v271 = vpop.f32.mrf.mxu0
  %v272 = vadd.f32 0.0, %v271
  %v273 = vpop.f32.mrf.mxu0
  %v274 = vpop.f32.mrf.mxu0
  %v275 = vadd.f32 0.0, %v274
  %v276 = vpop.f32.mrf.mxu0
  %277 = vmatprep.mubr.bf16.mxu0 0
  %278 = vmatmul.mubr.bf16.gmra.mxu0 %v126
  %v279 = vpop.f32.mrf.mxu0
  %v280 = vadd.f32 0.0, %v279
  %v281 = vpop.f32.mrf.mxu0
  %v282 = vpop.f32.mrf.mxu0
  %v283 = vadd.f32 0.0, %v282
  %v284 = vpop.f32.mrf.mxu0
  %285 = vmatprep.mubr.bf16.mxu0 0
  %286 = vmatmul.mubr.bf16.gmra.mxu0 %v129
  %v287 = vpop.f32.mrf.mxu0
  %v288 = vadd.f32 0.0, %v287
  %v289 = vpop.f32.mrf.mxu0
  %v290 = vpop.f32.mrf.mxu0
  %v291 = vadd.f32 0.0, %v290
  %v292 = vpop.f32.mrf.mxu0
  %293 = vmatprep.mubr.bf16.mxu0 0
  %294 = vmatmul.mubr.bf16.gmra.mxu0 %v132
  %v295 = vpop.f32.mrf.mxu0
  %v296 = vadd.f32 0.0, %v295
  %v297 = vpop.f32.mrf.mxu0
  %v298 = vpop.f32.mrf.mxu0
  %v299 = vadd.f32 0.0, %v298
  %v300 = vpop.f32.mrf.mxu0
  %301 = vmatprep.mubr.bf16.mxu0 0
  %302 = vmatmul.mubr.bf16.gmra.mxu0 %v135
  %v303 = vpop.f32.mrf.mxu0
  %v304 = vadd.f32 0.0, %v303
  %v305 = vpop.f32.mrf.mxu0
  %v306 = vpop.f32.mrf.mxu0
  %v307 = vadd.f32 0.0, %v306
  %v308 = vpop.f32.mrf.mxu0
  %309 = vmatprep.mubr.bf16.mxu0 0
  %310 = vmatmul.mubr.bf16.gmra.mxu0 %v138
  %v311 = vpop.f32.mrf.mxu0
  %v312 = vadd.f32 0.0, %v311
  %v313 = vpop.f32.mrf.mxu0
  %v314 = vpop.f32.mrf.mxu0
  %v315 = vadd.f32 0.0, %v314
  %v316 = vpop.f32.mrf.mxu0
  %317 = vmatprep.mubr.bf16.mxu0 0
  %318 = vmatmul.mubr.bf16.gmra.mxu0 %v141
  %v319 = vpop.f32.mrf.mxu0
  %v320 = vadd.f32 0.0, %v319
  %v321 = vpop.f32.mrf.mxu0
  %v322 = vpop.f32.mrf.mxu0
  %v323 = vadd.f32 0.0, %v322
  %v324 = vpop.f32.mrf.mxu0
  %325 = vmatprep.mubr.bf16.mxu0 0
  %326 = vmatmul.mubr.bf16.gmra.mxu0 %v144
  %v327 = vpop.f32.mrf.mxu0
  %v328 = vadd.f32 0.0, %v327
  %v329 = vpop.f32.mrf.mxu0
  %v330 = vpop.f32.mrf.mxu0
  %v331 = vadd.f32 0.0, %v330
  %v332 = vpop.f32.mrf.mxu0
  %333 = vmatprep.mubr.bf16.mxu0 0
  %334 = vmatmul.mubr.bf16.gmra.mxu0 %v147
  %v335 = vpop.f32.mrf.mxu0
  %v336 = vadd.f32 0.0, %v335
  %v337 = vpop.f32.mrf.mxu0
  %v338 = vpop.f32.mrf.mxu0
  %v339 = vadd.f32 0.0, %v338
  %v340 = vpop.f32.mrf.mxu0
  %341 = vmatprep.mubr.bf16.mxu0 0
  %342 = vmatmul.mubr.bf16.gmra.mxu0 %v150
  %v343 = vpop.f32.mrf.mxu0
  %v344 = vadd.f32 0.0, %v343
  %v345 = vpop.f32.mrf.mxu0
  %v346 = vpop.f32.mrf.mxu0
  %v347 = vadd.f32 0.0, %v346
  %v348 = vpop.f32.mrf.mxu0
  %349 = vmatprep.mubr.bf16.mxu0 0
  %350 = vmatmul.mubr.bf16.gmra.mxu0 %v153
  %v351 = vpop.f32.mrf.mxu0
  %v352 = vadd.f32 0.0, %v351
  %v353 = vpop.f32.mrf.mxu0
  %v354 = vpop.f32.mrf.mxu0
  %v355 = vadd.f32 0.0, %v354
  %v356 = vpop.f32.mrf.mxu0
  %357 = vmatprep.mubr.bf16.mxu0 0
  %358 = vmatmul.mubr.bf16.gmra.mxu0 %v156
  %v359 = vpop.f32.mrf.mxu0
  %v360 = vadd.f32 0.0, %v359
  %v361 = vpop.f32.mrf.mxu0
  %v362 = vpop.f32.mrf.mxu0
  %v363 = vadd.f32 0.0, %v362
  %v364 = vpop.f32.mrf.mxu0
  %365 = vmatprep.mubr.bf16.mxu0 0
  %366 = vmatmul.mubr.bf16.gmra.mxu0 %v159
  %v367 = vpop.f32.mrf.mxu0
  %v368 = vadd.f32 0.0, %v367
  %v369 = vpop.f32.mrf.mxu0
  %v370 = vpop.f32.mrf.mxu0
  %v371 = vadd.f32 0.0, %v370
  %v372 = vpop.f32.mrf.mxu0
  %373 = vmatprep.mubr.bf16.mxu0 0
  %374 = vmatmul.mubr.bf16.gmra.mxu0 %v162
  %v375 = vpop.f32.mrf.mxu0
  %v376 = vadd.f32 0.0, %v375
  %v377 = vpop.f32.mrf.mxu0
  %v378 = vpop.f32.mrf.mxu0
  %v379 = vadd.f32 0.0, %v378
  %v380 = vpop.f32.mrf.mxu0
  %381 = vmatprep.mubr.bf16.mxu0 0
  %382 = vmatmul.mubr.bf16.gmra.mxu0 %v165
  %v383 = vpop.f32.mrf.mxu0
  %v384 = vadd.f32 0.0, %v383
  %v385 = vpop.f32.mrf.mxu0
  %v386 = vpop.f32.mrf.mxu0
  %v387 = vadd.f32 0.0, %v386
  %v388 = vpop.f32.mrf.mxu0
  %389 = vmatprep.mubr.bf16.mxu0 0
  %390 = vmatmul.mubr.bf16.gmra.mxu0 %v168
  %v391 = vpop.f32.mrf.mxu0
  %v392 = vadd.f32 0.0, %v391
  %v393 = vpop.f32.mrf.mxu0
  %v394 = vpop.f32.mrf.mxu0
  %v395 = vadd.f32 0.0, %v394
  %v396 = vpop.f32.mrf.mxu0
  %397 = vmatprep.mubr.bf16.mxu0 0
  %398 = vmatmul.mubr.bf16.gmra.mxu0 %v171
  %v399 = vpop.f32.mrf.mxu0
  %v400 = vadd.f32 0.0, %v399
  %v401 = vpop.f32.mrf.mxu0
  %v402 = vpop.f32.mrf.mxu0
  %v403 = vadd.f32 0.0, %v402
  %v404 = vpop.f32.mrf.mxu0
  %405 = vmatprep.mubr.bf16.mxu0 0
  %406 = vmatmul.mubr.bf16.gmra.mxu0 %v174
  %v407 = vpop.f32.mrf.mxu0
  %v408 = vadd.f32 0.0, %v407
  %v409 = vpop.f32.mrf.mxu0
  %v410 = vpop.f32.mrf.mxu0
  %v411 = vadd.f32 0.0, %v410
  %v412 = vpop.f32.mrf.mxu0
  %413 = vmatprep.mubr.bf16.mxu0 0
  %414 = vmatmul.mubr.bf16.gmra.mxu0 %v177
  %v415 = vpop.f32.mrf.mxu0
  %v416 = vadd.f32 0.0, %v415
  %v417 = vpop.f32.mrf.mxu0
  %v418 = vpop.f32.mrf.mxu0
  %v419 = vadd.f32 0.0, %v418
  %v420 = vpop.f32.mrf.mxu0
  %421 = vmatprep.mubr.bf16.mxu0 0
  %422 = vmatmul.mubr.bf16.gmra.mxu0 %v180
  %v423 = vpop.f32.mrf.mxu0
  %v424 = vadd.f32 0.0, %v423
  %v425 = vpop.f32.mrf.mxu0
  %v426 = vpop.f32.mrf.mxu0
  %v427 = vadd.f32 0.0, %v426
  %v428 = vpop.f32.mrf.mxu0
  %429 = vmatprep.mubr.bf16.mxu0 0
  %430 = vmatmul.mubr.bf16.gmra.mxu0 %v183
  %v431 = vpop.f32.mrf.mxu0
  %v432 = vadd.f32 0.0, %v431
  %v433 = vpop.f32.mrf.mxu0
  %v434 = vpop.f32.mrf.mxu0
  %v435 = vadd.f32 0.0, %v434
  %v436 = vpop.f32.mrf.mxu0
  %437 = vmatprep.mubr.bf16.mxu0 0
  %438 = vmatmul.mubr.bf16.gmra.mxu0 %v186
  %v439 = vpop.f32.mrf.mxu0
  %v440 = vadd.f32 0.0, %v439
  %v441 = vpop.f32.mrf.mxu0
  %v442 = vpop.f32.mrf.mxu0
  %v443 = vadd.f32 0.0, %v442
  %v444 = vpop.f32.mrf.mxu0
  %445 = vmatprep.mubr.bf16.mxu0 0
  %446 = vmatmul.mubr.bf16.gmra.mxu0 %v189
  %v447 = vpop.f32.mrf.mxu0
  %v448 = vadd.f32 0.0, %v447
  %v449 = vpop.f32.mrf.mxu0
  %v450 = vpop.f32.mrf.mxu0
  %v451 = vadd.f32 0.0, %v450
  %v452 = vpop.f32.mrf.mxu0
  %453 = vmatprep.mubr.bf16.mxu0 0
  %454 = vmatmul.mubr.bf16.gmra.mxu0 %v192
  %v455 = vpop.f32.mrf.mxu0
  %v456 = vadd.f32 0.0, %v455
  %v457 = vpop.f32.mrf.mxu0
  %v458 = vpop.f32.mrf.mxu0
  %v459 = vadd.f32 0.0, %v458
  %v460 = vpop.f32.mrf.mxu0
  %461 = vmatprep.mubr.bf16.mxu0 0
  %462 = vmatmul.mubr.bf16.gmra.mxu0 %v195
  %v463 = vpop.f32.mrf.mxu0
  %v464 = vadd.f32 0.0, %v463
  %v465 = vpop.f32.mrf.mxu0
  %v466 = vpop.f32.mrf.mxu0
  %v467 = vadd.f32 0.0, %v466
  %v468 = vpop.f32.mrf.mxu0
  %469 = vmatprep.mubr.bf16.mxu0 0
  %470 = vmatmul.mubr.bf16.gmra.mxu0 %v198
  %v471 = vpop.f32.mrf.mxu0
  %v472 = vadd.f32 0.0, %v471
  %v473 = vpop.f32.mrf.mxu0
  %v474 = vpop.f32.mrf.mxu0
  %v475 = vadd.f32 0.0, %v474
  %v476 = vpop.f32.mrf.mxu0
  %477 = vmatprep.mubr.bf16.mxu0 0
  %478 = vmatmul.mubr.bf16.gmra.mxu0 %v201
  %v479 = vpop.f32.mrf.mxu0
  %v480 = vadd.f32 0.0, %v479
  %v481 = vpop.f32.mrf.mxu0
  %v482 = vpop.f32.mrf.mxu0
  %v483 = vadd.f32 0.0, %v482
  %v484 = vpop.f32.mrf.mxu0
  %485 = vmatprep.mubr.bf16.mxu0 0
  %486 = vmatmul.mubr.bf16.gmra.mxu0 %v204
  %v487 = vpop.f32.mrf.mxu0
  %v488 = vadd.f32 0.0, %v487
  %v489 = vpop.f32.mrf.mxu0
  %v490 = vpop.f32.mrf.mxu0
  %v491 = vadd.f32 0.0, %v490
  %v492 = vpop.f32.mrf.mxu0
  %493 = vmatprep.mubr.bf16.mxu0 0
  %494 = vmatmul.mubr.bf16.gmra.mxu0 %v207
  %v495 = vpop.f32.mrf.mxu0
  %v496 = vadd.f32 0.0, %v495
  %v497 = vpop.f32.mrf.mxu0
  %v498 = vpop.f32.mrf.mxu0
  %v499 = vadd.f32 0.0, %v498
  %v500 = vpop.f32.mrf.mxu0
  %501 = vdwg.mxu0
  %vm502 = vcmask 64512
  %v503 = vsel %vm502, %v248, 0.0
  %v504 = vsel %vm502, %v251, 0.0
  %v505 = vadd.f32 %v503, %v504
  %v506 = vsel %vm502, %v256, 0.0
  %v507 = vadd.f32 %v505, %v506
  %v508 = vsel %vm502, %v259, 0.0
  %v509 = vadd.f32 %v507, %v508
  %v510 = vsel %vm502, %v264, 0.0
  %v511 = vadd.f32 %v509, %v510
  %v512 = vsel %vm502, %v267, 0.0
  %v513 = vadd.f32 %v511, %v512
  %v514 = vsel %vm502, %v272, 0.0
  %v515 = vadd.f32 %v513, %v514
  %v516 = vsel %vm502, %v275, 0.0
  %v517 = vadd.f32 %v515, %v516
  %v518 = vsel %vm502, %v280, 0.0
  %v519 = vadd.f32 %v517, %v518
  %v520 = vsel %vm502, %v283, 0.0
  %v521 = vadd.f32 %v519, %v520
  %v522 = vsel %vm502, %v288, 0.0
  %v523 = vadd.f32 %v521, %v522
  %v524 = vsel %vm502, %v291, 0.0
  %v525 = vadd.f32 %v523, %v524
  %v526 = vsel %vm502, %v296, 0.0
  %v527 = vadd.f32 %v525, %v526
  %v528 = vsel %vm502, %v299, 0.0
  %v529 = vadd.f32 %v527, %v528
  %v530 = vsel %vm502, %v304, 0.0
  %v531 = vadd.f32 %v529, %v530
  %v532 = vsel %vm502, %v307, 0.0
  %v533 = vadd.f32 %v531, %v532
  %v534 = vsel %vm502, %v312, 0.0
  %v535 = vadd.f32 %v533, %v534
  %v536 = vsel %vm502, %v315, 0.0
  %v537 = vadd.f32 %v535, %v536
  %v538 = vsel %vm502, %v320, 0.0
  %v539 = vadd.f32 %v537, %v538
  %v540 = vsel %vm502, %v323, 0.0
  %v541 = vadd.f32 %v539, %v540
  %v542 = vsel %vm502, %v328, 0.0
  %v543 = vadd.f32 %v541, %v542
  %v544 = vsel %vm502, %v331, 0.0
  %v545 = vadd.f32 %v543, %v544
  %v546 = vsel %vm502, %v336, 0.0
  %v547 = vadd.f32 %v545, %v546
  %v548 = vsel %vm502, %v339, 0.0
  %v549 = vadd.f32 %v547, %v548
  %v550 = vsel %vm502, %v344, 0.0
  %v551 = vadd.f32 %v549, %v550
  %v552 = vsel %vm502, %v347, 0.0
  %v553 = vadd.f32 %v551, %v552
  %v554 = vsel %vm502, %v352, 0.0
  %v555 = vadd.f32 %v553, %v554
  %v556 = vsel %vm502, %v355, 0.0
  %v557 = vadd.f32 %v555, %v556
  %v558 = vsel %vm502, %v360, 0.0
  %v559 = vadd.f32 %v557, %v558
  %v560 = vsel %vm502, %v363, 0.0
  %v561 = vadd.f32 %v559, %v560
  %v562 = vsel %vm502, %v368, 0.0
  %v563 = vadd.f32 %v561, %v562
  %v564 = vsel %vm502, %v371, 0.0
  %v565 = vadd.f32 %v563, %v564
  %v566 = vsel %vm502, %v376, 0.0
  %v567 = vadd.f32 %v565, %v566
  %v568 = vsel %vm502, %v379, 0.0
  %v569 = vadd.f32 %v567, %v568
  %v570 = vsel %vm502, %v384, 0.0
  %v571 = vadd.f32 %v569, %v570
  %v572 = vsel %vm502, %v387, 0.0
  %v573 = vadd.f32 %v571, %v572
  %v574 = vsel %vm502, %v392, 0.0
  %v575 = vadd.f32 %v573, %v574
  %v576 = vsel %vm502, %v395, 0.0
  %v577 = vadd.f32 %v575, %v576
  %v578 = vsel %vm502, %v400, 0.0
  %v579 = vadd.f32 %v577, %v578
  %v580 = vsel %vm502, %v403, 0.0
  %v581 = vadd.f32 %v579, %v580
  %v582 = vsel %vm502, %v408, 0.0
  %v583 = vadd.f32 %v581, %v582
  %v584 = vsel %vm502, %v411, 0.0
  %v585 = vadd.f32 %v583, %v584
  %v586 = vsel %vm502, %v416, 0.0
  %v587 = vadd.f32 %v585, %v586
  %v588 = vsel %vm502, %v419, 0.0
  %v589 = vadd.f32 %v587, %v588
  %v590 = vsel %vm502, %v424, 0.0
  %v591 = vadd.f32 %v589, %v590
  %v592 = vsel %vm502, %v427, 0.0
  %v593 = vadd.f32 %v591, %v592
  %v594 = vsel %vm502, %v432, 0.0
  %v595 = vadd.f32 %v593, %v594
  %v596 = vsel %vm502, %v435, 0.0
  %v597 = vadd.f32 %v595, %v596
  %v598 = vsel %vm502, %v440, 0.0
  %v599 = vadd.f32 %v597, %v598
  %v600 = vsel %vm502, %v443, 0.0
  %v601 = vadd.f32 %v599, %v600
  %v602 = vsel %vm502, %v448, 0.0
  %v603 = vadd.f32 %v601, %v602
  %v604 = vsel %vm502, %v451, 0.0
  %v605 = vadd.f32 %v603, %v604
  %v606 = vsel %vm502, %v456, 0.0
  %v607 = vadd.f32 %v605, %v606
  %v608 = vsel %vm502, %v459, 0.0
  %v609 = vadd.f32 %v607, %v608
  %v610 = vsel %vm502, %v464, 0.0
  %v611 = vadd.f32 %v609, %v610
  %v612 = vsel %vm502, %v467, 0.0
  %v613 = vadd.f32 %v611, %v612
  %v614 = vsel %vm502, %v472, 0.0
  %v615 = vadd.f32 %v613, %v614
  %v616 = vsel %vm502, %v475, 0.0
  %v617 = vadd.f32 %v615, %v616
  %v618 = vsel %vm502, %v480, 0.0
  %v619 = vadd.f32 %v617, %v618
  %v620 = vsel %vm502, %v483, 0.0
  %v621 = vadd.f32 %v619, %v620
  %v622 = vsel %vm502, %v488, 0.0
  %v623 = vadd.f32 %v621, %v622
  %v624 = vsel %vm502, %v491, 0.0
  %v625 = vadd.f32 %v623, %v624
  %v626 = vsel %vm502, %v496, 0.0
  %v627 = vadd.f32 %v625, %v626
  %v628 = vsel %vm502, %v499, 0.0
  %v629 = vadd.f32 %v627, %v628
  %v630 = vrot.slane %v629, 4
  %v631 = vadd.f32 %v629, %v630
  %v632 = vrot.slane %v631, 2
  %v633 = vadd.f32 %v631, %v632
  %v634 = vrot.slane %v633, 1
  %v635 = vadd.f32 %v633, %v634
  %vm636 = vcmask 57344
  %637 = vst.msk [vmem:[%s3] sm:$0x1] %vm636, %v635
  %v638 = vmul.f32 %v248, %v248
  %v639 = vmul.f32 %v251, %v251
  %v640 = vmul.f32 %v256, %v256
  %v641 = vmul.f32 %v259, %v259
  %v642 = vmul.f32 %v264, %v264
  %v643 = vmul.f32 %v267, %v267
  %v644 = vmul.f32 %v272, %v272
  %v645 = vmul.f32 %v275, %v275
  %v646 = vmul.f32 %v280, %v280
  %v647 = vmul.f32 %v283, %v283
  %v648 = vmul.f32 %v288, %v288
  %v649 = vmul.f32 %v291, %v291
  %v650 = vmul.f32 %v296, %v296
  %v651 = vmul.f32 %v299, %v299
  %v652 = vmul.f32 %v304, %v304
  %v653 = vmul.f32 %v307, %v307
  %v654 = vmul.f32 %v312, %v312
  %v655 = vmul.f32 %v315, %v315
  %v656 = vmul.f32 %v320, %v320
  %v657 = vmul.f32 %v323, %v323
  %v658 = vmul.f32 %v328, %v328
  %v659 = vmul.f32 %v331, %v331
  %v660 = vmul.f32 %v336, %v336
  %v661 = vmul.f32 %v339, %v339
  %v662 = vmul.f32 %v344, %v344
  %v663 = vmul.f32 %v347, %v347
  %v664 = vmul.f32 %v352, %v352
  %v665 = vmul.f32 %v355, %v355
  %v666 = vmul.f32 %v360, %v360
  %v667 = vmul.f32 %v363, %v363
  %v668 = vmul.f32 %v368, %v368
  %v669 = vmul.f32 %v371, %v371
  %v670 = vmul.f32 %v376, %v376
  %v671 = vmul.f32 %v379, %v379
  %v672 = vmul.f32 %v384, %v384
  %v673 = vmul.f32 %v387, %v387
  %v674 = vmul.f32 %v392, %v392
  %v675 = vmul.f32 %v395, %v395
  %v676 = vmul.f32 %v400, %v400
  %v677 = vmul.f32 %v403, %v403
  %v678 = vmul.f32 %v408, %v408
  %v679 = vmul.f32 %v411, %v411
  %v680 = vmul.f32 %v416, %v416
  %v681 = vmul.f32 %v419, %v419
  %v682 = vmul.f32 %v424, %v424
  %v683 = vmul.f32 %v427, %v427
  %v684 = vmul.f32 %v432, %v432
  %v685 = vmul.f32 %v435, %v435
  %v686 = vmul.f32 %v440, %v440
  %v687 = vmul.f32 %v443, %v443
  %v688 = vmul.f32 %v448, %v448
  %v689 = vmul.f32 %v451, %v451
  %v690 = vmul.f32 %v456, %v456
  %v691 = vmul.f32 %v459, %v459
  %v692 = vmul.f32 %v464, %v464
  %v693 = vmul.f32 %v467, %v467
  %v694 = vmul.f32 %v472, %v472
  %v695 = vmul.f32 %v475, %v475
  %v696 = vmul.f32 %v480, %v480
  %v697 = vmul.f32 %v483, %v483
  %v698 = vmul.f32 %v488, %v488
  %v699 = vmul.f32 %v491, %v491
  %v700 = vmul.f32 %v496, %v496
  %v701 = vmul.f32 %v499, %v499
  %v702 = vsel %vm502, %v638, 0.0
  %v703 = vsel %vm502, %v639, 0.0
  %v704 = vadd.f32 %v702, %v703
  %v705 = vsel %vm502, %v640, 0.0
  %v706 = vadd.f32 %v704, %v705
  %v707 = vsel %vm502, %v641, 0.0
  %v708 = vadd.f32 %v706, %v707
  %v709 = vsel %vm502, %v642, 0.0
  %v710 = vadd.f32 %v708, %v709
  %v711 = vsel %vm502, %v643, 0.0
  %v712 = vadd.f32 %v710, %v711
  %v713 = vsel %vm502, %v644, 0.0
  %v714 = vadd.f32 %v712, %v713
  %v715 = vsel %vm502, %v645, 0.0
  %v716 = vadd.f32 %v714, %v715
  %v717 = vsel %vm502, %v646, 0.0
  %v718 = vadd.f32 %v716, %v717
  %v719 = vsel %vm502, %v647, 0.0
  %v720 = vadd.f32 %v718, %v719
  %v721 = vsel %vm502, %v648, 0.0
  %v722 = vadd.f32 %v720, %v721
  %v723 = vsel %vm502, %v649, 0.0
  %v724 = vadd.f32 %v722, %v723
  %v725 = vsel %vm502, %v650, 0.0
  %v726 = vadd.f32 %v724, %v725
  %v727 = vsel %vm502, %v651, 0.0
  %v728 = vadd.f32 %v726, %v727
  %v729 = vsel %vm502, %v652, 0.0
  %v730 = vadd.f32 %v728, %v729
  %v731 = vsel %vm502, %v653, 0.0
  %v732 = vadd.f32 %v730, %v731
  %v733 = vsel %vm502, %v654, 0.0
  %v734 = vadd.f32 %v732, %v733
  %v735 = vsel %vm502, %v655, 0.0
  %v736 = vadd.f32 %v734, %v735
  %v737 = vsel %vm502, %v656, 0.0
  %v738 = vadd.f32 %v736, %v737
  %v739 = vsel %vm502, %v657, 0.0
  %v740 = vadd.f32 %v738, %v739
  %v741 = vsel %vm502, %v658, 0.0
  %v742 = vadd.f32 %v740, %v741
  %v743 = vsel %vm502, %v659, 0.0
  %v744 = vadd.f32 %v742, %v743
  %v745 = vsel %vm502, %v660, 0.0
  %v746 = vadd.f32 %v744, %v745
  %v747 = vsel %vm502, %v661, 0.0
  %v748 = vadd.f32 %v746, %v747
  %v749 = vsel %vm502, %v662, 0.0
  %v750 = vadd.f32 %v748, %v749
  %v751 = vsel %vm502, %v663, 0.0
  %v752 = vadd.f32 %v750, %v751
  %v753 = vsel %vm502, %v664, 0.0
  %v754 = vadd.f32 %v752, %v753
  %v755 = vsel %vm502, %v665, 0.0
  %v756 = vadd.f32 %v754, %v755
  %v757 = vsel %vm502, %v666, 0.0
  %v758 = vadd.f32 %v756, %v757
  %v759 = vsel %vm502, %v667, 0.0
  %v760 = vadd.f32 %v758, %v759
  %v761 = vsel %vm502, %v668, 0.0
  %v762 = vadd.f32 %v760, %v761
  %v763 = vsel %vm502, %v669, 0.0
  %v764 = vadd.f32 %v762, %v763
  %v765 = vsel %vm502, %v670, 0.0
  %v766 = vadd.f32 %v764, %v765
  %v767 = vsel %vm502, %v671, 0.0
  %v768 = vadd.f32 %v766, %v767
  %v769 = vsel %vm502, %v672, 0.0
  %v770 = vadd.f32 %v768, %v769
  %v771 = vsel %vm502, %v673, 0.0
  %v772 = vadd.f32 %v770, %v771
  %v773 = vsel %vm502, %v674, 0.0
  %v774 = vadd.f32 %v772, %v773
  %v775 = vsel %vm502, %v675, 0.0
  %v776 = vadd.f32 %v774, %v775
  %v777 = vsel %vm502, %v676, 0.0
  %v778 = vadd.f32 %v776, %v777
  %v779 = vsel %vm502, %v677, 0.0
  %v780 = vadd.f32 %v778, %v779
  %v781 = vsel %vm502, %v678, 0.0
  %v782 = vadd.f32 %v780, %v781
  %v783 = vsel %vm502, %v679, 0.0
  %v784 = vadd.f32 %v782, %v783
  %v785 = vsel %vm502, %v680, 0.0
  %v786 = vadd.f32 %v784, %v785
  %v787 = vsel %vm502, %v681, 0.0
  %v788 = vadd.f32 %v786, %v787
  %v789 = vsel %vm502, %v682, 0.0
  %v790 = vadd.f32 %v788, %v789
  %v791 = vsel %vm502, %v683, 0.0
  %v792 = vadd.f32 %v790, %v791
  %v793 = vsel %vm502, %v684, 0.0
  %v794 = vadd.f32 %v792, %v793
  %v795 = vsel %vm502, %v685, 0.0
  %v796 = vadd.f32 %v794, %v795
  %v797 = vsel %vm502, %v686, 0.0
  %v798 = vadd.f32 %v796, %v797
  %v799 = vsel %vm502, %v687, 0.0
  %v800 = vadd.f32 %v798, %v799
  %v801 = vsel %vm502, %v688, 0.0
  %v802 = vadd.f32 %v800, %v801
  %v803 = vsel %vm502, %v689, 0.0
  %v804 = vadd.f32 %v802, %v803
  %v805 = vsel %vm502, %v690, 0.0
  %v806 = vadd.f32 %v804, %v805
  %v807 = vsel %vm502, %v691, 0.0
  %v808 = vadd.f32 %v806, %v807
  %v809 = vsel %vm502, %v692, 0.0
  %v810 = vadd.f32 %v808, %v809
  %v811 = vsel %vm502, %v693, 0.0
  %v812 = vadd.f32 %v810, %v811
  %v813 = vsel %vm502, %v694, 0.0
  %v814 = vadd.f32 %v812, %v813
  %v815 = vsel %vm502, %v695, 0.0
  %v816 = vadd.f32 %v814, %v815
  %v817 = vsel %vm502, %v696, 0.0
  %v818 = vadd.f32 %v816, %v817
  %v819 = vsel %vm502, %v697, 0.0
  %v820 = vadd.f32 %v818, %v819
  %v821 = vsel %vm502, %v698, 0.0
  %v822 = vadd.f32 %v820, %v821
  %v823 = vsel %vm502, %v699, 0.0
  %v824 = vadd.f32 %v822, %v823
  %v825 = vsel %vm502, %v700, 0.0
  %v826 = vadd.f32 %v824, %v825
  %v827 = vsel %vm502, %v701, 0.0
  %v828 = vadd.f32 %v826, %v827
  %v829 = vrot.slane %v828, 4
  %v830 = vadd.f32 %v828, %v829
  %v831 = vrot.slane %v830, 2
  %v832 = vadd.f32 %v830, %v831
  %v833 = vrot.slane %v832, 1
  %v834 = vadd.f32 %v832, %v833
  %835 = vst.msk [vmem:[%s4] sm:$0x1] %vm636, %v834
  %v836 = vpack.c.bf16 %v251, %v248
  %v837 = vpack.c.bf16 %v259, %v256
  %v838 = vpack.c.bf16 %v267, %v264
  %v839 = vpack.c.bf16 %v275, %v272
  %v840 = vpack.c.bf16 %v283, %v280
  %v841 = vpack.c.bf16 %v291, %v288
  %v842 = vpack.c.bf16 %v299, %v296
  %v843 = vpack.c.bf16 %v307, %v304
  %v844 = vpack.c.bf16 %v315, %v312
  %v845 = vpack.c.bf16 %v323, %v320
  %v846 = vpack.c.bf16 %v331, %v328
  %v847 = vpack.c.bf16 %v339, %v336
  %v848 = vpack.c.bf16 %v347, %v344
  %v849 = vpack.c.bf16 %v355, %v352
  %v850 = vpack.c.bf16 %v363, %v360
  %v851 = vpack.c.bf16 %v371, %v368
  %v852 = vpack.c.bf16 %v379, %v376
  %v853 = vpack.c.bf16 %v387, %v384
  %v854 = vpack.c.bf16 %v395, %v392
  %v855 = vpack.c.bf16 %v403, %v400
  %v856 = vpack.c.bf16 %v411, %v408
  %v857 = vpack.c.bf16 %v419, %v416
  %v858 = vpack.c.bf16 %v427, %v424
  %v859 = vpack.c.bf16 %v435, %v432
  %v860 = vpack.c.bf16 %v443, %v440
  %v861 = vpack.c.bf16 %v451, %v448
  %v862 = vpack.c.bf16 %v459, %v456
  %v863 = vpack.c.bf16 %v467, %v464
  %v864 = vpack.c.bf16 %v475, %v472
  %v865 = vpack.c.bf16 %v483, %v480
  %v866 = vpack.c.bf16 %v491, %v488
  %v867 = vpack.c.bf16 %v499, %v496
  %v900 = vunpack.c.l.b16 %v836
  %v901 = vunpack.c.h.b16 %v836
  %v902 = vunpack.c.l.b16 %v837
  %v903 = vunpack.c.h.b16 %v837
  %v904 = vunpack.c.l.b16 %v838
  %v905 = vunpack.c.h.b16 %v838
  %v906 = vunpack.c.l.b16 %v839
  %v907 = vunpack.c.h.b16 %v839
  %v908 = vunpack.c.l.b16 %v840
  %v909 = vunpack.c.h.b16 %v840
  %v910 = vunpack.c.l.b16 %v841
  %v911 = vunpack.c.h.b16 %v841
  %v912 = vunpack.c.l.b16 %v842
  %v913 = vunpack.c.h.b16 %v842
  %v914 = vunpack.c.l.b16 %v843
  %v915 = vunpack.c.h.b16 %v843
  %v916 = vunpack.c.l.b16 %v844
  %v917 = vunpack.c.h.b16 %v844
  %v918 = vunpack.c.l.b16 %v845
  %v919 = vunpack.c.h.b16 %v845
  %v920 = vunpack.c.l.b16 %v846
  %v921 = vunpack.c.h.b16 %v846
  %v922 = vunpack.c.l.b16 %v847
  %v923 = vunpack.c.h.b16 %v847
  %v924 = vunpack.c.l.b16 %v848
  %v925 = vunpack.c.h.b16 %v848
  %v926 = vunpack.c.l.b16 %v849
  %v927 = vunpack.c.h.b16 %v849
  %v928 = vunpack.c.l.b16 %v850
  %v929 = vunpack.c.h.b16 %v850
  %v930 = vunpack.c.l.b16 %v851
  %v931 = vunpack.c.h.b16 %v851
  %v932 = vunpack.c.l.b16 %v852
  %v933 = vunpack.c.h.b16 %v852
  %v934 = vunpack.c.l.b16 %v853
  %v935 = vunpack.c.h.b16 %v853
  %v936 = vunpack.c.l.b16 %v854
  %v937 = vunpack.c.h.b16 %v854
  %v938 = vunpack.c.l.b16 %v855
  %v939 = vunpack.c.h.b16 %v855
  %v940 = vunpack.c.l.b16 %v856
  %v941 = vunpack.c.h.b16 %v856
  %v942 = vunpack.c.l.b16 %v857
  %v943 = vunpack.c.h.b16 %v857
  %v944 = vunpack.c.l.b16 %v858
  %v945 = vunpack.c.h.b16 %v858
  %v946 = vunpack.c.l.b16 %v859
  %v947 = vunpack.c.h.b16 %v859
  %v948 = vunpack.c.l.b16 %v860
  %v949 = vunpack.c.h.b16 %v860
  %v950 = vunpack.c.l.b16 %v861
  %v951 = vunpack.c.h.b16 %v861
  %v952 = vunpack.c.l.b16 %v862
  %v953 = vunpack.c.h.b16 %v862
  %v954 = vunpack.c.l.b16 %v863
  %v955 = vunpack.c.h.b16 %v863
  %v956 = vunpack.c.l.b16 %v864
  %v957 = vunpack.c.h.b16 %v864
  %v958 = vunpack.c.l.b16 %v865
  %v959 = vunpack.c.h.b16 %v865
  %v960 = vunpack.c.l.b16 %v866
  %v961 = vunpack.c.h.b16 %v866
  %v962 = vunpack.c.l.b16 %v867
  %v963 = vunpack.c.h.b16 %v867
  %v964 = vpack.c.b16 %v900, %v900
  %v965 = vpack.c.b16 %v901, %v901
  %v966 = vpack.c.b16 %v902, %v902
  %v967 = vpack.c.b16 %v903, %v903
  %v968 = vpack.c.b16 %v904, %v904
  %v969 = vpack.c.b16 %v905, %v905
  %v970 = vpack.c.b16 %v906, %v906
  %v971 = vpack.c.b16 %v907, %v907
  %v972 = vpack.c.b16 %v908, %v908
  %v973 = vpack.c.b16 %v909, %v909
  %v974 = vpack.c.b16 %v910, %v910
  %v975 = vpack.c.b16 %v911, %v911
  %v976 = vpack.c.b16 %v912, %v912
  %v977 = vpack.c.b16 %v913, %v913
  %v978 = vpack.c.b16 %v914, %v914
  %v979 = vpack.c.b16 %v915, %v915
  %v980 = vpack.c.b16 %v916, %v916
  %v981 = vpack.c.b16 %v917, %v917
  %v982 = vpack.c.b16 %v918, %v918
  %v983 = vpack.c.b16 %v919, %v919
  %v984 = vpack.c.b16 %v920, %v920
  %v985 = vpack.c.b16 %v921, %v921
  %v986 = vpack.c.b16 %v922, %v922
  %v987 = vpack.c.b16 %v923, %v923
  %v988 = vpack.c.b16 %v924, %v924
  %v989 = vpack.c.b16 %v925, %v925
  %v990 = vpack.c.b16 %v926, %v926
  %v991 = vpack.c.b16 %v927, %v927
  %v992 = vpack.c.b16 %v928, %v928
  %v993 = vpack.c.b16 %v929, %v929
  %v994 = vpack.c.b16 %v930, %v930
  %v995 = vpack.c.b16 %v931, %v931
  %v996 = vpack.c.b16 %v932, %v932
  %v997 = vpack.c.b16 %v933, %v933
  %v998 = vpack.c.b16 %v934, %v934
  %v999 = vpack.c.b16 %v935, %v935
  %v1000 = vpack.c.b16 %v936, %v936
  %v1001 = vpack.c.b16 %v937, %v937
  %v1002 = vpack.c.b16 %v938, %v938
  %v1003 = vpack.c.b16 %v939, %v939
  %v1004 = vpack.c.b16 %v940, %v940
  %v1005 = vpack.c.b16 %v941, %v941
  %v1006 = vpack.c.b16 %v942, %v942
  %v1007 = vpack.c.b16 %v943, %v943
  %v1008 = vpack.c.b16 %v944, %v944
  %v1009 = vpack.c.b16 %v945, %v945
  %v1010 = vpack.c.b16 %v946, %v946
  %v1011 = vpack.c.b16 %v947, %v947
  %v1012 = vpack.c.b16 %v948, %v948
  %v1013 = vpack.c.b16 %v949, %v949
  %v1014 = vpack.c.b16 %v950, %v950
  %v1015 = vpack.c.b16 %v951, %v951
  %v1016 = vpack.c.b16 %v952, %v952
  %v1017 = vpack.c.b16 %v953, %v953
  %v1018 = vpack.c.b16 %v954, %v954
  %v1019 = vpack.c.b16 %v955, %v955
  %v1020 = vpack.c.b16 %v956, %v956
  %v1021 = vpack.c.b16 %v957, %v957
  %v1022 = vpack.c.b16 %v958, %v958
  %v1023 = vpack.c.b16 %v959, %v959
  %v1024 = vpack.c.b16 %v960, %v960
  %v1025 = vpack.c.b16 %v961, %v961
  %v1026 = vpack.c.b16 %v962, %v962
  %v1027 = vpack.c.b16 %v963, %v963
  %vm1092 = vcmask 60416
  %1093 = vst.msk [vmem:[%s2] sm:$0xf] %vm1092, %v964
  %1094 = vst.msk [vmem:[%s2 + $0x4] sm:$0xf] %vm1092, %v965
  %1095 = vst.msk [vmem:[%s2 + $0x8] sm:$0xf] %vm1092, %v966
  %1096 = vst.msk [vmem:[%s2 + $0xc] sm:$0xf] %vm1092, %v967
  %1097 = vst.msk [vmem:[%s2 + $0x10] sm:$0xf] %vm1092, %v968
  %1098 = vst.msk [vmem:[%s2 + $0x14] sm:$0xf] %vm1092, %v969
  %1099 = vst.msk [vmem:[%s2 + $0x18] sm:$0xf] %vm1092, %v970
  %1100 = vst.msk [vmem:[%s2 + $0x1c] sm:$0xf] %vm1092, %v971
  %1101 = vst.msk [vmem:[%s2 + $0x20] sm:$0xf] %vm1092, %v972
  %1102 = vst.msk [vmem:[%s2 + $0x24] sm:$0xf] %vm1092, %v973
  %1103 = vst.msk [vmem:[%s2 + $0x28] sm:$0xf] %vm1092, %v974
  %1104 = vst.msk [vmem:[%s2 + $0x2c] sm:$0xf] %vm1092, %v975
  %1105 = vst.msk [vmem:[%s2 + $0x30] sm:$0xf] %vm1092, %v976
  %1106 = vst.msk [vmem:[%s2 + $0x34] sm:$0xf] %vm1092, %v977
  %1107 = vst.msk [vmem:[%s2 + $0x38] sm:$0xf] %vm1092, %v978
  %1108 = vst.msk [vmem:[%s2 + $0x3c] sm:$0xf] %vm1092, %v979
  %1109 = vst.msk [vmem:[%s2 + $0x40] sm:$0xf] %vm1092, %v980
  %1110 = vst.msk [vmem:[%s2 + $0x44] sm:$0xf] %vm1092, %v981
  %1111 = vst.msk [vmem:[%s2 + $0x48] sm:$0xf] %vm1092, %v982
  %1112 = vst.msk [vmem:[%s2 + $0x4c] sm:$0xf] %vm1092, %v983
  %1113 = vst.msk [vmem:[%s2 + $0x50] sm:$0xf] %vm1092, %v984
  %1114 = vst.msk [vmem:[%s2 + $0x54] sm:$0xf] %vm1092, %v985
  %1115 = vst.msk [vmem:[%s2 + $0x58] sm:$0xf] %vm1092, %v986
  %1116 = vst.msk [vmem:[%s2 + $0x5c] sm:$0xf] %vm1092, %v987
  %1117 = vst.msk [vmem:[%s2 + $0x60] sm:$0xf] %vm1092, %v988
  %1118 = vst.msk [vmem:[%s2 + $0x64] sm:$0xf] %vm1092, %v989
  %1119 = vst.msk [vmem:[%s2 + $0x68] sm:$0xf] %vm1092, %v990
  %1120 = vst.msk [vmem:[%s2 + $0x6c] sm:$0xf] %vm1092, %v991
  %1121 = vst.msk [vmem:[%s2 + $0x70] sm:$0xf] %vm1092, %v992
  %1122 = vst.msk [vmem:[%s2 + $0x74] sm:$0xf] %vm1092, %v993
  %1123 = vst.msk [vmem:[%s2 + $0x78] sm:$0xf] %vm1092, %v994
  %1124 = vst.msk [vmem:[%s2 + $0x7c] sm:$0xf] %vm1092, %v995
  %1125 = vst.msk [vmem:[%s2 + $0x80] sm:$0xf] %vm1092, %v996
  %1126 = vst.msk [vmem:[%s2 + $0x84] sm:$0xf] %vm1092, %v997
  %1127 = vst.msk [vmem:[%s2 + $0x88] sm:$0xf] %vm1092, %v998
  %1128 = vst.msk [vmem:[%s2 + $0x8c] sm:$0xf] %vm1092, %v999
  %1129 = vst.msk [vmem:[%s2 + $0x90] sm:$0xf] %vm1092, %v1000
  %1130 = vst.msk [vmem:[%s2 + $0x94] sm:$0xf] %vm1092, %v1001
  %1131 = vst.msk [vmem:[%s2 + $0x98] sm:$0xf] %vm1092, %v1002
  %1132 = vst.msk [vmem:[%s2 + $0x9c] sm:$0xf] %vm1092, %v1003
  %1133 = vst.msk [vmem:[%s2 + $0xa0] sm:$0xf] %vm1092, %v1004
  %1134 = vst.msk [vmem:[%s2 + $0xa4] sm:$0xf] %vm1092, %v1005
  %1135 = vst.msk [vmem:[%s2 + $0xa8] sm:$0xf] %vm1092, %v1006
  %1136 = vst.msk [vmem:[%s2 + $0xac] sm:$0xf] %vm1092, %v1007
  %1137 = vst.msk [vmem:[%s2 + $0xb0] sm:$0xf] %vm1092, %v1008
  %1138 = vst.msk [vmem:[%s2 + $0xb4] sm:$0xf] %vm1092, %v1009
  %1139 = vst.msk [vmem:[%s2 + $0xb8] sm:$0xf] %vm1092, %v1010
  %1140 = vst.msk [vmem:[%s2 + $0xbc] sm:$0xf] %vm1092, %v1011
  %1141 = vst.msk [vmem:[%s2 + $0xc0] sm:$0xf] %vm1092, %v1012
  %1142 = vst.msk [vmem:[%s2 + $0xc4] sm:$0xf] %vm1092, %v1013
  %1143 = vst.msk [vmem:[%s2 + $0xc8] sm:$0xf] %vm1092, %v1014
  %1144 = vst.msk [vmem:[%s2 + $0xcc] sm:$0xf] %vm1092, %v1015
  %1145 = vst.msk [vmem:[%s2 + $0xd0] sm:$0xf] %vm1092, %v1016
  %1146 = vst.msk [vmem:[%s2 + $0xd4] sm:$0xf] %vm1092, %v1017
  %1147 = vst.msk [vmem:[%s2 + $0xd8] sm:$0xf] %vm1092, %v1018
  %1148 = vst.msk [vmem:[%s2 + $0xdc] sm:$0xf] %vm1092, %v1019
  %1149 = vst.msk [vmem:[%s2 + $0xe0] sm:$0xf] %vm1092, %v1020
  %1150 = vst.msk [vmem:[%s2 + $0xe4] sm:$0xf] %vm1092, %v1021
  %1151 = vst.msk [vmem:[%s2 + $0xe8] sm:$0xf] %vm1092, %v1022
  %1152 = vst.msk [vmem:[%s2 + $0xec] sm:$0xf] %vm1092, %v1023
  %1153 = vst.msk [vmem:[%s2 + $0xf0] sm:$0xf] %vm1092, %v1024
  %1154 = vst.msk [vmem:[%s2 + $0xf4] sm:$0xf] %vm1092, %v1025
  %1155 = vst.msk [vmem:[%s2 + $0xf8] sm:$0xf] %vm1092, %v1026
  %1156 = vst.msk [vmem:[%s2 + $0xfc] sm:$0xf] %vm1092, %v1027
  // Predicated region
  $region10: #{bottleneck.4} parent=0 // pred_check
    _
  $region11: #{bottleneck.4} parent=0 // pred_check_branch
    %1158 = sbr.rel (0) target = $region13
  $region12: #{bottleneck.4} parent=0 // pred_region
    _
  $region13: #{bottleneck.4} parent=0 // pred_fallthru
    _
  // Predicated region
  $region14: #{bottleneck.4} parent=0 // pred_check
    _
  $region15: #{bottleneck.4} parent=0 // pred_check_branch
    %1160 = sbr.rel (0) target = $region17
  $region16: #{bottleneck.4} parent=0 // pred_region
    _
  $region17: #{bottleneck.4} parent=0 // pred_fallthru
    _
  // Predicated region
  $region18: #{bottleneck.4} parent=0 // pred_check
    _
  $region19: #{bottleneck.4} parent=0 // pred_check_branch
    %1162 = sbr.rel (0) target = $region21
  $region20: #{bottleneck.4} parent=0 // pred_region
    _
  $region21: #{bottleneck.4} parent=0 // pred_fallthru
    _
  // Predicated region
  $region22: #{bottleneck.4} parent=0 // pred_check
    _
  $region23: #{bottleneck.4} parent=0 // pred_check_branch
    %1164 = sbr.rel (0) target = $region25
  $region24: #{bottleneck.4} parent=0 // pred_region
    _
  $region25: #{bottleneck.4} parent=0 // pred_fallthru
    _
  // Predicated region
  $region26: #{bottleneck.4} parent=0 // pred_check
    _
  $region27: #{bottleneck.4} parent=0 // pred_check_branch
    %1166 = sbr.rel (0) target = $region29
  $region28: #{bottleneck.4} parent=0 // pred_region
    _
  $region29: #{bottleneck.4} parent=0 // pred_fallthru
    _
  // Predicated region
  $region30: #{bottleneck.4} parent=0 // pred_check
    _
  $region31: #{bottleneck.4} parent=0 // pred_check_branch
    %1168 = sbr.rel (0) target = $region33
  $region32: #{bottleneck.4} parent=0 // pred_region
    _
  $region33: #{bottleneck.4} parent=0 // pred_fallthru
    _

// kernel: bottleneck.6
$region0: #{bottleneck.6}
  #allocation0 [shape = 'u32[]', space=smem, size = 0x4, offset = 0x4, fixed_abs, tag = 'smem constant byte address 0x4 - core index']
  #allocation1 [shape = 'u32[144,128]{1,0:T(1,128)}', space=vmem, size = 0x12000, scoped, tag = 'internal scratch']
  %s0 = inlined_call_operand.vmem [shape: bf16[512,8], index: 0, kind: input, shape index: {}]
  %s1 = inlined_call_operand.vmem [shape: bf16[8,4], index: 1, kind: input, shape index: {}]
  %s2 = inlined_call_operand.vmem [shape: f32[1,8], index: 2, kind: input, shape index: {}]
  %s3 = inlined_call_operand.vmem [shape: f32[1,8], index: 3, kind: input, shape index: {}]
  %s4 = inlined_call_operand.vmem [shape: bf16[512,4], index: 4, kind: output, shape index: {0}]
  %s5 = inlined_call_operand.vmem [shape: f32[1,1,4], index: 5, kind: output, shape index: {1}]
  %s6 = inlined_call_operand.vmem [shape: f32[1,1,4], index: 6, kind: output, shape index: {2}]
  %7 = xla_tuple %s4, %s5, %s6
  %s8 = sld [smem:[#allocation0]]
  $region42: #{bottleneck.6} parent=0
    _
  %s10 = ssub.s32 1, %s8
  %s11 = scalar_select 0, %s10, %s8
  // Predicated region
  $region2: #{bottleneck.6} parent=0 // pred_check
    _
  $region3: #{bottleneck.6} parent=0 // pred_check_branch
    %13 = sbr.rel (0) target = $region5
  $region4: #{bottleneck.6} parent=0 // pred_region
    _
  $region5: #{bottleneck.6} parent=0 // pred_fallthru
    _
  // Predicated region
  $region6: #{bottleneck.6} parent=0 // pred_check
    _
  $region7: #{bottleneck.6} parent=0 // pred_check_branch
    %15 = sbr.rel (0) target = $region9
  $region8: #{bottleneck.6} parent=0 // pred_region
    _
  $region9: #{bottleneck.6} parent=0 // pred_fallthru
    _
  // Predicated region
  $region10: #{bottleneck.6} parent=0 // pred_check
    _
  $region11: #{bottleneck.6} parent=0 // pred_check_branch
    %17 = sbr.rel (0) target = $region13
  $region12: #{bottleneck.6} parent=0 // pred_region
    _
  $region13: #{bottleneck.6} parent=0 // pred_fallthru
    _
  // Predicated region
  $region14: #{bottleneck.6} parent=0 // pred_check
    _
  $region15: #{bottleneck.6} parent=0 // pred_check_branch
    %19 = sbr.rel (0) target = $region17
  $region16: #{bottleneck.6} parent=0 // pred_region
    _
  $region17: #{bottleneck.6} parent=0 // pred_fallthru
    _
  %v21 = vld [vmem:[%s0] sm:$0xf]
  %v22 = vld [vmem:[%s0 + $0x4] sm:$0xf]
  %v23 = vld [vmem:[%s0 + $0x8] sm:$0xf]
  %v24 = vld [vmem:[%s0 + $0xc] sm:$0xf]
  %v25 = vld [vmem:[%s0 + $0x10] sm:$0xf]
  %v26 = vld [vmem:[%s0 + $0x14] sm:$0xf]
  %v27 = vld [vmem:[%s0 + $0x18] sm:$0xf]
  %v28 = vld [vmem:[%s0 + $0x1c] sm:$0xf]
  %v29 = vld [vmem:[%s0 + $0x20] sm:$0xf]
  %v30 = vld [vmem:[%s0 + $0x24] sm:$0xf]
  %v31 = vld [vmem:[%s0 + $0x28] sm:$0xf]
  %v32 = vld [vmem:[%s0 + $0x2c] sm:$0xf]
  %v33 = vld [vmem:[%s0 + $0x30] sm:$0xf]
  %v34 = vld [vmem:[%s0 + $0x34] sm:$0xf]
  %v35 = vld [vmem:[%s0 + $0x38] sm:$0xf]
  %v36 = vld [vmem:[%s0 + $0x3c] sm:$0xf]
  %v37 = vld [vmem:[%s0 + $0x40] sm:$0xf]
  %v38 = vld [vmem:[%s0 + $0x44] sm:$0xf]
  %v39 = vld [vmem:[%s0 + $0x48] sm:$0xf]
  %v40 = vld [vmem:[%s0 + $0x4c] sm:$0xf]
  %v41 = vld [vmem:[%s0 + $0x50] sm:$0xf]
  %v42 = vld [vmem:[%s0 + $0x54] sm:$0xf]
  %v43 = vld [vmem:[%s0 + $0x58] sm:$0xf]
  %v44 = vld [vmem:[%s0 + $0x5c] sm:$0xf]
  %v45 = vld [vmem:[%s0 + $0x60] sm:$0xf]
  %v46 = vld [vmem:[%s0 + $0x64] sm:$0xf]
  %v47 = vld [vmem:[%s0 + $0x68] sm:$0xf]
  %v48 = vld [vmem:[%s0 + $0x6c] sm:$0xf]
  %v49 = vld [vmem:[%s0 + $0x70] sm:$0xf]
  %v50 = vld [vmem:[%s0 + $0x74] sm:$0xf]
  %v51 = vld [vmem:[%s0 + $0x78] sm:$0xf]
  %v52 = vld [vmem:[%s0 + $0x7c] sm:$0xf]
  %v53 = vld [vmem:[%s0 + $0x80] sm:$0xf]
  %v54 = vld [vmem:[%s0 + $0x84] sm:$0xf]
  %v55 = vld [vmem:[%s0 + $0x88] sm:$0xf]
  %v56 = vld [vmem:[%s0 + $0x8c] sm:$0xf]
  %v57 = vld [vmem:[%s0 + $0x90] sm:$0xf]
  %v58 = vld [vmem:[%s0 + $0x94] sm:$0xf]
  %v59 = vld [vmem:[%s0 + $0x98] sm:$0xf]
  %v60 = vld [vmem:[%s0 + $0x9c] sm:$0xf]
  %v61 = vld [vmem:[%s0 + $0xa0] sm:$0xf]
  %v62 = vld [vmem:[%s0 + $0xa4] sm:$0xf]
  %v63 = vld [vmem:[%s0 + $0xa8] sm:$0xf]
  %v64 = vld [vmem:[%s0 + $0xac] sm:$0xf]
  %v65 = vld [vmem:[%s0 + $0xb0] sm:$0xf]
  %v66 = vld [vmem:[%s0 + $0xb4] sm:$0xf]
  %v67 = vld [vmem:[%s0 + $0xb8] sm:$0xf]
  %v68 = vld [vmem:[%s0 + $0xbc] sm:$0xf]
  %v69 = vld [vmem:[%s0 + $0xc0] sm:$0xf]
  %v70 = vld [vmem:[%s0 + $0xc4] sm:$0xf]
  %v71 = vld [vmem:[%s0 + $0xc8] sm:$0xf]
  %v72 = vld [vmem:[%s0 + $0xcc] sm:$0xf]
  %v73 = vld [vmem:[%s0 + $0xd0] sm:$0xf]
  %v74 = vld [vmem:[%s0 + $0xd4] sm:$0xf]
  %v75 = vld [vmem:[%s0 + $0xd8] sm:$0xf]
  %v76 = vld [vmem:[%s0 + $0xdc] sm:$0xf]
  %v77 = vld [vmem:[%s0 + $0xe0] sm:$0xf]
  %v78 = vld [vmem:[%s0 + $0xe4] sm:$0xf]
  %v79 = vld [vmem:[%s0 + $0xe8] sm:$0xf]
  %v80 = vld [vmem:[%s0 + $0xec] sm:$0xf]
  %v81 = vld [vmem:[%s0 + $0xf0] sm:$0xf]
  %v82 = vld [vmem:[%s0 + $0xf4] sm:$0xf]
  %v83 = vld [vmem:[%s0 + $0xf8] sm:$0xf]
  %v84 = vld [vmem:[%s0 + $0xfc] sm:$0xf]
  %v85 = vunpack.c.l.bf16 %v21
  %v86 = vunpack.c.l.bf16 %v22
  %v87 = vunpack.c.l.bf16 %v23
  %v88 = vunpack.c.l.bf16 %v24
  %v89 = vunpack.c.l.bf16 %v25
  %v90 = vunpack.c.l.bf16 %v26
  %v91 = vunpack.c.l.bf16 %v27
  %v92 = vunpack.c.l.bf16 %v28
  %v93 = vunpack.c.l.bf16 %v29
  %v94 = vunpack.c.l.bf16 %v30
  %v95 = vunpack.c.l.bf16 %v31
  %v96 = vunpack.c.l.bf16 %v32
  %v97 = vunpack.c.l.bf16 %v33
  %v98 = vunpack.c.l.bf16 %v34
  %v99 = vunpack.c.l.bf16 %v35
  %v100 = vunpack.c.l.bf16 %v36
  %v101 = vunpack.c.l.bf16 %v37
  %v102 = vunpack.c.l.bf16 %v38
  %v103 = vunpack.c.l.bf16 %v39
  %v104 = vunpack.c.l.bf16 %v40
  %v105 = vunpack.c.l.bf16 %v41
  %v106 = vunpack.c.l.bf16 %v42
  %v107 = vunpack.c.l.bf16 %v43
  %v108 = vunpack.c.l.bf16 %v44
  %v109 = vunpack.c.l.bf16 %v45
  %v110 = vunpack.c.l.bf16 %v46
  %v111 = vunpack.c.l.bf16 %v47
  %v112 = vunpack.c.l.bf16 %v48
  %v113 = vunpack.c.l.bf16 %v49
  %v114 = vunpack.c.l.bf16 %v50
  %v115 = vunpack.c.l.bf16 %v51
  %v116 = vunpack.c.l.bf16 %v52
  %v117 = vunpack.c.l.bf16 %v53
  %v118 = vunpack.c.l.bf16 %v54
  %v119 = vunpack.c.l.bf16 %v55
  %v120 = vunpack.c.l.bf16 %v56
  %v121 = vunpack.c.l.bf16 %v57
  %v122 = vunpack.c.l.bf16 %v58
  %v123 = vunpack.c.l.bf16 %v59
  %v124 = vunpack.c.l.bf16 %v60
  %v125 = vunpack.c.l.bf16 %v61
  %v126 = vunpack.c.l.bf16 %v62
  %v127 = vunpack.c.l.bf16 %v63
  %v128 = vunpack.c.l.bf16 %v64
  %v129 = vunpack.c.l.bf16 %v65
  %v130 = vunpack.c.l.bf16 %v66
  %v131 = vunpack.c.l.bf16 %v67
  %v132 = vunpack.c.l.bf16 %v68
  %v133 = vunpack.c.l.bf16 %v69
  %v134 = vunpack.c.l.bf16 %v70
  %v135 = vunpack.c.l.bf16 %v71
  %v136 = vunpack.c.l.bf16 %v72
  %v137 = vunpack.c.l.bf16 %v73
  %v138 = vunpack.c.l.bf16 %v74
  %v139 = vunpack.c.l.bf16 %v75
  %v140 = vunpack.c.l.bf16 %v76
  %v141 = vunpack.c.l.bf16 %v77
  %v142 = vunpack.c.l.bf16 %v78
  %v143 = vunpack.c.l.bf16 %v79
  %v144 = vunpack.c.l.bf16 %v80
  %v145 = vunpack.c.l.bf16 %v81
  %v146 = vunpack.c.l.bf16 %v82
  %v147 = vunpack.c.l.bf16 %v83
  %v148 = vunpack.c.l.bf16 %v84
  %v149 = vld [vmem:[%s2] sm:$0x1]
  %v151 = vlaneseq
  %v152 = vshrl.u32 %v151, 7
  %v153 = vsub.s32 0, %v152
  %v154 = vrot.slane %v149, %v153
  %v156 = vmul.f32 %v85, %v154
  %v157 = vmul.f32 %v86, %v154
  %v158 = vmul.f32 %v87, %v154
  %v159 = vmul.f32 %v88, %v154
  %v160 = vmul.f32 %v89, %v154
  %v161 = vmul.f32 %v90, %v154
  %v162 = vmul.f32 %v91, %v154
  %v163 = vmul.f32 %v92, %v154
  %v164 = vmul.f32 %v93, %v154
  %v165 = vmul.f32 %v94, %v154
  %v166 = vmul.f32 %v95, %v154
  %v167 = vmul.f32 %v96, %v154
  %v168 = vmul.f32 %v97, %v154
  %v169 = vmul.f32 %v98, %v154
  %v170 = vmul.f32 %v99, %v154
  %v171 = vmul.f32 %v100, %v154
  %v172 = vmul.f32 %v101, %v154
  %v173 = vmul.f32 %v102, %v154
  %v174 = vmul.f32 %v103, %v154
  %v175 = vmul.f32 %v104, %v154
  %v176 = vmul.f32 %v105, %v154
  %v177 = vmul.f32 %v106, %v154
  %v178 = vmul.f32 %v107, %v154
  %v179 = vmul.f32 %v108, %v154
  %v180 = vmul.f32 %v109, %v154
  %v181 = vmul.f32 %v110, %v154
  %v182 = vmul.f32 %v111, %v154
  %v183 = vmul.f32 %v112, %v154
  %v184 = vmul.f32 %v113, %v154
  %v185 = vmul.f32 %v114, %v154
  %v186 = vmul.f32 %v115, %v154
  %v187 = vmul.f32 %v116, %v154
  %v188 = vmul.f32 %v117, %v154
  %v189 = vmul.f32 %v118, %v154
  %v190 = vmul.f32 %v119, %v154
  %v191 = vmul.f32 %v120, %v154
  %v192 = vmul.f32 %v121, %v154
  %v193 = vmul.f32 %v122, %v154
  %v194 = vmul.f32 %v123, %v154
  %v195 = vmul.f32 %v124, %v154
  %v196 = vmul.f32 %v125, %v154
  %v197 = vmul.f32 %v126, %v154
  %v198 = vmul.f32 %v127, %v154
  %v199 = vmul.f32 %v128, %v154
  %v200 = vmul.f32 %v129, %v154
  %v201 = vmul.f32 %v130, %v154
  %v202 = vmul.f32 %v131, %v154
  %v203 = vmul.f32 %v132, %v154
  %v204 = vmul.f32 %v133, %v154
  %v205 = vmul.f32 %v134, %v154
  %v206 = vmul.f32 %v135, %v154
  %v207 = vmul.f32 %v136, %v154
  %v208 = vmul.f32 %v137, %v154
  %v209 = vmul.f32 %v138, %v154
  %v210 = vmul.f32 %v139, %v154
  %v211 = vmul.f32 %v140, %v154
  %v212 = vmul.f32 %v141, %v154
  %v213 = vmul.f32 %v142, %v154
  %v214 = vmul.f32 %v143, %v154
  %v215 = vmul.f32 %v144, %v154
  %v216 = vmul.f32 %v145, %v154
  %v217 = vmul.f32 %v146, %v154
  %v218 = vmul.f32 %v147, %v154
  %v219 = vmul.f32 %v148, %v154
  %v220 = vld [vmem:[%s3] sm:$0x1]
  %v222 = vlaneseq
  %v223 = vshrl.u32 %v222, 7
  %v224 = vsub.s32 0, %v223
  %v225 = vrot.slane %v220, %v224
  %v227 = vadd.f32 %v156, %v225
  %v228 = vadd.f32 %v157, %v225
  %v229 = vadd.f32 %v158, %v225
  %v230 = vadd.f32 %v159, %v225
  %v231 = vadd.f32 %v160, %v225
  %v232 = vadd.f32 %v161, %v225
  %v233 = vadd.f32 %v162, %v225
  %v234 = vadd.f32 %v163, %v225
  %v235 = vadd.f32 %v164, %v225
  %v236 = vadd.f32 %v165, %v225
  %v237 = vadd.f32 %v166, %v225
  %v238 = vadd.f32 %v167, %v225
  %v239 = vadd.f32 %v168, %v225
  %v240 = vadd.f32 %v169, %v225
  %v241 = vadd.f32 %v170, %v225
  %v242 = vadd.f32 %v171, %v225
  %v243 = vadd.f32 %v172, %v225
  %v244 = vadd.f32 %v173, %v225
  %v245 = vadd.f32 %v174, %v225
  %v246 = vadd.f32 %v175, %v225
  %v247 = vadd.f32 %v176, %v225
  %v248 = vadd.f32 %v177, %v225
  %v249 = vadd.f32 %v178, %v225
  %v250 = vadd.f32 %v179, %v225
  %v251 = vadd.f32 %v180, %v225
  %v252 = vadd.f32 %v181, %v225
  %v253 = vadd.f32 %v182, %v225
  %v254 = vadd.f32 %v183, %v225
  %v255 = vadd.f32 %v184, %v225
  %v256 = vadd.f32 %v185, %v225
  %v257 = vadd.f32 %v186, %v225
  %v258 = vadd.f32 %v187, %v225
  %v259 = vadd.f32 %v188, %v225
  %v260 = vadd.f32 %v189, %v225
  %v261 = vadd.f32 %v190, %v225
  %v262 = vadd.f32 %v191, %v225
  %v263 = vadd.f32 %v192, %v225
  %v264 = vadd.f32 %v193, %v225
  %v265 = vadd.f32 %v194, %v225
  %v266 = vadd.f32 %v195, %v225
  %v267 = vadd.f32 %v196, %v225
  %v268 = vadd.f32 %v197, %v225
  %v269 = vadd.f32 %v198, %v225
  %v270 = vadd.f32 %v199, %v225
  %v271 = vadd.f32 %v200, %v225
  %v272 = vadd.f32 %v201, %v225
  %v273 = vadd.f32 %v202, %v225
  %v274 = vadd.f32 %v203, %v225
  %v275 = vadd.f32 %v204, %v225
  %v276 = vadd.f32 %v205, %v225
  %v277 = vadd.f32 %v206, %v225
  %v278 = vadd.f32 %v207, %v225
  %v279 = vadd.f32 %v208, %v225
  %v280 = vadd.f32 %v209, %v225
  %v281 = vadd.f32 %v210, %v225
  %v282 = vadd.f32 %v211, %v225
  %v283 = vadd.f32 %v212, %v225
  %v284 = vadd.f32 %v213, %v225
  %v285 = vadd.f32 %v214, %v225
  %v286 = vadd.f32 %v215, %v225
  %v287 = vadd.f32 %v216, %v225
  %v288 = vadd.f32 %v217, %v225
  %v289 = vadd.f32 %v218, %v225
  %v290 = vadd.f32 %v219, %v225
  %v291 = vmax.f32 %v227, 0.0
  %v292 = vmax.f32 %v228, 0.0
  %v293 = vmax.f32 %v229, 0.0
  %v294 = vmax.f32 %v230, 0.0
  %v295 = vmax.f32 %v231, 0.0
  %v296 = vmax.f32 %v232, 0.0
  %v297 = vmax.f32 %v233, 0.0
  %v298 = vmax.f32 %v234, 0.0
  %v299 = vmax.f32 %v235, 0.0
  %v300 = vmax.f32 %v236, 0.0
  %v301 = vmax.f32 %v237, 0.0
  %v302 = vmax.f32 %v238, 0.0
  %v303 = vmax.f32 %v239, 0.0
  %v304 = vmax.f32 %v240, 0.0
  %v305 = vmax.f32 %v241, 0.0
  %v306 = vmax.f32 %v242, 0.0
  %v307 = vmax.f32 %v243, 0.0
  %v308 = vmax.f32 %v244, 0.0
  %v309 = vmax.f32 %v245, 0.0
  %v310 = vmax.f32 %v246, 0.0
  %v311 = vmax.f32 %v247, 0.0
  %v312 = vmax.f32 %v248, 0.0
  %v313 = vmax.f32 %v249, 0.0
  %v314 = vmax.f32 %v250, 0.0
  %v315 = vmax.f32 %v251, 0.0
  %v316 = vmax.f32 %v252, 0.0
  %v317 = vmax.f32 %v253, 0.0
  %v318 = vmax.f32 %v254, 0.0
  %v319 = vmax.f32 %v255, 0.0
  %v320 = vmax.f32 %v256, 0.0
  %v321 = vmax.f32 %v257, 0.0
  %v322 = vmax.f32 %v258, 0.0
  %v323 = vmax.f32 %v259, 0.0
  %v324 = vmax.f32 %v260, 0.0
  %v325 = vmax.f32 %v261, 0.0
  %v326 = vmax.f32 %v262, 0.0
  %v327 = vmax.f32 %v263, 0.0
  %v328 = vmax.f32 %v264, 0.0
  %v329 = vmax.f32 %v265, 0.0
  %v330 = vmax.f32 %v266, 0.0
  %v331 = vmax.f32 %v267, 0.0
  %v332 = vmax.f32 %v268, 0.0
  %v333 = vmax.f32 %v269, 0.0
  %v334 = vmax.f32 %v270, 0.0
  %v335 = vmax.f32 %v271, 0.0
  %v336 = vmax.f32 %v272, 0.0
  %v337 = vmax.f32 %v273, 0.0
  %v338 = vmax.f32 %v274, 0.0
  %v339 = vmax.f32 %v275, 0.0
  %v340 = vmax.f32 %v276, 0.0
  %v341 = vmax.f32 %v277, 0.0
  %v342 = vmax.f32 %v278, 0.0
  %v343 = vmax.f32 %v279, 0.0
  %v344 = vmax.f32 %v280, 0.0
  %v345 = vmax.f32 %v281, 0.0
  %v346 = vmax.f32 %v282, 0.0
  %v347 = vmax.f32 %v283, 0.0
  %v348 = vmax.f32 %v284, 0.0
  %v349 = vmax.f32 %v285, 0.0
  %v350 = vmax.f32 %v286, 0.0
  %v351 = vmax.f32 %v287, 0.0
  %v352 = vmax.f32 %v288, 0.0
  %v353 = vmax.f32 %v289, 0.0
  %v354 = vmax.f32 %v290, 0.0
  %v355 = vpack.c.bf16 %v292, %v291
  %v356 = vpack.c.bf16 %v294, %v293
  %v357 = vpack.c.bf16 %v296, %v295
  %v358 = vpack.c.bf16 %v298, %v297
  %v359 = vpack.c.bf16 %v300, %v299
  %v360 = vpack.c.bf16 %v302, %v301
  %v361 = vpack.c.bf16 %v304, %v303
  %v362 = vpack.c.bf16 %v306, %v305
  %v363 = vpack.c.bf16 %v308, %v307
  %v364 = vpack.c.bf16 %v310, %v309
  %v365 = vpack.c.bf16 %v312, %v311
  %v366 = vpack.c.bf16 %v314, %v313
  %v367 = vpack.c.bf16 %v316, %v315
  %v368 = vpack.c.bf16 %v318, %v317
  %v369 = vpack.c.bf16 %v320, %v319
  %v370 = vpack.c.bf16 %v322, %v321
  %v371 = vpack.c.bf16 %v324, %v323
  %v372 = vpack.c.bf16 %v326, %v325
  %v373 = vpack.c.bf16 %v328, %v327
  %v374 = vpack.c.bf16 %v330, %v329
  %v375 = vpack.c.bf16 %v332, %v331
  %v376 = vpack.c.bf16 %v334, %v333
  %v377 = vpack.c.bf16 %v336, %v335
  %v378 = vpack.c.bf16 %v338, %v337
  %v379 = vpack.c.bf16 %v340, %v339
  %v380 = vpack.c.bf16 %v342, %v341
  %v381 = vpack.c.bf16 %v344, %v343
  %v382 = vpack.c.bf16 %v346, %v345
  %v383 = vpack.c.bf16 %v348, %v347
  %v384 = vpack.c.bf16 %v350, %v349
  %v385 = vpack.c.bf16 %v352, %v351
  %v386 = vpack.c.bf16 %v354, %v353
  %v387 = vld [vmem:[%s1] sm:$0xf]
  %vm388 = vcmask 64512
  %v390 = vsel %vm388, %v355, 0
  %v393 = vsel %vm388, %v356, 0
  %v396 = vsel %vm388, %v357, 0
  %v399 = vsel %vm388, %v358, 0
  %v402 = vsel %vm388, %v359, 0
  %v405 = vsel %vm388, %v360, 0
  %v408 = vsel %vm388, %v361, 0
  %v411 = vsel %vm388, %v362, 0
  %v414 = vsel %vm388, %v363, 0
  %v417 = vsel %vm388, %v364, 0
  %v420 = vsel %vm388, %v365, 0
  %v423 = vsel %vm388, %v366, 0
  %v426 = vsel %vm388, %v367, 0
  %v429 = vsel %vm388, %v368, 0
  %v432 = vsel %vm388, %v369, 0
  %v435 = vsel %vm388, %v370, 0
  %v438 = vsel %vm388, %v371, 0
  %v441 = vsel %vm388, %v372, 0
  %v444 = vsel %vm388, %v373, 0
  %v447 = vsel %vm388, %v374, 0
  %v450 = vsel %vm388, %v375, 0
  %v453 = vsel %vm388, %v376, 0
  %v456 = vsel %vm388, %v377, 0
  %v459 = vsel %vm388, %v378, 0
  %v462 = vsel %vm388, %v379, 0
  %v465 = vsel %vm388, %v380, 0
  %v468 = vsel %vm388, %v381, 0
  %v471 = vsel %vm388, %v382, 0
  %v474 = vsel %vm388, %v383, 0
  %v477 = vsel %vm388, %v384, 0
  %v480 = vsel %vm388, %v385, 0
  %v483 = vsel %vm388, %v386, 0
  %vm485 = vcmask 1043456
  %v487 = vsel %vm485, %v387, 0
  %489 = vmatprep.subr.bf16.mxu0 0
  %490 = vmatpush1.bf16.msra.mxu0 0
  %491 = vmatprep.subr.bf16.mxu0 0
  %492 = vmatpush1.bf16.msra.mxu0 0
  %493 = vmatprep.subr.bf16.mxu0 0
  %494 = vmatpush1.bf16.msra.mxu0 0
  %495 = vmatprep.subr.bf16.mxu0 0
  %496 = vmatpush1.bf16.msra.mxu0 0
  %497 = vmatprep.subr.bf16.mxu0 0
  %498 = vmatpush1.bf16.msra.mxu0 0
  %499 = vmatprep.subr.bf16.mxu0 0
  %500 = vmatpush1.bf16.msra.mxu0 0
  %501 = vmatprep.subr.bf16.mxu0 0
  %502 = vmatpush1.bf16.msra.mxu0 0
  %503 = vmatprep.subr.bf16.mxu0 0
  %504 = vmatpush1.bf16.msra.mxu0 %v487
  %505 = vmatprep.subr.bf16.mxu0 0
  %506 = vmatpush2.bf16.msra.mxu0 0
  %507 = vmatprep.subr.bf16.mxu0 0
  %508 = vmatpush2.bf16.msra.mxu0 0
  %509 = vmatprep.subr.bf16.mxu0 0
  %510 = vmatpush2.bf16.msra.mxu0 0
  %511 = vmatprep.subr.bf16.mxu0 0
  %512 = vmatpush2.bf16.msra.mxu0 0
  %513 = vmatprep.subr.bf16.mxu0 0
  %514 = vmatpush2.bf16.msra.mxu0 0
  %515 = vmatprep.subr.bf16.mxu0 0
  %516 = vmatpush2.bf16.msra.mxu0 0
  %517 = vmatprep.subr.bf16.mxu0 0
  %518 = vmatpush2.bf16.msra.mxu0 0
  %519 = vmatprep.subr.bf16.mxu0 0
  %520 = vmatpush2.bf16.msra.mxu0 0
  %521 = vmatprep.mubr.bf16.mxu0 0
  %522 = vmatmul.mubr.bf16.gmra.mxu0 %v390
  %v523 = vpop.f32.mrf.mxu0
  %v524 = vadd.f32 0.0, %v523
  %v525 = vpop.f32.mrf.mxu0
  %v526 = vpop.f32.mrf.mxu0
  %v527 = vadd.f32 0.0, %v526
  %v528 = vpop.f32.mrf.mxu0
  %529 = vmatprep.mubr.bf16.mxu0 0
  %530 = vmatmul.mubr.bf16.gmra.mxu0 %v393
  %v531 = vpop.f32.mrf.mxu0
  %v532 = vadd.f32 0.0, %v531
  %v533 = vpop.f32.mrf.mxu0
  %v534 = vpop.f32.mrf.mxu0
  %v535 = vadd.f32 0.0, %v534
  %v536 = vpop.f32.mrf.mxu0
  %537 = vmatprep.mubr.bf16.mxu0 0
  %538 = vmatmul.mubr.bf16.gmra.mxu0 %v396
  %v539 = vpop.f32.mrf.mxu0
  %v540 = vadd.f32 0.0, %v539
  %v541 = vpop.f32.mrf.mxu0
  %v542 = vpop.f32.mrf.mxu0
  %v543 = vadd.f32 0.0, %v542
  %v544 = vpop.f32.mrf.mxu0
  %545 = vmatprep.mubr.bf16.mxu0 0
  %546 = vmatmul.mubr.bf16.gmra.mxu0 %v399
  %v547 = vpop.f32.mrf.mxu0
  %v548 = vadd.f32 0.0, %v547
  %v549 = vpop.f32.mrf.mxu0
  %v550 = vpop.f32.mrf.mxu0
  %v551 = vadd.f32 0.0, %v550
  %v552 = vpop.f32.mrf.mxu0
  %553 = vmatprep.mubr.bf16.mxu0 0
  %554 = vmatmul.mubr.bf16.gmra.mxu0 %v402
  %v555 = vpop.f32.mrf.mxu0
  %v556 = vadd.f32 0.0, %v555
  %v557 = vpop.f32.mrf.mxu0
  %v558 = vpop.f32.mrf.mxu0
  %v559 = vadd.f32 0.0, %v558
  %v560 = vpop.f32.mrf.mxu0
  %561 = vmatprep.mubr.bf16.mxu0 0
  %562 = vmatmul.mubr.bf16.gmra.mxu0 %v405
  %v563 = vpop.f32.mrf.mxu0
  %v564 = vadd.f32 0.0, %v563
  %v565 = vpop.f32.mrf.mxu0
  %v566 = vpop.f32.mrf.mxu0
  %v567 = vadd.f32 0.0, %v566
  %v568 = vpop.f32.mrf.mxu0
  %569 = vmatprep.mubr.bf16.mxu0 0
  %570 = vmatmul.mubr.bf16.gmra.mxu0 %v408
  %v571 = vpop.f32.mrf.mxu0
  %v572 = vadd.f32 0.0, %v571
  %v573 = vpop.f32.mrf.mxu0
  %v574 = vpop.f32.mrf.mxu0
  %v575 = vadd.f32 0.0, %v574
  %v576 = vpop.f32.mrf.mxu0
  %577 = vmatprep.mubr.bf16.mxu0 0
  %578 = vmatmul.mubr.bf16.gmra.mxu0 %v411
  %v579 = vpop.f32.mrf.mxu0
  %v580 = vadd.f32 0.0, %v579
  %v581 = vpop.f32.mrf.mxu0
  %v582 = vpop.f32.mrf.mxu0
  %v583 = vadd.f32 0.0, %v582
  %v584 = vpop.f32.mrf.mxu0
  %585 = vmatprep.mubr.bf16.mxu0 0
  %586 = vmatmul.mubr.bf16.gmra.mxu0 %v414
  %v587 = vpop.f32.mrf.mxu0
  %v588 = vadd.f32 0.0, %v587
  %v589 = vpop.f32.mrf.mxu0
  %v590 = vpop.f32.mrf.mxu0
  %v591 = vadd.f32 0.0, %v590
  %v592 = vpop.f32.mrf.mxu0
  %593 = vmatprep.mubr.bf16.mxu0 0
  %594 = vmatmul.mubr.bf16.gmra.mxu0 %v417
  %v595 = vpop.f32.mrf.mxu0
  %v596 = vadd.f32 0.0, %v595
  %v597 = vpop.f32.mrf.mxu0
  %v598 = vpop.f32.mrf.mxu0
  %v599 = vadd.f32 0.0, %v598
  %v600 = vpop.f32.mrf.mxu0
  %601 = vmatprep.mubr.bf16.mxu0 0
  %602 = vmatmul.mubr.bf16.gmra.mxu0 %v420
  %v603 = vpop.f32.mrf.mxu0
  %v604 = vadd.f32 0.0, %v603
  %v605 = vpop.f32.mrf.mxu0
  %v606 = vpop.f32.mrf.mxu0
  %v607 = vadd.f32 0.0, %v606
  %v608 = vpop.f32.mrf.mxu0
  %609 = vmatprep.mubr.bf16.mxu0 0
  %610 = vmatmul.mubr.bf16.gmra.mxu0 %v423
  %v611 = vpop.f32.mrf.mxu0
  %v612 = vadd.f32 0.0, %v611
  %v613 = vpop.f32.mrf.mxu0
  %v614 = vpop.f32.mrf.mxu0
  %v615 = vadd.f32 0.0, %v614
  %v616 = vpop.f32.mrf.mxu0
  %617 = vmatprep.mubr.bf16.mxu0 0
  %618 = vmatmul.mubr.bf16.gmra.mxu0 %v426
  %v619 = vpop.f32.mrf.mxu0
  %v620 = vadd.f32 0.0, %v619
  %v621 = vpop.f32.mrf.mxu0
  %v622 = vpop.f32.mrf.mxu0
  %v623 = vadd.f32 0.0, %v622
  %v624 = vpop.f32.mrf.mxu0
  %625 = vmatprep.mubr.bf16.mxu0 0
  %626 = vmatmul.mubr.bf16.gmra.mxu0 %v429
  %v627 = vpop.f32.mrf.mxu0
  %v628 = vadd.f32 0.0, %v627
  %v629 = vpop.f32.mrf.mxu0
  %v630 = vpop.f32.mrf.mxu0
  %v631 = vadd.f32 0.0, %v630
  %v632 = vpop.f32.mrf.mxu0
  %633 = vmatprep.mubr.bf16.mxu0 0
  %634 = vmatmul.mubr.bf16.gmra.mxu0 %v432
  %v635 = vpop.f32.mrf.mxu0
  %v636 = vadd.f32 0.0, %v635
  %v637 = vpop.f32.mrf.mxu0
  %v638 = vpop.f32.mrf.mxu0
  %v639 = vadd.f32 0.0, %v638
  %v640 = vpop.f32.mrf.mxu0
  %641 = vmatprep.mubr.bf16.mxu0 0
  %642 = vmatmul.mubr.bf16.gmra.mxu0 %v435
  %v643 = vpop.f32.mrf.mxu0
  %v644 = vadd.f32 0.0, %v643
  %v645 = vpop.f32.mrf.mxu0
  %v646 = vpop.f32.mrf.mxu0
  %v647 = vadd.f32 0.0, %v646
  %v648 = vpop.f32.mrf.mxu0
  %649 = vmatprep.mubr.bf16.mxu0 0
  %650 = vmatmul.mubr.bf16.gmra.mxu0 %v438
  %v651 = vpop.f32.mrf.mxu0
  %v652 = vadd.f32 0.0, %v651
  %v653 = vpop.f32.mrf.mxu0
  %v654 = vpop.f32.mrf.mxu0
  %v655 = vadd.f32 0.0, %v654
  %v656 = vpop.f32.mrf.mxu0
  %657 = vmatprep.mubr.bf16.mxu0 0
  %658 = vmatmul.mubr.bf16.gmra.mxu0 %v441
  %v659 = vpop.f32.mrf.mxu0
  %v660 = vadd.f32 0.0, %v659
  %v661 = vpop.f32.mrf.mxu0
  %v662 = vpop.f32.mrf.mxu0
  %v663 = vadd.f32 0.0, %v662
  %v664 = vpop.f32.mrf.mxu0
  %665 = vmatprep.mubr.bf16.mxu0 0
  %666 = vmatmul.mubr.bf16.gmra.mxu0 %v444
  %v667 = vpop.f32.mrf.mxu0
  %v668 = vadd.f32 0.0, %v667
  %v669 = vpop.f32.mrf.mxu0
  %v670 = vpop.f32.mrf.mxu0
  %v671 = vadd.f32 0.0, %v670
  %v672 = vpop.f32.mrf.mxu0
  %673 = vmatprep.mubr.bf16.mxu0 0
  %674 = vmatmul.mubr.bf16.gmra.mxu0 %v447
  %v675 = vpop.f32.mrf.mxu0
  %v676 = vadd.f32 0.0, %v675
  %v677 = vpop.f32.mrf.mxu0
  %v678 = vpop.f32.mrf.mxu0
  %v679 = vadd.f32 0.0, %v678
  %v680 = vpop.f32.mrf.mxu0
  %681 = vmatprep.mubr.bf16.mxu0 0
  %682 = vmatmul.mubr.bf16.gmra.mxu0 %v450
  %v683 = vpop.f32.mrf.mxu0
  %v684 = vadd.f32 0.0, %v683
  %v685 = vpop.f32.mrf.mxu0
  %v686 = vpop.f32.mrf.mxu0
  %v687 = vadd.f32 0.0, %v686
  %v688 = vpop.f32.mrf.mxu0
  %689 = vmatprep.mubr.bf16.mxu0 0
  %690 = vmatmul.mubr.bf16.gmra.mxu0 %v453
  %v691 = vpop.f32.mrf.mxu0
  %v692 = vadd.f32 0.0, %v691
  %v693 = vpop.f32.mrf.mxu0
  %v694 = vpop.f32.mrf.mxu0
  %v695 = vadd.f32 0.0, %v694
  %v696 = vpop.f32.mrf.mxu0
  %697 = vmatprep.mubr.bf16.mxu0 0
  %698 = vmatmul.mubr.bf16.gmra.mxu0 %v456
  %v699 = vpop.f32.mrf.mxu0
  %v700 = vadd.f32 0.0, %v699
  %v701 = vpop.f32.mrf.mxu0
  %v702 = vpop.f32.mrf.mxu0
  %v703 = vadd.f32 0.0, %v702
  %v704 = vpop.f32.mrf.mxu0
  %705 = vmatprep.mubr.bf16.mxu0 0
  %706 = vmatmul.mubr.bf16.gmra.mxu0 %v459
  %v707 = vpop.f32.mrf.mxu0
  %v708 = vadd.f32 0.0, %v707
  %v709 = vpop.f32.mrf.mxu0
  %v710 = vpop.f32.mrf.mxu0
  %v711 = vadd.f32 0.0, %v710
  %v712 = vpop.f32.mrf.mxu0
  %713 = vmatprep.mubr.bf16.mxu0 0
  %714 = vmatmul.mubr.bf16.gmra.mxu0 %v462
  %v715 = vpop.f32.mrf.mxu0
  %v716 = vadd.f32 0.0, %v715
  %v717 = vpop.f32.mrf.mxu0
  %v718 = vpop.f32.mrf.mxu0
  %v719 = vadd.f32 0.0, %v718
  %v720 = vpop.f32.mrf.mxu0
  %721 = vmatprep.mubr.bf16.mxu0 0
  %722 = vmatmul.mubr.bf16.gmra.mxu0 %v465
  %v723 = vpop.f32.mrf.mxu0
  %v724 = vadd.f32 0.0, %v723
  %v725 = vpop.f32.mrf.mxu0
  %v726 = vpop.f32.mrf.mxu0
  %v727 = vadd.f32 0.0, %v726
  %v728 = vpop.f32.mrf.mxu0
  %729 = vmatprep.mubr.bf16.mxu0 0
  %730 = vmatmul.mubr.bf16.gmra.mxu0 %v468
  %v731 = vpop.f32.mrf.mxu0
  %v732 = vadd.f32 0.0, %v731
  %v733 = vpop.f32.mrf.mxu0
  %v734 = vpop.f32.mrf.mxu0
  %v735 = vadd.f32 0.0, %v734
  %v736 = vpop.f32.mrf.mxu0
  %737 = vmatprep.mubr.bf16.mxu0 0
  %738 = vmatmul.mubr.bf16.gmra.mxu0 %v471
  %v739 = vpop.f32.mrf.mxu0
  %v740 = vadd.f32 0.0, %v739
  %v741 = vpop.f32.mrf.mxu0
  %v742 = vpop.f32.mrf.mxu0
  %v743 = vadd.f32 0.0, %v742
  %v744 = vpop.f32.mrf.mxu0
  %745 = vmatprep.mubr.bf16.mxu0 0
  %746 = vmatmul.mubr.bf16.gmra.mxu0 %v474
  %v747 = vpop.f32.mrf.mxu0
  %v748 = vadd.f32 0.0, %v747
  %v749 = vpop.f32.mrf.mxu0
  %v750 = vpop.f32.mrf.mxu0
  %v751 = vadd.f32 0.0, %v750
  %v752 = vpop.f32.mrf.mxu0
  %753 = vmatprep.mubr.bf16.mxu0 0
  %754 = vmatmul.mubr.bf16.gmra.mxu0 %v477
  %v755 = vpop.f32.mrf.mxu0
  %v756 = vadd.f32 0.0, %v755
  %v757 = vpop.f32.mrf.mxu0
  %v758 = vpop.f32.mrf.mxu0
  %v759 = vadd.f32 0.0, %v758
  %v760 = vpop.f32.mrf.mxu0
  %761 = vmatprep.mubr.bf16.mxu0 0
  %762 = vmatmul.mubr.bf16.gmra.mxu0 %v480
  %v763 = vpop.f32.mrf.mxu0
  %v764 = vadd.f32 0.0, %v763
  %v765 = vpop.f32.mrf.mxu0
  %v766 = vpop.f32.mrf.mxu0
  %v767 = vadd.f32 0.0, %v766
  %v768 = vpop.f32.mrf.mxu0
  %769 = vmatprep.mubr.bf16.mxu0 0
  %770 = vmatmul.mubr.bf16.gmra.mxu0 %v483
  %v771 = vpop.f32.mrf.mxu0
  %v772 = vadd.f32 0.0, %v771
  %v773 = vpop.f32.mrf.mxu0
  %v774 = vpop.f32.mrf.mxu0
  %v775 = vadd.f32 0.0, %v774
  %v776 = vpop.f32.mrf.mxu0
  %777 = vdwg.mxu0
  %vm778 = vcmask 31744
  %v779 = vsel %vm778, %v524, 0.0
  %v780 = vsel %vm778, %v527, 0.0
  %v781 = vadd.f32 %v779, %v780
  %v782 = vsel %vm778, %v532, 0.0
  %v783 = vadd.f32 %v781, %v782
  %v784 = vsel %vm778, %v535, 0.0
  %v785 = vadd.f32 %v783, %v784
  %v786 = vsel %vm778, %v540, 0.0
  %v787 = vadd.f32 %v785, %v786
  %v788 = vsel %vm778, %v543, 0.0
  %v789 = vadd.f32 %v787, %v788
  %v790 = vsel %vm778, %v548, 0.0
  %v791 = vadd.f32 %v789, %v790
  %v792 = vsel %vm778, %v551, 0.0
  %v793 = vadd.f32 %v791, %v792
  %v794 = vsel %vm778, %v556, 0.0
  %v795 = vadd.f32 %v793, %v794
  %v796 = vsel %vm778, %v559, 0.0
  %v797 = vadd.f32 %v795, %v796
  %v798 = vsel %vm778, %v564, 0.0
  %v799 = vadd.f32 %v797, %v798
  %v800 = vsel %vm778, %v567, 0.0
  %v801 = vadd.f32 %v799, %v800
  %v802 = vsel %vm778, %v572, 0.0
  %v803 = vadd.f32 %v801, %v802
  %v804 = vsel %vm778, %v575, 0.0
  %v805 = vadd.f32 %v803, %v804
  %v806 = vsel %vm778, %v580, 0.0
  %v807 = vadd.f32 %v805, %v806
  %v808 = vsel %vm778, %v583, 0.0
  %v809 = vadd.f32 %v807, %v808
  %v810 = vsel %vm778, %v588, 0.0
  %v811 = vadd.f32 %v809, %v810
  %v812 = vsel %vm778, %v591, 0.0
  %v813 = vadd.f32 %v811, %v812
  %v814 = vsel %vm778, %v596, 0.0
  %v815 = vadd.f32 %v813, %v814
  %v816 = vsel %vm778, %v599, 0.0
  %v817 = vadd.f32 %v815, %v816
  %v818 = vsel %vm778, %v604, 0.0
  %v819 = vadd.f32 %v817, %v818
  %v820 = vsel %vm778, %v607, 0.0
  %v821 = vadd.f32 %v819, %v820
  %v822 = vsel %vm778, %v612, 0.0
  %v823 = vadd.f32 %v821, %v822
  %v824 = vsel %vm778, %v615, 0.0
  %v825 = vadd.f32 %v823, %v824
  %v826 = vsel %vm778, %v620, 0.0
  %v827 = vadd.f32 %v825, %v826
  %v828 = vsel %vm778, %v623, 0.0
  %v829 = vadd.f32 %v827, %v828
  %v830 = vsel %vm778, %v628, 0.0
  %v831 = vadd.f32 %v829, %v830
  %v832 = vsel %vm778, %v631, 0.0
  %v833 = vadd.f32 %v831, %v832
  %v834 = vsel %vm778, %v636, 0.0
  %v835 = vadd.f32 %v833, %v834
  %v836 = vsel %vm778, %v639, 0.0
  %v837 = vadd.f32 %v835, %v836
  %v838 = vsel %vm778, %v644, 0.0
  %v839 = vadd.f32 %v837, %v838
  %v840 = vsel %vm778, %v647, 0.0
  %v841 = vadd.f32 %v839, %v840
  %v842 = vsel %vm778, %v652, 0.0
  %v843 = vadd.f32 %v841, %v842
  %v844 = vsel %vm778, %v655, 0.0
  %v845 = vadd.f32 %v843, %v844
  %v846 = vsel %vm778, %v660, 0.0
  %v847 = vadd.f32 %v845, %v846
  %v848 = vsel %vm778, %v663, 0.0
  %v849 = vadd.f32 %v847, %v848
  %v850 = vsel %vm778, %v668, 0.0
  %v851 = vadd.f32 %v849, %v850
  %v852 = vsel %vm778, %v671, 0.0
  %v853 = vadd.f32 %v851, %v852
  %v854 = vsel %vm778, %v676, 0.0
  %v855 = vadd.f32 %v853, %v854
  %v856 = vsel %vm778, %v679, 0.0
  %v857 = vadd.f32 %v855, %v856
  %v858 = vsel %vm778, %v684, 0.0
  %v859 = vadd.f32 %v857, %v858
  %v860 = vsel %vm778, %v687, 0.0
  %v861 = vadd.f32 %v859, %v860
  %v862 = vsel %vm778, %v692, 0.0
  %v863 = vadd.f32 %v861, %v862
  %v864 = vsel %vm778, %v695, 0.0
  %v865 = vadd.f32 %v863, %v864
  %v866 = vsel %vm778, %v700, 0.0
  %v867 = vadd.f32 %v865, %v866
  %v868 = vsel %vm778, %v703, 0.0
  %v869 = vadd.f32 %v867, %v868
  %v870 = vsel %vm778, %v708, 0.0
  %v871 = vadd.f32 %v869, %v870
  %v872 = vsel %vm778, %v711, 0.0
  %v873 = vadd.f32 %v871, %v872
  %v874 = vsel %vm778, %v716, 0.0
  %v875 = vadd.f32 %v873, %v874
  %v876 = vsel %vm778, %v719, 0.0
  %v877 = vadd.f32 %v875, %v876
  %v878 = vsel %vm778, %v724, 0.0
  %v879 = vadd.f32 %v877, %v878
  %v880 = vsel %vm778, %v727, 0.0
  %v881 = vadd.f32 %v879, %v880
  %v882 = vsel %vm778, %v732, 0.0
  %v883 = vadd.f32 %v881, %v882
  %v884 = vsel %vm778, %v735, 0.0
  %v885 = vadd.f32 %v883, %v884
  %v886 = vsel %vm778, %v740, 0.0
  %v887 = vadd.f32 %v885, %v886
  %v888 = vsel %vm778, %v743, 0.0
  %v889 = vadd.f32 %v887, %v888
  %v890 = vsel %vm778, %v748, 0.0
  %v891 = vadd.f32 %v889, %v890
  %v892 = vsel %vm778, %v751, 0.0
  %v893 = vadd.f32 %v891, %v892
  %v894 = vsel %vm778, %v756, 0.0
  %v895 = vadd.f32 %v893, %v894
  %v896 = vsel %vm778, %v759, 0.0
  %v897 = vadd.f32 %v895, %v896
  %v898 = vsel %vm778, %v764, 0.0
  %v899 = vadd.f32 %v897, %v898
  %v900 = vsel %vm778, %v767, 0.0
  %v901 = vadd.f32 %v899, %v900
  %v902 = vsel %vm778, %v772, 0.0
  %v903 = vadd.f32 %v901, %v902
  %v904 = vsel %vm778, %v775, 0.0
  %v905 = vadd.f32 %v903, %v904
  %v906 = vrot.slane %v905, 4
  %v907 = vadd.f32 %v905, %v906
  %v908 = vrot.slane %v907, 2
  %v909 = vadd.f32 %v907, %v908
  %v910 = vrot.slane %v909, 1
  %v911 = vadd.f32 %v909, %v910
  %vm912 = vcmask 24576
  %913 = vst.msk [vmem:[%s5] sm:$0x1] %vm912, %v911
  %v914 = vmul.f32 %v524, %v524
  %v915 = vmul.f32 %v527, %v527
  %v916 = vmul.f32 %v532, %v532
  %v917 = vmul.f32 %v535, %v535
  %v918 = vmul.f32 %v540, %v540
  %v919 = vmul.f32 %v543, %v543
  %v920 = vmul.f32 %v548, %v548
  %v921 = vmul.f32 %v551, %v551
  %v922 = vmul.f32 %v556, %v556
  %v923 = vmul.f32 %v559, %v559
  %v924 = vmul.f32 %v564, %v564
  %v925 = vmul.f32 %v567, %v567
  %v926 = vmul.f32 %v572, %v572
  %v927 = vmul.f32 %v575, %v575
  %v928 = vmul.f32 %v580, %v580
  %v929 = vmul.f32 %v583, %v583
  %v930 = vmul.f32 %v588, %v588
  %v931 = vmul.f32 %v591, %v591
  %v932 = vmul.f32 %v596, %v596
  %v933 = vmul.f32 %v599, %v599
  %v934 = vmul.f32 %v604, %v604
  %v935 = vmul.f32 %v607, %v607
  %v936 = vmul.f32 %v612, %v612
  %v937 = vmul.f32 %v615, %v615
  %v938 = vmul.f32 %v620, %v620
  %v939 = vmul.f32 %v623, %v623
  %v940 = vmul.f32 %v628, %v628
  %v941 = vmul.f32 %v631, %v631
  %v942 = vmul.f32 %v636, %v636
  %v943 = vmul.f32 %v639, %v639
  %v944 = vmul.f32 %v644, %v644
  %v945 = vmul.f32 %v647, %v647
  %v946 = vmul.f32 %v652, %v652
  %v947 = vmul.f32 %v655, %v655
  %v948 = vmul.f32 %v660, %v660
  %v949 = vmul.f32 %v663, %v663
  %v950 = vmul.f32 %v668, %v668
  %v951 = vmul.f32 %v671, %v671
  %v952 = vmul.f32 %v676, %v676
  %v953 = vmul.f32 %v679, %v679
  %v954 = vmul.f32 %v684, %v684
  %v955 = vmul.f32 %v687, %v687
  %v956 = vmul.f32 %v692, %v692
  %v957 = vmul.f32 %v695, %v695
  %v958 = vmul.f32 %v700, %v700
  %v959 = vmul.f32 %v703, %v703
  %v960 = vmul.f32 %v708, %v708
  %v961 = vmul.f32 %v711, %v711
  %v962 = vmul.f32 %v716, %v716
  %v963 = vmul.f32 %v719, %v719
  %v964 = vmul.f32 %v724, %v724
  %v965 = vmul.f32 %v727, %v727
  %v966 = vmul.f32 %v732, %v732
  %v967 = vmul.f32 %v735, %v735
  %v968 = vmul.f32 %v740, %v740
  %v969 = vmul.f32 %v743, %v743
  %v970 = vmul.f32 %v748, %v748
  %v971 = vmul.f32 %v751, %v751
  %v972 = vmul.f32 %v756, %v756
  %v973 = vmul.f32 %v759, %v759
  %v974 = vmul.f32 %v764, %v764
  %v975 = vmul.f32 %v767, %v767
  %v976 = vmul.f32 %v772, %v772
  %v977 = vmul.f32 %v775, %v775
  %v978 = vsel %vm778, %v914, 0.0
  %v979 = vsel %vm778, %v915, 0.0
  %v980 = vadd.f32 %v978, %v979
  %v981 = vsel %vm778, %v916, 0.0
  %v982 = vadd.f32 %v980, %v981
  %v983 = vsel %vm778, %v917, 0.0
  %v984 = vadd.f32 %v982, %v983
  %v985 = vsel %vm778, %v918, 0.0
  %v986 = vadd.f32 %v984, %v985
  %v987 = vsel %vm778, %v919, 0.0
  %v988 = vadd.f32 %v986, %v987
  %v989 = vsel %vm778, %v920, 0.0
  %v990 = vadd.f32 %v988, %v989
  %v991 = vsel %vm778, %v921, 0.0
  %v992 = vadd.f32 %v990, %v991
  %v993 = vsel %vm778, %v922, 0.0
  %v994 = vadd.f32 %v992, %v993
  %v995 = vsel %vm778, %v923, 0.0
  %v996 = vadd.f32 %v994, %v995
  %v997 = vsel %vm778, %v924, 0.0
  %v998 = vadd.f32 %v996, %v997
  %v999 = vsel %vm778, %v925, 0.0
  %v1000 = vadd.f32 %v998, %v999
  %v1001 = vsel %vm778, %v926, 0.0
  %v1002 = vadd.f32 %v1000, %v1001
  %v1003 = vsel %vm778, %v927, 0.0
  %v1004 = vadd.f32 %v1002, %v1003
  %v1005 = vsel %vm778, %v928, 0.0
  %v1006 = vadd.f32 %v1004, %v1005
  %v1007 = vsel %vm778, %v929, 0.0
  %v1008 = vadd.f32 %v1006, %v1007
  %v1009 = vsel %vm778, %v930, 0.0
  %v1010 = vadd.f32 %v1008, %v1009
  %v1011 = vsel %vm778, %v931, 0.0
  %v1012 = vadd.f32 %v1010, %v1011
  %v1013 = vsel %vm778, %v932, 0.0
  %v1014 = vadd.f32 %v1012, %v1013
  %v1015 = vsel %vm778, %v933, 0.0
  %v1016 = vadd.f32 %v1014, %v1015
  %v1017 = vsel %vm778, %v934, 0.0
  %v1018 = vadd.f32 %v1016, %v1017
  %v1019 = vsel %vm778, %v935, 0.0
  %v1020 = vadd.f32 %v1018, %v1019
  %v1021 = vsel %vm778, %v936, 0.0
  %v1022 = vadd.f32 %v1020, %v1021
  %v1023 = vsel %vm778, %v937, 0.0
  %v1024 = vadd.f32 %v1022, %v1023
  %v1025 = vsel %vm778, %v938, 0.0
  %v1026 = vadd.f32 %v1024, %v1025
  %v1027 = vsel %vm778, %v939, 0.0
  %v1028 = vadd.f32 %v1026, %v1027
  %v1029 = vsel %vm778, %v940, 0.0
  %v1030 = vadd.f32 %v1028, %v1029
  %v1031 = vsel %vm778, %v941, 0.0
  %v1032 = vadd.f32 %v1030, %v1031
  %v1033 = vsel %vm778, %v942, 0.0
  %v1034 = vadd.f32 %v1032, %v1033
  %v1035 = vsel %vm778, %v943, 0.0
  %v1036 = vadd.f32 %v1034, %v1035
  %v1037 = vsel %vm778, %v944, 0.0
  %v1038 = vadd.f32 %v1036, %v1037
  %v1039 = vsel %vm778, %v945, 0.0
  %v1040 = vadd.f32 %v1038, %v1039
  %v1041 = vsel %vm778, %v946, 0.0
  %v1042 = vadd.f32 %v1040, %v1041
  %v1043 = vsel %vm778, %v947, 0.0
  %v1044 = vadd.f32 %v1042, %v1043
  %v1045 = vsel %vm778, %v948, 0.0
  %v1046 = vadd.f32 %v1044, %v1045
  %v1047 = vsel %vm778, %v949, 0.0
  %v1048 = vadd.f32 %v1046, %v1047
  %v1049 = vsel %vm778, %v950, 0.0
  %v1050 = vadd.f32 %v1048, %v1049
  %v1051 = vsel %vm778, %v951, 0.0
  %v1052 = vadd.f32 %v1050, %v1051
  %v1053 = vsel %vm778, %v952, 0.0
  %v1054 = vadd.f32 %v1052, %v1053
  %v1055 = vsel %vm778, %v953, 0.0
  %v1056 = vadd.f32 %v1054, %v1055
  %v1057 = vsel %vm778, %v954, 0.0
  %v1058 = vadd.f32 %v1056, %v1057
  %v1059 = vsel %vm778, %v955, 0.0
  %v1060 = vadd.f32 %v1058, %v1059
  %v1061 = vsel %vm778, %v956, 0.0
  %v1062 = vadd.f32 %v1060, %v1061
  %v1063 = vsel %vm778, %v957, 0.0
  %v1064 = vadd.f32 %v1062, %v1063
  %v1065 = vsel %vm778, %v958, 0.0
  %v1066 = vadd.f32 %v1064, %v1065
  %v1067 = vsel %vm778, %v959, 0.0
  %v1068 = vadd.f32 %v1066, %v1067
  %v1069 = vsel %vm778, %v960, 0.0
  %v1070 = vadd.f32 %v1068, %v1069
  %v1071 = vsel %vm778, %v961, 0.0
  %v1072 = vadd.f32 %v1070, %v1071
  %v1073 = vsel %vm778, %v962, 0.0
  %v1074 = vadd.f32 %v1072, %v1073
  %v1075 = vsel %vm778, %v963, 0.0
  %v1076 = vadd.f32 %v1074, %v1075
  %v1077 = vsel %vm778, %v964, 0.0
  %v1078 = vadd.f32 %v1076, %v1077
  %v1079 = vsel %vm778, %v965, 0.0
  %v1080 = vadd.f32 %v1078, %v1079
  %v1081 = vsel %vm778, %v966, 0.0
  %v1082 = vadd.f32 %v1080, %v1081
  %v1083 = vsel %vm778, %v967, 0.0
  %v1084 = vadd.f32 %v1082, %v1083
  %v1085 = vsel %vm778, %v968, 0.0
  %v1086 = vadd.f32 %v1084, %v1085
  %v1087 = vsel %vm778, %v969, 0.0
  %v1088 = vadd.f32 %v1086, %v1087
  %v1089 = vsel %vm778, %v970, 0.0
  %v1090 = vadd.f32 %v1088, %v1089
  %v1091 = vsel %vm778, %v971, 0.0
  %v1092 = vadd.f32 %v1090, %v1091
  %v1093 = vsel %vm778, %v972, 0.0
  %v1094 = vadd.f32 %v1092, %v1093
  %v1095 = vsel %vm778, %v973, 0.0
  %v1096 = vadd.f32 %v1094, %v1095
  %v1097 = vsel %vm778, %v974, 0.0
  %v1098 = vadd.f32 %v1096, %v1097
  %v1099 = vsel %vm778, %v975, 0.0
  %v1100 = vadd.f32 %v1098, %v1099
  %v1101 = vsel %vm778, %v976, 0.0
  %v1102 = vadd.f32 %v1100, %v1101
  %v1103 = vsel %vm778, %v977, 0.0
  %v1104 = vadd.f32 %v1102, %v1103
  %v1105 = vrot.slane %v1104, 4
  %v1106 = vadd.f32 %v1104, %v1105
  %v1107 = vrot.slane %v1106, 2
  %v1108 = vadd.f32 %v1106, %v1107
  %v1109 = vrot.slane %v1108, 1
  %v1110 = vadd.f32 %v1108, %v1109
  %1111 = vst.msk [vmem:[%s6] sm:$0x1] %vm912, %v1110
  %v1112 = vpack.c.bf16 %v527, %v524
  %v1113 = vpack.c.bf16 %v535, %v532
  %v1114 = vpack.c.bf16 %v543, %v540
  %v1115 = vpack.c.bf16 %v551, %v548
  %v1116 = vpack.c.bf16 %v559, %v556
  %v1117 = vpack.c.bf16 %v567, %v564
  %v1118 = vpack.c.bf16 %v575, %v572
  %v1119 = vpack.c.bf16 %v583, %v580
  %v1120 = vpack.c.bf16 %v591, %v588
  %v1121 = vpack.c.bf16 %v599, %v596
  %v1122 = vpack.c.bf16 %v607, %v604
  %v1123 = vpack.c.bf16 %v615, %v612
  %v1124 = vpack.c.bf16 %v623, %v620
  %v1125 = vpack.c.bf16 %v631, %v628
  %v1126 = vpack.c.bf16 %v639, %v636
  %v1127 = vpack.c.bf16 %v647, %v644
  %v1128 = vpack.c.bf16 %v655, %v652
  %v1129 = vpack.c.bf16 %v663, %v660
  %v1130 = vpack.c.bf16 %v671, %v668
  %v1131 = vpack.c.bf16 %v679, %v676
  %v1132 = vpack.c.bf16 %v687, %v684
  %v1133 = vpack.c.bf16 %v695, %v692
  %v1134 = vpack.c.bf16 %v703, %v700
  %v1135 = vpack.c.bf16 %v711, %v708
  %v1136 = vpack.c.bf16 %v719, %v716
  %v1137 = vpack.c.bf16 %v727, %v724
  %v1138 = vpack.c.bf16 %v735, %v732
  %v1139 = vpack.c.bf16 %v743, %v740
  %v1140 = vpack.c.bf16 %v751, %v748
  %v1141 = vpack.c.bf16 %v759, %v756
  %v1142 = vpack.c.bf16 %v767, %v764
  %v1143 = vpack.c.bf16 %v775, %v772
  %v1176 = vunpack.c.l.b16 %v1112
  %v1177 = vunpack.c.h.b16 %v1112
  %v1178 = vunpack.c.l.b16 %v1113
  %v1179 = vunpack.c.h.b16 %v1113
  %v1180 = vunpack.c.l.b16 %v1114
  %v1181 = vunpack.c.h.b16 %v1114
  %v1182 = vunpack.c.l.b16 %v1115
  %v1183 = vunpack.c.h.b16 %v1115
  %v1184 = vunpack.c.l.b16 %v1116
  %v1185 = vunpack.c.h.b16 %v1116
  %v1186 = vunpack.c.l.b16 %v1117
  %v1187 = vunpack.c.h.b16 %v1117
  %v1188 = vunpack.c.l.b16 %v1118
  %v1189 = vunpack.c.h.b16 %v1118
  %v1190 = vunpack.c.l.b16 %v1119
  %v1191 = vunpack.c.h.b16 %v1119
  %v1192 = vunpack.c.l.b16 %v1120
  %v1193 = vunpack.c.h.b16 %v1120
  %v1194 = vunpack.c.l.b16 %v1121
  %v1195 = vunpack.c.h.b16 %v1121
  %v1196 = vunpack.c.l.b16 %v1122
  %v1197 = vunpack.c.h.b16 %v1122
  %v1198 = vunpack.c.l.b16 %v1123
  %v1199 = vunpack.c.h.b16 %v1123
  %v1200 = vunpack.c.l.b16 %v1124
  %v1201 = vunpack.c.h.b16 %v1124
  %v1202 = vunpack.c.l.b16 %v1125
  %v1203 = vunpack.c.h.b16 %v1125
  %v1204 = vunpack.c.l.b16 %v1126
  %v1205 = vunpack.c.h.b16 %v1126
  %v1206 = vunpack.c.l.b16 %v1127
  %v1207 = vunpack.c.h.b16 %v1127
  %v1208 = vunpack.c.l.b16 %v1128
  %v1209 = vunpack.c.h.b16 %v1128
  %v1210 = vunpack.c.l.b16 %v1129
  %v1211 = vunpack.c.h.b16 %v1129
  %v1212 = vunpack.c.l.b16 %v1130
  %v1213 = vunpack.c.h.b16 %v1130
  %v1214 = vunpack.c.l.b16 %v1131
  %v1215 = vunpack.c.h.b16 %v1131
  %v1216 = vunpack.c.l.b16 %v1132
  %v1217 = vunpack.c.h.b16 %v1132
  %v1218 = vunpack.c.l.b16 %v1133
  %v1219 = vunpack.c.h.b16 %v1133
  %v1220 = vunpack.c.l.b16 %v1134
  %v1221 = vunpack.c.h.b16 %v1134
  %v1222 = vunpack.c.l.b16 %v1135
  %v1223 = vunpack.c.h.b16 %v1135
  %v1224 = vunpack.c.l.b16 %v1136
  %v1225 = vunpack.c.h.b16 %v1136
  %v1226 = vunpack.c.l.b16 %v1137
  %v1227 = vunpack.c.h.b16 %v1137
  %v1228 = vunpack.c.l.b16 %v1138
  %v1229 = vunpack.c.h.b16 %v1138
  %v1230 = vunpack.c.l.b16 %v1139
  %v1231 = vunpack.c.h.b16 %v1139
  %v1232 = vunpack.c.l.b16 %v1140
  %v1233 = vunpack.c.h.b16 %v1140
  %v1234 = vunpack.c.l.b16 %v1141
  %v1235 = vunpack.c.h.b16 %v1141
  %v1236 = vunpack.c.l.b16 %v1142
  %v1237 = vunpack.c.h.b16 %v1142
  %v1238 = vunpack.c.l.b16 %v1143
  %v1239 = vunpack.c.h.b16 %v1143
  %v1240 = vpack.c.b16 %v1176, %v1176
  %v1241 = vpack.c.b16 %v1177, %v1177
  %v1242 = vpack.c.b16 %v1178, %v1178
  %v1243 = vpack.c.b16 %v1179, %v1179
  %v1244 = vpack.c.b16 %v1180, %v1180
  %v1245 = vpack.c.b16 %v1181, %v1181
  %v1246 = vpack.c.b16 %v1182, %v1182
  %v1247 = vpack.c.b16 %v1183, %v1183
  %v1248 = vpack.c.b16 %v1184, %v1184
  %v1249 = vpack.c.b16 %v1185, %v1185
  %v1250 = vpack.c.b16 %v1186, %v1186
  %v1251 = vpack.c.b16 %v1187, %v1187
  %v1252 = vpack.c.b16 %v1188, %v1188
  %v1253 = vpack.c.b16 %v1189, %v1189
  %v1254 = vpack.c.b16 %v1190, %v1190
  %v1255 = vpack.c.b16 %v1191, %v1191
  %v1256 = vpack.c.b16 %v1192, %v1192
  %v1257 = vpack.c.b16 %v1193, %v1193
  %v1258 = vpack.c.b16 %v1194, %v1194
  %v1259 = vpack.c.b16 %v1195, %v1195
  %v1260 = vpack.c.b16 %v1196, %v1196
  %v1261 = vpack.c.b16 %v1197, %v1197
  %v1262 = vpack.c.b16 %v1198, %v1198
  %v1263 = vpack.c.b16 %v1199, %v1199
  %v1264 = vpack.c.b16 %v1200, %v1200
  %v1265 = vpack.c.b16 %v1201, %v1201
  %v1266 = vpack.c.b16 %v1202, %v1202
  %v1267 = vpack.c.b16 %v1203, %v1203
  %v1268 = vpack.c.b16 %v1204, %v1204
  %v1269 = vpack.c.b16 %v1205, %v1205
  %v1270 = vpack.c.b16 %v1206, %v1206
  %v1271 = vpack.c.b16 %v1207, %v1207
  %v1272 = vpack.c.b16 %v1208, %v1208
  %v1273 = vpack.c.b16 %v1209, %v1209
  %v1274 = vpack.c.b16 %v1210, %v1210
  %v1275 = vpack.c.b16 %v1211, %v1211
  %v1276 = vpack.c.b16 %v1212, %v1212
  %v1277 = vpack.c.b16 %v1213, %v1213
  %v1278 = vpack.c.b16 %v1214, %v1214
  %v1279 = vpack.c.b16 %v1215, %v1215
  %v1280 = vpack.c.b16 %v1216, %v1216
  %v1281 = vpack.c.b16 %v1217, %v1217
  %v1282 = vpack.c.b16 %v1218, %v1218
  %v1283 = vpack.c.b16 %v1219, %v1219
  %v1284 = vpack.c.b16 %v1220, %v1220
  %v1285 = vpack.c.b16 %v1221, %v1221
  %v1286 = vpack.c.b16 %v1222, %v1222
  %v1287 = vpack.c.b16 %v1223, %v1223
  %v1288 = vpack.c.b16 %v1224, %v1224
  %v1289 = vpack.c.b16 %v1225, %v1225
  %v1290 = vpack.c.b16 %v1226, %v1226
  %v1291 = vpack.c.b16 %v1227, %v1227
  %v1292 = vpack.c.b16 %v1228, %v1228
  %v1293 = vpack.c.b16 %v1229, %v1229
  %v1294 = vpack.c.b16 %v1230, %v1230
  %v1295 = vpack.c.b16 %v1231, %v1231
  %v1296 = vpack.c.b16 %v1232, %v1232
  %v1297 = vpack.c.b16 %v1233, %v1233
  %v1298 = vpack.c.b16 %v1234, %v1234
  %v1299 = vpack.c.b16 %v1235, %v1235
  %v1300 = vpack.c.b16 %v1236, %v1236
  %v1301 = vpack.c.b16 %v1237, %v1237
  %v1302 = vpack.c.b16 %v1238, %v1238
  %v1303 = vpack.c.b16 %v1239, %v1239
  %vm1368 = vcmask 27648
  %1369 = vst.msk [vmem:[%s4] sm:$0xf] %vm1368, %v1240
  %1370 = vst.msk [vmem:[%s4 + $0x4] sm:$0xf] %vm1368, %v1241
  %1371 = vst.msk [vmem:[%s4 + $0x8] sm:$0xf] %vm1368, %v1242
  %1372 = vst.msk [vmem:[%s4 + $0xc] sm:$0xf] %vm1368, %v1243
  %1373 = vst.msk [vmem:[%s4 + $0x10] sm:$0xf] %vm1368, %v1244
  %1374 = vst.msk [vmem:[%s4 + $0x14] sm:$0xf] %vm1368, %v1245
  %1375 = vst.msk [vmem:[%s4 + $0x18] sm:$0xf] %vm1368, %v1246
  %1376 = vst.msk [vmem:[%s4 + $0x1c] sm:$0xf] %vm1368, %v1247
  %1377 = vst.msk [vmem:[%s4 + $0x20] sm:$0xf] %vm1368, %v1248
  %1378 = vst.msk [vmem:[%s4 + $0x24] sm:$0xf] %vm1368, %v1249
  %1379 = vst.msk [vmem:[%s4 + $0x28] sm:$0xf] %vm1368, %v1250
  %1380 = vst.msk [vmem:[%s4 + $0x2c] sm:$0xf] %vm1368, %v1251
  %1381 = vst.msk [vmem:[%s4 + $0x30] sm:$0xf] %vm1368, %v1252
  %1382 = vst.msk [vmem:[%s4 + $0x34] sm:$0xf] %vm1368, %v1253
  %1383 = vst.msk [vmem:[%s4 + $0x38] sm:$0xf] %vm1368, %v1254
  %1384 = vst.msk [vmem:[%s4 + $0x3c] sm:$0xf] %vm1368, %v1255
  %1385 = vst.msk [vmem:[%s4 + $0x40] sm:$0xf] %vm1368, %v1256
  %1386 = vst.msk [vmem:[%s4 + $0x44] sm:$0xf] %vm1368, %v1257
  %1387 = vst.msk [vmem:[%s4 + $0x48] sm:$0xf] %vm1368, %v1258
  %1388 = vst.msk [vmem:[%s4 + $0x4c] sm:$0xf] %vm1368, %v1259
  %1389 = vst.msk [vmem:[%s4 + $0x50] sm:$0xf] %vm1368, %v1260
  %1390 = vst.msk [vmem:[%s4 + $0x54] sm:$0xf] %vm1368, %v1261
  %1391 = vst.msk [vmem:[%s4 + $0x58] sm:$0xf] %vm1368, %v1262
  %1392 = vst.msk [vmem:[%s4 + $0x5c] sm:$0xf] %vm1368, %v1263
  %1393 = vst.msk [vmem:[%s4 + $0x60] sm:$0xf] %vm1368, %v1264
  %1394 = vst.msk [vmem:[%s4 + $0x64] sm:$0xf] %vm1368, %v1265
  %1395 = vst.msk [vmem:[%s4 + $0x68] sm:$0xf] %vm1368, %v1266
  %1396 = vst.msk [vmem:[%s4 + $0x6c] sm:$0xf] %vm1368, %v1267
  %1397 = vst.msk [vmem:[%s4 + $0x70] sm:$0xf] %vm1368, %v1268
  %1398 = vst.msk [vmem:[%s4 + $0x74] sm:$0xf] %vm1368, %v1269
  %1399 = vst.msk [vmem:[%s4 + $0x78] sm:$0xf] %vm1368, %v1270
  %1400 = vst.msk [vmem:[%s4 + $0x7c] sm:$0xf] %vm1368, %v1271
  %1401 = vst.msk [vmem:[%s4 + $0x80] sm:$0xf] %vm1368, %v1272
  %1402 = vst.msk [vmem:[%s4 + $0x84] sm:$0xf] %vm1368, %v1273
  %1403 = vst.msk [vmem:[%s4 + $0x88] sm:$0xf] %vm1368, %v1274
  %1404 = vst.msk [vmem:[%s4 + $0x8c] sm:$0xf] %vm1368, %v1275
  %1405 = vst.msk [vmem:[%s4 + $0x90] sm:$0xf] %vm1368, %v1276
  %1406 = vst.msk [vmem:[%s4 + $0x94] sm:$0xf] %vm1368, %v1277
  %1407 = vst.msk [vmem:[%s4 + $0x98] sm:$0xf] %vm1368, %v1278
  %1408 = vst.msk [vmem:[%s4 + $0x9c] sm:$0xf] %vm1368, %v1279
  %1409 = vst.msk [vmem:[%s4 + $0xa0] sm:$0xf] %vm1368, %v1280
  %1410 = vst.msk [vmem:[%s4 + $0xa4] sm:$0xf] %vm1368, %v1281
  %1411 = vst.msk [vmem:[%s4 + $0xa8] sm:$0xf] %vm1368, %v1282
  %1412 = vst.msk [vmem:[%s4 + $0xac] sm:$0xf] %vm1368, %v1283
  %1413 = vst.msk [vmem:[%s4 + $0xb0] sm:$0xf] %vm1368, %v1284
  %1414 = vst.msk [vmem:[%s4 + $0xb4] sm:$0xf] %vm1368, %v1285
  %1415 = vst.msk [vmem:[%s4 + $0xb8] sm:$0xf] %vm1368, %v1286
  %1416 = vst.msk [vmem:[%s4 + $0xbc] sm:$0xf] %vm1368, %v1287
  %1417 = vst.msk [vmem:[%s4 + $0xc0] sm:$0xf] %vm1368, %v1288
  %1418 = vst.msk [vmem:[%s4 + $0xc4] sm:$0xf] %vm1368, %v1289
  %1419 = vst.msk [vmem:[%s4 + $0xc8] sm:$0xf] %vm1368, %v1290
  %1420 = vst.msk [vmem:[%s4 + $0xcc] sm:$0xf] %vm1368, %v1291
  %1421 = vst.msk [vmem:[%s4 + $0xd0] sm:$0xf] %vm1368, %v1292
  %1422 = vst.msk [vmem:[%s4 + $0xd4] sm:$0xf] %vm1368, %v1293
  %1423 = vst.msk [vmem:[%s4 + $0xd8] sm:$0xf] %vm1368, %v1294
  %1424 = vst.msk [vmem:[%s4 + $0xdc] sm:$0xf] %vm1368, %v1295
  %1425 = vst.msk [vmem:[%s4 + $0xe0] sm:$0xf] %vm1368, %v1296
  %1426 = vst.msk [vmem:[%s4 + $0xe4] sm:$0xf] %vm1368, %v1297
  %1427 = vst.msk [vmem:[%s4 + $0xe8] sm:$0xf] %vm1368, %v1298
  %1428 = vst.msk [vmem:[%s4 + $0xec] sm:$0xf] %vm1368, %v1299
  %1429 = vst.msk [vmem:[%s4 + $0xf0] sm:$0xf] %vm1368, %v1300
  %1430 = vst.msk [vmem:[%s4 + $0xf4] sm:$0xf] %vm1368, %v1301
  %1431 = vst.msk [vmem:[%s4 + $0xf8] sm:$0xf] %vm1368, %v1302
  %1432 = vst.msk [vmem:[%s4 + $0xfc] sm:$0xf] %vm1368, %v1303
  // Predicated region
  $region18: #{bottleneck.6} parent=0 // pred_check
    _
  $region19: #{bottleneck.6} parent=0 // pred_check_branch
    %1434 = sbr.rel (0) target = $region21
  $region20: #{bottleneck.6} parent=0 // pred_region
    _
  $region21: #{bottleneck.6} parent=0 // pred_fallthru
    _
  // Predicated region
  $region22: #{bottleneck.6} parent=0 // pred_check
    _
  $region23: #{bottleneck.6} parent=0 // pred_check_branch
    %1436 = sbr.rel (0) target = $region25
  $region24: #{bottleneck.6} parent=0 // pred_region
    _
  $region25: #{bottleneck.6} parent=0 // pred_fallthru
    _
  // Predicated region
  $region26: #{bottleneck.6} parent=0 // pred_check
    _
  $region27: #{bottleneck.6} parent=0 // pred_check_branch
    %1438 = sbr.rel (0) target = $region29
  $region28: #{bottleneck.6} parent=0 // pred_region
    _
  $region29: #{bottleneck.6} parent=0 // pred_fallthru
    _
  // Predicated region
  $region30: #{bottleneck.6} parent=0 // pred_check
    _
  $region31: #{bottleneck.6} parent=0 // pred_check_branch
    %1440 = sbr.rel (0) target = $region33
  $region32: #{bottleneck.6} parent=0 // pred_region
    _
  $region33: #{bottleneck.6} parent=0 // pred_fallthru
    _
  // Predicated region
  $region34: #{bottleneck.6} parent=0 // pred_check
    _
  $region35: #{bottleneck.6} parent=0 // pred_check_branch
    %1442 = sbr.rel (0) target = $region37
  $region36: #{bottleneck.6} parent=0 // pred_region
    _
  $region37: #{bottleneck.6} parent=0 // pred_fallthru
    _
  // Predicated region
  $region38: #{bottleneck.6} parent=0 // pred_check
    _
  $region39: #{bottleneck.6} parent=0 // pred_check_branch
    %1444 = sbr.rel (0) target = $region41
  $region40: #{bottleneck.6} parent=0 // pred_region
    _
  $region41: #{bottleneck.6} parent=0 // pred_fallthru
    _

// kernel: bottleneck.5
$region0: #{bottleneck.5}
  #allocation0 [shape = 'u32[]', space=smem, size = 0x4, offset = 0x4, fixed_abs, tag = 'smem constant byte address 0x4 - core index']
  #allocation1 [shape = 'u32[144,128]{1,0:T(1,128)}', space=vmem, size = 0x12000, scoped, tag = 'internal scratch']
  %s0 = inlined_call_operand.vmem [shape: bf16[2,16,16,8], index: 0, kind: input, shape index: {}, may-alias: {0,1,2}]
  %s1 = inlined_call_operand.vmem [shape: bf16[2,16,16,8], index: 1, kind: input, shape index: {}, may-alias: {0,1,2}]
  %s2 = inlined_call_operand.vmem [shape: bf16[2,16,16,8], index: 2, kind: input, shape index: {}, may-alias: {0,1,2}]
  %s3 = inlined_call_operand.vmem [shape: bf16[72,8], index: 3, kind: input, shape index: {}]
  %s4 = inlined_call_operand.vmem [shape: f32[1,8], index: 4, kind: input, shape index: {}]
  %s5 = inlined_call_operand.vmem [shape: f32[1,8], index: 5, kind: input, shape index: {}]
  %s6 = inlined_call_operand.vmem [shape: bf16[2,16,16,8], index: 6, kind: output, shape index: {0}]
  %s7 = inlined_call_operand.vmem [shape: f32[2,2,1,8], index: 7, kind: output, shape index: {1}]
  %s8 = inlined_call_operand.vmem [shape: f32[2,2,1,8], index: 8, kind: output, shape index: {2}]
  %9 = xla_tuple %s6, %s7, %s8
  %s10 = sld [smem:[#allocation0]]
  $region73: #{bottleneck.5} parent=0
    _
  %s12 = ssub.s32 1, %s10
  %s13 = scalar_select 0, %s12, %s10
  loop: start=0, step=1, limit=6
  $region2: #{bottleneck.5} parent=0 // loop_pre_header
    _
  $region3: #{bottleneck.5} parent=0 // loop_header
    %s15 = sphi 0, %s19
    %p16 = scmp.ge.s32.totalorder %s15, 6
    %s22 = sphi 0, %s34
    %s23 = sphi 0, %s30
    %s24 = sphi 0, %s22
    %s25 = sphi 0, %s23
    %s26 = sphi 0, %s24
    %s27 = sphi 0, %s25
    %s47 = sphi 0, %s49
    %s50 = sphi 0, %s47
    %s51 = sphi 0, %s50
    %s67 = sphi 0, %s51
    %s75 = sphi 0, %s77
    %s78 = sphi 0, %s75
    %s79 = sphi 0, %s78
    %s95 = sphi 0, %s79
    %s111 = sphi 0, %s113
    %s114 = sphi 0, %s111
    %s115 = sphi 0, %s114
    %s131 = sphi 0, %s115
    %s135 = sphi 0, %s135
    %s137 = sphi 0, %s135
    %s138 = sphi 0, %s137
    %s152 = sphi 0, %s138
    %s156 = sphi 0, %s156
    %s158 = sphi 0, %s156
    %s159 = sphi 0, %s158
    %s173 = sphi 0, %s159
    %s177 = sphi 0, %s177
    %s179 = sphi 0, %s177
    %s180 = sphi 0, %s179
    %s194 = sphi 0, %s180
    %s202 = sphi 0, %s204
    %s205 = sphi 0, %s202
    %s206 = sphi 0, %s205
    %s222 = sphi 0, %s206
    %s230 = sphi 0, %s232
    %s233 = sphi 0, %s230
    %s234 = sphi 0, %s233
    %s250 = sphi 0, %s234
    %s258 = sphi 0, %s260
    %s261 = sphi 0, %s258
    %s262 = sphi 0, %s261
    %s278 = sphi 0, %s262
  $region4: #{bottleneck.5} parent=0 // loop_header_branch
    %18 = sbr.rel (%p16) target = $region8
  $region5: #{bottleneck.5} parent=0 // loop_body
    %s20 = ssub.s32 %s15, 1
    %s21 = ssub.s32 %s15, 2
    %s28 = sadd.s32 1, %s23
    %p29 = scmp.ge.s32.totalorder %s28, 2
    %s30 = scalar_select %p29, 0, %s28
    %s31 = sadd.s32 1, %s22
    %s32 = scalar_select %p29, %s31, %s22
    %p33 = scmp.ge.s32.totalorder %s32, 2
    %s34 = scalar_select %p33, 0, %s32
    %s35 = smul.u32 %s23, 8
    %s36 = ssub.s32 %s35, 1
    %p37 = scmp.gt.s32.totalorder %s36, 0
    %s38 = scalar_select %p37, %s36, 0
    %s39 = smul.u32 %s30, 8
    %s40 = ssub.s32 %s39, 1
    %p41 = scmp.gt.s32.totalorder %s40, 0
    %s42 = scalar_select %p41, %s40, 0
    %s43 = ssub.s32 %s22, %s34
    %s44 = ssub.s32 %s38, %s42
    %s45 = sor.u32 %s43, %s44
    %p46 = scmp.eq.s32.totalorder %s45, 0
    %s48 = sadd.s32 %s47, 1
    %s49 = scalar_select %p46, %s47, %s48
    %p52 = pneg %p46
    %p53 = scmp.eq.s32.totalorder %s15, 3
    %p54 = por %p52, %p53
    %p55 = scmp.ne.s32.totalorder %s47, %s50
    %p56 = scmp.eq.s32.totalorder %s15, 0
    %p57 = por %p55, %p56
    %p58 = scmp.ne.s32.totalorder %s47, %s50
    %p59 = scmp.eq.s32.totalorder %s20, 3
    %p60 = por %p58, %p59
    %p61 = scmp.ne.s32.totalorder %s50, %s51
    %p62 = scmp.eq.s32.totalorder %s20, 0
    %p63 = por %p61, %p62
    %p64 = scmp.ne.s32.totalorder %s50, %s51
    %p65 = scmp.eq.s32.totalorder %s21, 3
    %p66 = por %p64, %p65
    %p68 = scmp.ne.s32.totalorder %s51, %s67
    %p69 = scmp.eq.s32.totalorder %s21, 0
    %p70 = por %p68, %p69
    %s71 = ssub.s32 %s22, %s34
    %s72 = ssub.s32 %s23, %s30
    %s73 = sor.u32 %s71, %s72
    %p74 = scmp.eq.s32.totalorder %s73, 0
    %s76 = sadd.s32 %s75, 1
    %s77 = scalar_select %p74, %s75, %s76
    %p80 = pneg %p74
    %p81 = scmp.eq.s32.totalorder %s15, 3
    %p82 = por %p80, %p81
    %p83 = scmp.ne.s32.totalorder %s75, %s78
    %p84 = scmp.eq.s32.totalorder %s15, 0
    %p85 = por %p83, %p84
    %p86 = scmp.ne.s32.totalorder %s75, %s78
    %p87 = scmp.eq.s32.totalorder %s20, 3
    %p88 = por %p86, %p87
    %p89 = scmp.ne.s32.totalorder %s78, %s79
    %p90 = scmp.eq.s32.totalorder %s20, 0
    %p91 = por %p89, %p90
    %p92 = scmp.ne.s32.totalorder %s78, %s79
    %p93 = scmp.eq.s32.totalorder %s21, 3
    %p94 = por %p92, %p93
    %p96 = scmp.ne.s32.totalorder %s79, %s95
    %p97 = scmp.eq.s32.totalorder %s21, 0
    %p98 = por %p96, %p97
    %s99 = sadd.s32 %s23, 1
    %s100 = smul.u32 %s99, 8
    %p101 = scmp.lt.s32.totalorder %s100, 15
    %s102 = scalar_select %p101, %s100, 15
    %s103 = sadd.s32 %s30, 1
    %s104 = smul.u32 %s103, 8
    %p105 = scmp.lt.s32.totalorder %s104, 15
    %s106 = scalar_select %p105, %s104, 15
    %s107 = ssub.s32 %s22, %s34
    %s108 = ssub.s32 %s102, %s106
    %s109 = sor.u32 %s107, %s108
    %p110 = scmp.eq.s32.totalorder %s109, 0
    %s112 = sadd.s32 %s111, 1
    %s113 = scalar_select %p110, %s111, %s112
    %p116 = pneg %p110
    %p117 = scmp.eq.s32.totalorder %s15, 3
    %p118 = por %p116, %p117
    %p119 = scmp.ne.s32.totalorder %s111, %s114
    %p120 = scmp.eq.s32.totalorder %s15, 0
    %p121 = por %p119, %p120
    %p122 = scmp.ne.s32.totalorder %s111, %s114
    %p123 = scmp.eq.s32.totalorder %s20, 3
    %p124 = por %p122, %p123
    %p125 = scmp.ne.s32.totalorder %s114, %s115
    %p126 = scmp.eq.s32.totalorder %s20, 0
    %p127 = por %p125, %p126
    %p128 = scmp.ne.s32.totalorder %s114, %s115
    %p129 = scmp.eq.s32.totalorder %s21, 3
    %p130 = por %p128, %p129
    %p132 = scmp.ne.s32.totalorder %s115, %s131
    %p133 = scmp.eq.s32.totalorder %s21, 0
    %p134 = por %p132, %p133
    %s136 = sadd.s32 %s135, 1
    %p139 = scmp.eq.s32.totalorder %s15, 3
    %p140 = scmp.ne.s32.totalorder %s135, %s137
    %p141 = scmp.eq.s32.totalorder %s15, 0
    %p142 = por %p140, %p141
    %p143 = scmp.ne.s32.totalorder %s135, %s137
    %p144 = scmp.eq.s32.totalorder %s20, 3
    %p145 = por %p143, %p144
    %p146 = scmp.ne.s32.totalorder %s137, %s138
    %p147 = scmp.eq.s32.totalorder %s20, 0
    %p148 = por %p146, %p147
    %p149 = scmp.ne.s32.totalorder %s137, %s138
    %p150 = scmp.eq.s32.totalorder %s21, 3
    %p151 = por %p149, %p150
    %p153 = scmp.ne.s32.totalorder %s138, %s152
    %p154 = scmp.eq.s32.totalorder %s21, 0
    %p155 = por %p153, %p154
    %s157 = sadd.s32 %s156, 1
    %p160 = scmp.eq.s32.totalorder %s15, 3
    %p161 = scmp.ne.s32.totalorder %s156, %s158
    %p162 = scmp.eq.s32.totalorder %s15, 0
    %p163 = por %p161, %p162
    %p164 = scmp.ne.s32.totalorder %s156, %s158
    %p165 = scmp.eq.s32.totalorder %s20, 3
    %p166 = por %p164, %p165
    %p167 = scmp.ne.s32.totalorder %s158, %s159
    %p168 = scmp.eq.s32.totalorder %s20, 0
    %p169 = por %p167, %p168
    %p170 = scmp.ne.s32.totalorder %s158, %s159
    %p171 = scmp.eq.s32.totalorder %s21, 3
    %p172 = por %p170, %p171
    %p174 = scmp.ne.s32.totalorder %s159, %s173
    %p175 = scmp.eq.s32.totalorder %s21, 0
    %p176 = por %p174, %p175
    %s178 = sadd.s32 %s177, 1
    %p181 = scmp.eq.s32.totalorder %s15, 3
    %p182 = scmp.ne.s32.totalorder %s177, %s179
    %p183 = scmp.eq.s32.totalorder %s15, 0
    %p184 = por %p182, %p183
    %p185 = scmp.ne.s32.totalorder %s177, %s179
    %p186 = scmp.eq.s32.totalorder %s20, 3
    %p187 = por %p185, %p186
    %p188 = scmp.ne.s32.totalorder %s179, %s180
    %p189 = scmp.eq.s32.totalorder %s20, 0
    %p190 = por %p188, %p189
    %p191 = scmp.ne.s32.totalorder %s179, %s180
    %p192 = scmp.eq.s32.totalorder %s21, 3
    %p193 = por %p191, %p192
    %p195 = scmp.ne.s32.totalorder %s180, %s194
    %p196 = scmp.eq.s32.totalorder %s21, 0
    %p197 = por %p195, %p196
    %s198 = ssub.s32 %s22, %s34
    %s199 = ssub.s32 %s23, %s30
    %s200 = sor.u32 %s198, %s199
    %p201 = scmp.eq.s32.totalorder %s200, 0
    %s203 = sadd.s32 %s202, 1
    %s204 = scalar_select %p201, %s202, %s203
    %p207 = pneg %p201
    %p208 = scmp.eq.s32.totalorder %s15, 3
    %p209 = por %p207, %p208
    %p210 = scmp.ne.s32.totalorder %s202, %s205
    %p211 = scmp.eq.s32.totalorder %s15, 0
    %p212 = por %p210, %p211
    %p213 = scmp.ne.s32.totalorder %s202, %s205
    %p214 = scmp.eq.s32.totalorder %s20, 3
    %p215 = por %p213, %p214
    %p216 = scmp.ne.s32.totalorder %s205, %s206
    %p217 = scmp.eq.s32.totalorder %s20, 0
    %p218 = por %p216, %p217
    %p219 = scmp.ne.s32.totalorder %s205, %s206
    %p220 = scmp.eq.s32.totalorder %s21, 3
    %p221 = por %p219, %p220
    %p223 = scmp.ne.s32.totalorder %s206, %s222
    %p224 = scmp.eq.s32.totalorder %s21, 0
    %p225 = por %p223, %p224
    %s226 = ssub.s32 %s22, %s34
    %s227 = ssub.s32 %s23, %s30
    %s228 = sor.u32 %s226, %s227
    %p229 = scmp.eq.s32.totalorder %s228, 0
    %s231 = sadd.s32 %s230, 1
    %s232 = scalar_select %p229, %s230, %s231
    %p235 = pneg %p229
    %p236 = scmp.eq.s32.totalorder %s15, 3
    %p237 = por %p235, %p236
    %p238 = scmp.ne.s32.totalorder %s230, %s233
    %p239 = scmp.eq.s32.totalorder %s15, 0
    %p240 = por %p238, %p239
    %p241 = scmp.ne.s32.totalorder %s230, %s233
    %p242 = scmp.eq.s32.totalorder %s20, 3
    %p243 = por %p241, %p242
    %p244 = scmp.ne.s32.totalorder %s233, %s234
    %p245 = scmp.eq.s32.totalorder %s20, 0
    %p246 = por %p244, %p245
    %p247 = scmp.ne.s32.totalorder %s233, %s234
    %p248 = scmp.eq.s32.totalorder %s21, 3
    %p249 = por %p247, %p248
    %p251 = scmp.ne.s32.totalorder %s234, %s250
    %p252 = scmp.eq.s32.totalorder %s21, 0
    %p253 = por %p251, %p252
    %s254 = ssub.s32 %s22, %s34
    %s255 = ssub.s32 %s23, %s30
    %s256 = sor.u32 %s254, %s255
    %p257 = scmp.eq.s32.totalorder %s256, 0
    %s259 = sadd.s32 %s258, 1
    %s260 = scalar_select %p257, %s258, %s259
    %p263 = pneg %p257
    %p264 = scmp.eq.s32.totalorder %s15, 3
    %p265 = por %p263, %p264
    %p266 = scmp.ne.s32.totalorder %s258, %s261
    %p267 = scmp.eq.s32.totalorder %s15, 0
    %p268 = por %p266, %p267
    %p269 = scmp.ne.s32.totalorder %s258, %s261
    %p270 = scmp.eq.s32.totalorder %s20, 3
    %p271 = por %p269, %p270
    %p272 = scmp.ne.s32.totalorder %s261, %s262
    %p273 = scmp.eq.s32.totalorder %s20, 0
    %p274 = por %p272, %p273
    %p275 = scmp.ne.s32.totalorder %s261, %s262
    %p276 = scmp.eq.s32.totalorder %s21, 3
    %p277 = por %p275, %p276
    %p279 = scmp.ne.s32.totalorder %s262, %s278
    %p280 = scmp.eq.s32.totalorder %s21, 0
    %p281 = por %p279, %p280
    %p282 = scmp.le.s32.totalorder 1, %s15
    %p283 = scmp.lt.s32.totalorder %s15, 5
    %p284 = pnand %p282, %p283
    %p285 = pneg %p284
    // Predicated region
    $region9: #{bottleneck.5} parent=5 // pred_check
      _
    $region10: #{bottleneck.5} parent=5 // pred_check_branch
      %287 = sbr.rel (%p284) target = $region12
    $region11: #{bottleneck.5} parent=5 // pred_region
      %s288 = ssub.s32 %s15, 1
      // Predicated region
      $region13: #{bottleneck.5} parent=11 // pred_check
        %p289 = pneg %p148
      $region14: #{bottleneck.5} parent=11 // pred_check_branch
        %291 = sbr.rel (%p289) target = $region16
      $region15: #{bottleneck.5} parent=11 // pred_region
        _
      $region16: #{bottleneck.5} parent=11 // pred_fallthru
        _
      // Predicated region
      $region17: #{bottleneck.5} parent=11 // pred_check
        %p292 = pneg %p169
      $region18: #{bottleneck.5} parent=11 // pred_check_branch
        %294 = sbr.rel (%p292) target = $region20
      $region19: #{bottleneck.5} parent=11 // pred_region
        _
      $region20: #{bottleneck.5} parent=11 // pred_fallthru
        _
      // Predicated region
      $region21: #{bottleneck.5} parent=11 // pred_check
        %p295 = pneg %p190
      $region22: #{bottleneck.5} parent=11 // pred_check_branch
        %297 = sbr.rel (%p295) target = $region24
      $region23: #{bottleneck.5} parent=11 // pred_region
        _
      $region24: #{bottleneck.5} parent=11 // pred_fallthru
        _
    $region12: #{bottleneck.5} parent=5 // pred_fallthru
      _
    %p298 = scmp.lt.s32.totalorder %s15, 4
    // Predicated region
    $region25: #{bottleneck.5} parent=5 // pred_check
      %p299 = pneg %p298
    $region26: #{bottleneck.5} parent=5 // pred_check_branch
      %301 = sbr.rel (%p299) target = $region28
    $region27: #{bottleneck.5} parent=5 // pred_region
      // Predicated region
      $region29: #{bottleneck.5} parent=27 // pred_check
        %p302 = pneg %p57
      $region30: #{bottleneck.5} parent=27 // pred_check_branch
        %304 = sbr.rel (%p302) target = $region32
      $region31: #{bottleneck.5} parent=27 // pred_region
        %s305 = smul.u32 %s23, 8
        %s306 = ssub.s32 %s305, 1
        %p307 = scmp.gt.s32.totalorder %s306, 0
        %s308 = scalar_select %p307, %s306, 0
        %p309 = scmp.lt.s32.totalorder %s22, 1
        %s310 = scalar_select %p309, %s22, 1
        %p311 = scmp.lt.s32.totalorder %s308, 15
        %s312 = scalar_select %p311, %s308, 15
        %s313 = smul.addr %s312, 2
        %s314 = smul.addr %s310, 32
        %s315 = sadd.s32 %s313, %s314
        %s316 = smul.addr %s315, 4
        %s317 = scalar_lea.vmem %s0, %s316
        %s318 = smul.u32 %s23, 8
        %s319 = ssub.s32 %s318, 1
        %p320 = scmp.gt.s32.totalorder %s319, 0
        %s321 = scalar_select %p320, %s319, 0
      $region32: #{bottleneck.5} parent=27 // pred_fallthru
        _
      // Predicated region
      $region33: #{bottleneck.5} parent=27 // pred_check
        %p322 = pneg %p85
      $region34: #{bottleneck.5} parent=27 // pred_check_branch
        %324 = sbr.rel (%p322) target = $region36
      $region35: #{bottleneck.5} parent=27 // pred_region
        %s325 = smul.u32 8, %s23
        %p326 = scmp.lt.s32.totalorder %s22, 1
        %s327 = scalar_select %p326, %s22, 1
        %p328 = scmp.lt.s32.totalorder %s325, 15
        %s329 = scalar_select %p328, %s325, 15
        %s330 = smul.addr %s329, 2
        %s331 = smul.addr %s327, 32
        %s332 = sadd.s32 %s330, %s331
        %s333 = smul.addr %s332, 4
        %s334 = scalar_lea.vmem %s1, %s333
        %s335 = smul.u32 8, %s23
      $region36: #{bottleneck.5} parent=27 // pred_fallthru
        _
      // Predicated region
      $region37: #{bottleneck.5} parent=27 // pred_check
        %p336 = pneg %p121
      $region38: #{bottleneck.5} parent=27 // pred_check_branch
        %338 = sbr.rel (%p336) target = $region40
      $region39: #{bottleneck.5} parent=27 // pred_region
        %s339 = sadd.s32 %s23, 1
        %s340 = smul.u32 %s339, 8
        %p341 = scmp.lt.s32.totalorder %s340, 15
        %s342 = scalar_select %p341, %s340, 15
        %p343 = scmp.lt.s32.totalorder %s22, 1
        %s344 = scalar_select %p343, %s22, 1
        %p345 = scmp.lt.s32.totalorder %s342, 15
        %s346 = scalar_select %p345, %s342, 15
        %s347 = smul.addr %s346, 2
        %s348 = smul.addr %s344, 32
        %s349 = sadd.s32 %s347, %s348
        %s350 = smul.addr %s349, 4
        %s351 = scalar_lea.vmem %s2, %s350
        %s352 = sadd.s32 %s23, 1
        %s353 = smul.u32 %s352, 8
        %p354 = scmp.lt.s32.totalorder %s353, 15
        %s355 = scalar_select %p354, %s353, 15
      $region40: #{bottleneck.5} parent=27 // pred_fallthru
        _
    $region28: #{bottleneck.5} parent=5 // pred_fallthru
      _
    %p356 = scmp.le.s32.totalorder 1, %s15
    %p357 = scmp.lt.s32.totalorder %s15, 5
    %p358 = pnand %p356, %p357
    %p359 = pneg %p358
    // Predicated region
    $region41: #{bottleneck.5} parent=5 // pred_check
      _
    $region42: #{bottleneck.5} parent=5 // pred_check_branch
      %361 = sbr.rel (%p358) target = $region44
    $region43: #{bottleneck.5} parent=5 // pred_region
      %s362 = ssub.s32 %s15, 1
      %s363 = smul.u32 %s25, 8
      %s364 = ssub.s32 %s363, 1
      %p365 = scmp.gt.s32.totalorder %s364, 0
      %s366 = scalar_select %p365, %s364, 0
      %p367 = scmp.lt.s32.totalorder %s24, 1
      %s368 = scalar_select %p367, %s24, 1
      %p369 = scmp.lt.s32.totalorder %s366, 15
      %s370 = scalar_select %p369, %s366, 15
      %s371 = smul.addr %s370, 2
      %s372 = smul.addr %s368, 32
      %s373 = sadd.s32 %s371, %s372
      %s374 = smul.addr %s373, 4
      %s375 = scalar_lea.vmem %s0, %s374
      %p376 = pneg %p63
      %p377 = pneg %p60
      %s378 = smul.u32 8, %s25
      %p379 = scmp.lt.s32.totalorder %s24, 1
      %s380 = scalar_select %p379, %s24, 1
      %p381 = scmp.lt.s32.totalorder %s378, 15
      %s382 = scalar_select %p381, %s378, 15
      %s383 = smul.addr %s382, 2
      %s384 = smul.addr %s380, 32
      %s385 = sadd.s32 %s383, %s384
      %s386 = smul.addr %s385, 4
      %s387 = scalar_lea.vmem %s1, %s386
      %p388 = pneg %p91
      %p389 = pneg %p88
      %s390 = sadd.s32 %s25, 1
      %s391 = smul.u32 %s390, 8
      %p392 = scmp.lt.s32.totalorder %s391, 15
      %s393 = scalar_select %p392, %s391, 15
      %p394 = scmp.lt.s32.totalorder %s24, 1
      %s395 = scalar_select %p394, %s24, 1
      %p396 = scmp.lt.s32.totalorder %s393, 15
      %s397 = scalar_select %p396, %s393, 15
      %s398 = smul.addr %s397, 2
      %s399 = smul.addr %s395, 32
      %s400 = sadd.s32 %s398, %s399
      %s401 = smul.addr %s400, 4
      %s402 = scalar_lea.vmem %s2, %s401
      %p403 = pneg %p127
      %p404 = pneg %p124
      %p405 = pneg %p148
      %p406 = pneg %p145
      %p407 = pneg %p169
      %p408 = pneg %p166
      %p409 = pneg %p190
      %p410 = pneg %p187
      %p411 = pneg %p218
      %p412 = pneg %p215
      %s413 = smul.u32 8, %s25
      %p414 = scmp.lt.s32.totalorder %s24, 1
      %s415 = scalar_select %p414, %s24, 1
      %p416 = scmp.lt.s32.totalorder %s413, 15
      %s417 = scalar_select %p416, %s413, 15
      %s418 = smul.addr %s417, 2
      %s419 = smul.addr %s415, 32
      %s420 = sadd.s32 %s418, %s419
      %s421 = smul.addr %s420, 4
      %s422 = scalar_lea.vmem %s6, %s421
      %p423 = pneg %p246
      %p424 = pneg %p243
      %p425 = scmp.lt.s32.totalorder %s24, 1
      %s426 = scalar_select %p425, %s24, 1
      %p427 = scmp.lt.s32.totalorder %s25, 1
      %s428 = scalar_select %p427, %s25, 1
      %s429 = smul.addr %s426, 2
      %s430 = sadd.s32 %s428, %s429
      %s431 = scalar_lea.vmem %s7, %s430
      %p432 = pneg %p274
      %p433 = pneg %p271
      %p434 = scmp.lt.s32.totalorder %s24, 1
      %s435 = scalar_select %p434, %s24, 1
      %p436 = scmp.lt.s32.totalorder %s25, 1
      %s437 = scalar_select %p436, %s25, 1
      %s438 = smul.addr %s435, 2
      %s439 = sadd.s32 %s437, %s438
      %s440 = scalar_lea.vmem %s8, %s439
      %s441 = smul.u32 %s25, 8
      %s442 = ssub.s32 %s441, 1
      %p443 = scmp.gt.s32.totalorder %s442, 0
      %s444 = scalar_select %p443, %s442, 0
      %p445 = scmp.lt.s32.totalorder %s24, 1
      %s446 = scalar_select %p445, %s24, 1
      %p447 = scmp.lt.s32.totalorder %s444, 15
      %s448 = scalar_select %p447, %s444, 15
      %s449 = smul.addr %s448, 2
      %s450 = smul.addr %s446, 32
      %s451 = sadd.s32 %s449, %s450
      %s452 = smul.addr %s451, 4
      %s453 = scalar_lea.vmem %s0, %s452
      %s454 = smul.u32 %s25, 8
      %s455 = ssub.s32 %s454, 1
      %p456 = scmp.gt.s32.totalorder %s455, 0
      %s457 = scalar_select %p456, %s455, 0
      %s458 = smul.u32 8, %s25
      %p459 = scmp.lt.s32.totalorder %s24, 1
      %s460 = scalar_select %p459, %s24, 1
      %p461 = scmp.lt.s32.totalorder %s458, 15
      %s462 = scalar_select %p461, %s458, 15
      %s463 = smul.addr %s462, 2
      %s464 = smul.addr %s460, 32
      %s465 = sadd.s32 %s463, %s464
      %s466 = smul.addr %s465, 4
      %s467 = scalar_lea.vmem %s1, %s466
      %s468 = smul.u32 8, %s25
      %s469 = sadd.s32 %s25, 1
      %s470 = smul.u32 %s469, 8
      %p471 = scmp.lt.s32.totalorder %s470, 15
      %s472 = scalar_select %p471, %s470, 15
      %p473 = scmp.lt.s32.totalorder %s24, 1
      %s474 = scalar_select %p473, %s24, 1
      %p475 = scmp.lt.s32.totalorder %s472, 15
      %s476 = scalar_select %p475, %s472, 15
      %s477 = smul.addr %s476, 2
      %s478 = smul.addr %s474, 32
      %s479 = sadd.s32 %s477, %s478
      %s480 = smul.addr %s479, 4
      %s481 = scalar_lea.vmem %s2, %s480
      %s482 = sadd.s32 %s25, 1
      %s483 = smul.u32 %s482, 8
      %p484 = scmp.lt.s32.totalorder %s483, 15
      %s485 = scalar_select %p484, %s483, 15
      %s486 = smul.u32 8, %s25
      %p487 = scmp.lt.s32.totalorder %s24, 1
      %s488 = scalar_select %p487, %s24, 1
      %p489 = scmp.lt.s32.totalorder %s486, 15
      %s490 = scalar_select %p489, %s486, 15
      %s491 = smul.addr %s490, 2
      %s492 = smul.addr %s488, 32
      %s493 = sadd.s32 %s491, %s492
      %s494 = smul.addr %s493, 4
      %s495 = scalar_lea.vmem %s6, %s494
      %s496 = smul.u32 8, %s25
      %p497 = scmp.lt.s32.totalorder %s24, 1
      %s498 = scalar_select %p497, %s24, 1
      %p499 = scmp.lt.s32.totalorder %s25, 1
      %s500 = scalar_select %p499, %s25, 1
      %s501 = smul.addr %s498, 2
      %s502 = sadd.s32 %s500, %s501
      %s503 = scalar_lea.vmem %s7, %s502
      %p504 = scmp.lt.s32.totalorder %s24, 1
      %s505 = scalar_select %p504, %s24, 1
      %p506 = scmp.lt.s32.totalorder %s25, 1
      %s507 = scalar_select %p506, %s25, 1
      %s508 = smul.addr %s505, 2
      %s509 = sadd.s32 %s507, %s508
      %s510 = scalar_lea.vmem %s8, %s509
      %v512 = vld [vmem:[%s4] sm:$0x1]
      %v513 = vld [vmem:[%s5] sm:$0x1]
      %p514 = scmp.gt.s32.totalorder %s25, 0
      %v515 = vld [vmem:[%s453] sm:$0xf]
      %v516 = vld [vmem:[%s453 + $0x4] sm:$0xf]
      %v517 = vunpack.c.l.bf16 %v515
      %v518 = vunpack.c.l.bf16 %v516
      %v520 = vlaneseq
      %v521 = vshrl.u32 %v520, 7
      %v522 = vsub.s32 0, %v521
      %v523 = vrot.slane %v512, %v522
      %v525 = vmul.f32 %v517, %v523
      %v526 = vmul.f32 %v518, %v523
      %v528 = vlaneseq
      %v529 = vshrl.u32 %v528, 7
      %v530 = vsub.s32 0, %v529
      %v531 = vrot.slane %v513, %v530
      %v533 = vadd.f32 %v525, %v531
      %v534 = vadd.f32 %v526, %v531
      %v535 = vmax.f32 %v533, 0.0
      %v536 = vmax.f32 %v534, 0.0
      %v537 = vpack.c.bf16 %v536, %v535
      %s538 = scalar_select %p514, 1, 0
      %v539 = vstv %s538
      %vm540 = vcmp.eq.s32.totalorder %v539, 1
      %v541 = vsel %vm540, %v537, 0
      %p542 = scmp.lt.s32.totalorder %s25, 1
      %v543 = vld [vmem:[%s481] sm:$0xf]
      %v544 = vld [vmem:[%s481 + $0x4] sm:$0xf]
      %v545 = vunpack.c.l.bf16 %v543
      %v546 = vunpack.c.l.bf16 %v544
      %v547 = vmul.f32 %v545, %v523
      %v548 = vmul.f32 %v546, %v523
      %v549 = vadd.f32 %v547, %v531
      %v550 = vadd.f32 %v548, %v531
      %v551 = vmax.f32 %v549, 0.0
      %v552 = vmax.f32 %v550, 0.0
      %v553 = vpack.c.bf16 %v552, %v551
      %s554 = scalar_select %p542, 1, 0
      %v555 = vstv %s554
      %vm556 = vcmp.eq.s32.totalorder %v555, 1
      %v557 = vsel %vm556, %v553, 0
      %v558 = vld [vmem:[%s467] sm:$0xf]
      %v559 = vld [vmem:[%s467 + $0x4] sm:$0xf]
      %v560 = vld [vmem:[%s467 + $0x8] sm:$0xf]
      %v561 = vld [vmem:[%s467 + $0xc] sm:$0xf]
      %v562 = vld [vmem:[%s467 + $0x10] sm:$0xf]
      %v563 = vld [vmem:[%s467 + $0x14] sm:$0xf]
      %v564 = vld [vmem:[%s467 + $0x18] sm:$0xf]
      %v565 = vld [vmem:[%s467 + $0x1c] sm:$0xf]
      %v566 = vld [vmem:[%s467 + $0x20] sm:$0xf]
      %v567 = vld [vmem:[%s467 + $0x24] sm:$0xf]
      %v568 = vld [vmem:[%s467 + $0x28] sm:$0xf]
      %v569 = vld [vmem:[%s467 + $0x2c] sm:$0xf]
      %v570 = vld [vmem:[%s467 + $0x30] sm:$0xf]
      %v571 = vld [vmem:[%s467 + $0x34] sm:$0xf]
      %v572 = vld [vmem:[%s467 + $0x38] sm:$0xf]
      %v573 = vld [vmem:[%s467 + $0x3c] sm:$0xf]
      %v574 = vunpack.c.l.bf16 %v558
      %v575 = vunpack.c.l.bf16 %v559
      %v576 = vunpack.c.l.bf16 %v560
      %v577 = vunpack.c.l.bf16 %v561
      %v578 = vunpack.c.l.bf16 %v562
      %v579 = vunpack.c.l.bf16 %v563
      %v580 = vunpack.c.l.bf16 %v564
      %v581 = vunpack.c.l.bf16 %v565
      %v582 = vunpack.c.l.bf16 %v566
      %v583 = vunpack.c.l.bf16 %v567
      %v584 = vunpack.c.l.bf16 %v568
      %v585 = vunpack.c.l.bf16 %v569
      %v586 = vunpack.c.l.bf16 %v570
      %v587 = vunpack.c.l.bf16 %v571
      %v588 = vunpack.c.l.bf16 %v572
      %v589 = vunpack.c.l.bf16 %v573
      %v590 = vmul.f32 %v574, %v523
      %v591 = vmul.f32 %v575, %v523
      %v592 = vmul.f32 %v576, %v523
      %v593 = vmul.f32 %v577, %v523
      %v594 = vmul.f32 %v578, %v523
      %v595 = vmul.f32 %v579, %v523
      %v596 = vmul.f32 %v580, %v523
      %v597 = vmul.f32 %v581, %v523
      %v598 = vmul.f32 %v582, %v523
      %v599 = vmul.f32 %v583, %v523
      %v600 = vmul.f32 %v584, %v523
      %v601 = vmul.f32 %v585, %v523
      %v602 = vmul.f32 %v586, %v523
      %v603 = vmul.f32 %v587, %v523
      %v604 = vmul.f32 %v588, %v523
      %v605 = vmul.f32 %v589, %v523
      %v606 = vadd.f32 %v590, %v531
      %v607 = vadd.f32 %v591, %v531
      %v608 = vadd.f32 %v592, %v531
      %v609 = vadd.f32 %v593, %v531
      %v610 = vadd.f32 %v594, %v531
      %v611 = vadd.f32 %v595, %v531
      %v612 = vadd.f32 %v596, %v531
      %v613 = vadd.f32 %v597, %v531
      %v614 = vadd.f32 %v598, %v531
      %v615 = vadd.f32 %v599, %v531
      %v616 = vadd.f32 %v600, %v531
      %v617 = vadd.f32 %v601, %v531
      %v618 = vadd.f32 %v602, %v531
      %v619 = vadd.f32 %v603, %v531
      %v620 = vadd.f32 %v604, %v531
      %v621 = vadd.f32 %v605, %v531
      %v622 = vmax.f32 %v606, 0.0
      %v623 = vmax.f32 %v607, 0.0
      %v624 = vmax.f32 %v608, 0.0
      %v625 = vmax.f32 %v609, 0.0
      %v626 = vmax.f32 %v610, 0.0
      %v627 = vmax.f32 %v611, 0.0
      %v628 = vmax.f32 %v612, 0.0
      %v629 = vmax.f32 %v613, 0.0
      %v630 = vmax.f32 %v614, 0.0
      %v631 = vmax.f32 %v615, 0.0
      %v632 = vmax.f32 %v616, 0.0
      %v633 = vmax.f32 %v617, 0.0
      %v634 = vmax.f32 %v618, 0.0
      %v635 = vmax.f32 %v619, 0.0
      %v636 = vmax.f32 %v620, 0.0
      %v637 = vmax.f32 %v621, 0.0
      %v638 = vpack.c.bf16 %v623, %v622
      %v639 = vpack.c.bf16 %v625, %v624
      %v640 = vpack.c.bf16 %v627, %v626
      %v641 = vpack.c.bf16 %v629, %v628
      %v642 = vpack.c.bf16 %v631, %v630
      %v643 = vpack.c.bf16 %v633, %v632
      %v644 = vpack.c.bf16 %v635, %v634
      %v645 = vpack.c.bf16 %v637, %v636
      %v647 = vshrl.u32 %v541, 16
      %v649 = vrot.slane %v647, 7
      %v650 = vshll.u32 %v541, 16
      %v652 = vor.u32 %v649, %v650
      %v654 = vshrl.u32 %v638, 16
      %v656 = vrot.slane %v654, 7
      %v657 = vshll.u32 %v638, 16
      %v659 = vor.u32 %v656, %v657
      %v661 = vshrl.u32 %v639, 16
      %v663 = vrot.slane %v661, 7
      %v664 = vshll.u32 %v639, 16
      %v666 = vor.u32 %v663, %v664
      %v668 = vshrl.u32 %v640, 16
      %v670 = vrot.slane %v668, 7
      %v671 = vshll.u32 %v640, 16
      %v673 = vor.u32 %v670, %v671
      %v675 = vshrl.u32 %v641, 16
      %v677 = vrot.slane %v675, 7
      %v678 = vshll.u32 %v641, 16
      %v680 = vor.u32 %v677, %v678
      %v682 = vshrl.u32 %v642, 16
      %v684 = vrot.slane %v682, 7
      %v685 = vshll.u32 %v642, 16
      %v687 = vor.u32 %v684, %v685
      %v689 = vshrl.u32 %v643, 16
      %v691 = vrot.slane %v689, 7
      %v692 = vshll.u32 %v643, 16
      %v694 = vor.u32 %v691, %v692
      %v696 = vshrl.u32 %v644, 16
      %v698 = vrot.slane %v696, 7
      %v699 = vshll.u32 %v644, 16
      %v701 = vor.u32 %v698, %v699
      %v703 = vshrl.u32 %v645, 16
      %v705 = vrot.slane %v703, 7
      %v706 = vshll.u32 %v645, 16
      %v708 = vor.u32 %v705, %v706
      %v710 = vshrl.u32 %v557, 16
      %v712 = vrot.slane %v710, 7
      %v713 = vshll.u32 %v557, 16
      %v715 = vor.u32 %v712, %v713
      %vm736 = vcmask 1040384
      %vm737 = vsmask.f32 256
      %vm738 = vmand %vm736, %vm737
      %v739 = vsel %vm738, 0, %v652
      %v740 = vsel %vm738, 0, %v659
      %v741 = vsel %vm738, 0, %v666
      %v742 = vsel %vm738, 0, %v673
      %v743 = vsel %vm738, 0, %v680
      %v744 = vsel %vm738, 0, %v687
      %v745 = vsel %vm738, 0, %v694
      %v746 = vsel %vm738, 0, %v701
      %v747 = vsel %vm738, 0, %v708
      %v748 = vsel %vm738, 0, %v715
      %v749 = vsel %vm738, %v649, 0
      %v750 = vsel %vm738, %v656, 0
      %v751 = vsel %vm738, %v663, 0
      %v752 = vsel %vm738, %v670, 0
      %v753 = vsel %vm738, %v677, 0
      %v754 = vsel %vm738, %v684, 0
      %v755 = vsel %vm738, %v691, 0
      %v756 = vsel %vm738, %v698, 0
      %v757 = vsel %vm738, %v705, 0
      %v758 = vsel %vm738, %v712, 0
      %vm759 = vsmask.f32 7424
      %v761 = vshrl.u32 %v739, 16
      %v763 = vshll.u32 %v739, 16
      %v765 = vrot.slane %v763, 1
      %v766 = vor.u32 %v761, %v765
      %v768 = vshll.u32 %v749, 16
      %v770 = vrot.slane %v768, 1
      %v771 = vsel %vm759, %v766, %v770
      %v773 = vshrl.u32 %v740, 16
      %v775 = vshll.u32 %v740, 16
      %v777 = vrot.slane %v775, 1
      %v778 = vor.u32 %v773, %v777
      %v780 = vshll.u32 %v750, 16
      %v782 = vrot.slane %v780, 1
      %v783 = vsel %vm759, %v778, %v782
      %v785 = vshrl.u32 %v741, 16
      %v787 = vshll.u32 %v741, 16
      %v789 = vrot.slane %v787, 1
      %v790 = vor.u32 %v785, %v789
      %v792 = vshll.u32 %v751, 16
      %v794 = vrot.slane %v792, 1
      %v795 = vsel %vm759, %v790, %v794
      %v797 = vshrl.u32 %v742, 16
      %v799 = vshll.u32 %v742, 16
      %v801 = vrot.slane %v799, 1
      %v802 = vor.u32 %v797, %v801
      %v804 = vshll.u32 %v752, 16
      %v806 = vrot.slane %v804, 1
      %v807 = vsel %vm759, %v802, %v806
      %v809 = vshrl.u32 %v743, 16
      %v811 = vshll.u32 %v743, 16
      %v813 = vrot.slane %v811, 1
      %v814 = vor.u32 %v809, %v813
      %v816 = vshll.u32 %v753, 16
      %v818 = vrot.slane %v816, 1
      %v819 = vsel %vm759, %v814, %v818
      %v821 = vshrl.u32 %v744, 16
      %v823 = vshll.u32 %v744, 16
      %v825 = vrot.slane %v823, 1
      %v826 = vor.u32 %v821, %v825
      %v828 = vshll.u32 %v754, 16
      %v830 = vrot.slane %v828, 1
      %v831 = vsel %vm759, %v826, %v830
      %v833 = vshrl.u32 %v745, 16
      %v835 = vshll.u32 %v745, 16
      %v837 = vrot.slane %v835, 1
      %v838 = vor.u32 %v833, %v837
      %v840 = vshll.u32 %v755, 16
      %v842 = vrot.slane %v840, 1
      %v843 = vsel %vm759, %v838, %v842
      %v845 = vshrl.u32 %v746, 16
      %v847 = vshll.u32 %v746, 16
      %v849 = vrot.slane %v847, 1
      %v850 = vor.u32 %v845, %v849
      %v852 = vshll.u32 %v756, 16
      %v854 = vrot.slane %v852, 1
      %v855 = vsel %vm759, %v850, %v854
      %vm872 = vcmask 1046528
      %v873 = vrot.slane %v739, 1
      %v874 = vrot.slane %v749, 1
      %v875 = vsel %vm872, %v873, %v874
      %v876 = vrot.slane %v740, 1
      %v877 = vrot.slane %v750, 1
      %v878 = vsel %vm872, %v876, %v877
      %v879 = vrot.slane %v741, 1
      %v880 = vrot.slane %v751, 1
      %v881 = vsel %vm872, %v879, %v880
      %v882 = vrot.slane %v742, 1
      %v883 = vrot.slane %v752, 1
      %v884 = vsel %vm872, %v882, %v883
      %v885 = vrot.slane %v743, 1
      %v886 = vrot.slane %v753, 1
      %v887 = vsel %vm872, %v885, %v886
      %v888 = vrot.slane %v744, 1
      %v889 = vrot.slane %v754, 1
      %v890 = vsel %vm872, %v888, %v889
      %v891 = vrot.slane %v745, 1
      %v892 = vrot.slane %v755, 1
      %v893 = vsel %vm872, %v891, %v892
      %v894 = vrot.slane %v746, 1
      %v895 = vrot.slane %v756, 1
      %v896 = vsel %vm872, %v894, %v895
      %v898 = vshrl.u32 %v747, 16
      %v900 = vshll.u32 %v747, 16
      %v902 = vrot.slane %v900, 1
      %v903 = vor.u32 %v898, %v902
      %v905 = vshll.u32 %v757, 16
      %v907 = vrot.slane %v905, 1
      %v908 = vsel %vm759, %v903, %v907
      %v911 = vrot.slane %v747, 1
      %v912 = vrot.slane %v757, 1
      %v913 = vsel %vm872, %v911, %v912
      %v915 = vshrl.u32 %v748, 16
      %v917 = vshll.u32 %v748, 16
      %v919 = vrot.slane %v917, 1
      %v920 = vor.u32 %v915, %v919
      %v922 = vshll.u32 %v758, 16
      %v924 = vrot.slane %v922, 1
      %v925 = vsel %vm759, %v920, %v924
      %v928 = vrot.slane %v748, 1
      %v929 = vrot.slane %v758, 1
      %v930 = vsel %vm872, %v928, %v929
      %v931 = vld [vmem:[%s3] sm:$0xf]
      %v932 = vld [vmem:[%s3 + $0x4] sm:$0xf]
      %vm933 = vcmask 64512
      %v935 = vsel %vm933, %v771, 0
      %v938 = vsel %vm933, %v783, 0
      %v941 = vsel %vm933, %v795, 0
      %v944 = vsel %vm933, %v807, 0
      %v947 = vsel %vm933, %v819, 0
      %v950 = vsel %vm933, %v831, 0
      %v953 = vsel %vm933, %v843, 0
      %v956 = vsel %vm933, %v855, 0
      %vm958 = vcmask 1043456
      %v960 = vsel %vm958, %v932, 0
      %962 = vmatprep.subr.bf16.mxu0 0
      %963 = vmatpush1.bf16.msra.mxu0 0
      %964 = vmatprep.subr.bf16.mxu0 0
      %965 = vmatpush1.bf16.msra.mxu0 0
      %966 = vmatprep.subr.bf16.mxu0 0
      %967 = vmatpush1.bf16.msra.mxu0 0
      %968 = vmatprep.subr.bf16.mxu0 0
      %969 = vmatpush1.bf16.msra.mxu0 0
      %970 = vmatprep.subr.bf16.mxu0 0
      %971 = vmatpush1.bf16.msra.mxu0 0
      %972 = vmatprep.subr.bf16.mxu0 0
      %973 = vmatpush1.bf16.msra.mxu0 0
      %974 = vmatprep.subr.bf16.mxu0 0
      %975 = vmatpush1.bf16.msra.mxu0 0
      %976 = vmatprep.subr.bf16.mxu0 0
      %977 = vmatpush1.bf16.msra.mxu0 %v960
      %978 = vmatprep.subr.bf16.mxu0 0
      %979 = vmatpush2.bf16.msra.mxu0 0
      %980 = vmatprep.subr.bf16.mxu0 0
      %981 = vmatpush2.bf16.msra.mxu0 0
      %982 = vmatprep.subr.bf16.mxu0 0
      %983 = vmatpush2.bf16.msra.mxu0 0
      %984 = vmatprep.subr.bf16.mxu0 0
      %985 = vmatpush2.bf16.msra.mxu0 0
      %986 = vmatprep.subr.bf16.mxu0 0
      %987 = vmatpush2.bf16.msra.mxu0 0
      %988 = vmatprep.subr.bf16.mxu0 0
      %989 = vmatpush2.bf16.msra.mxu0 0
      %990 = vmatprep.subr.bf16.mxu0 0
      %991 = vmatpush2.bf16.msra.mxu0 0
      %992 = vmatprep.subr.bf16.mxu0 0
      %993 = vmatpush2.bf16.msra.mxu0 0
      %994 = vmatprep.mubr.bf16.mxu0 0
      %995 = vmatmul.mubr.bf16.gmra.mxu0 %v935
      %v996 = vpop.f32.mrf.mxu0
      %v997 = vadd.f32 0.0, %v996
      %v998 = vpop.f32.mrf.mxu0
      %v999 = vpop.f32.mrf.mxu0
      %v1000 = vadd.f32 0.0, %v999
      %v1001 = vpop.f32.mrf.mxu0
      %1002 = vmatprep.mubr.bf16.mxu0 0
      %1003 = vmatmul.mubr.bf16.gmra.mxu0 %v938
      %v1004 = vpop.f32.mrf.mxu0
      %v1005 = vadd.f32 0.0, %v1004
      %v1006 = vpop.f32.mrf.mxu0
      %v1007 = vpop.f32.mrf.mxu0
      %v1008 = vadd.f32 0.0, %v1007
      %v1009 = vpop.f32.mrf.mxu0
      %1010 = vmatprep.mubr.bf16.mxu0 0
      %1011 = vmatmul.mubr.bf16.gmra.mxu0 %v941
      %v1012 = vpop.f32.mrf.mxu0
      %v1013 = vadd.f32 0.0, %v1012
      %v1014 = vpop.f32.mrf.mxu0
      %v1015 = vpop.f32.mrf.mxu0
      %v1016 = vadd.f32 0.0, %v1015
      %v1017 = vpop.f32.mrf.mxu0
      %1018 = vmatprep.mubr.bf16.mxu0 0
      %1019 = vmatmul.mubr.bf16.gmra.mxu0 %v944
      %v1020 = vpop.f32.mrf.mxu0
      %v1021 = vadd.f32 0.0, %v1020
      %v1022 = vpop.f32.mrf.mxu0
      %v1023 = vpop.f32.mrf.mxu0
      %v1024 = vadd.f32 0.0, %v1023
      %v1025 = vpop.f32.mrf.mxu0
      %1026 = vmatprep.mubr.bf16.mxu0 0
      %1027 = vmatmul.mubr.bf16.gmra.mxu0 %v947
      %v1028 = vpop.f32.mrf.mxu0
      %v1029 = vadd.f32 0.0, %v1028
      %v1030 = vpop.f32.mrf.mxu0
      %v1031 = vpop.f32.mrf.mxu0
      %v1032 = vadd.f32 0.0, %v1031
      %v1033 = vpop.f32.mrf.mxu0
      %1034 = vmatprep.mubr.bf16.mxu0 0
      %1035 = vmatmul.mubr.bf16.gmra.mxu0 %v950
      %v1036 = vpop.f32.mrf.mxu0
      %v1037 = vadd.f32 0.0, %v1036
      %v1038 = vpop.f32.mrf.mxu0
      %v1039 = vpop.f32.mrf.mxu0
      %v1040 = vadd.f32 0.0, %v1039
      %v1041 = vpop.f32.mrf.mxu0
      %1042 = vmatprep.mubr.bf16.mxu0 0
      %1043 = vmatmul.mubr.bf16.gmra.mxu0 %v953
      %v1044 = vpop.f32.mrf.mxu0
      %v1045 = vadd.f32 0.0, %v1044
      %v1046 = vpop.f32.mrf.mxu0
      %v1047 = vpop.f32.mrf.mxu0
      %v1048 = vadd.f32 0.0, %v1047
      %v1049 = vpop.f32.mrf.mxu0
      %1050 = vmatprep.mubr.bf16.mxu0 0
      %1051 = vmatmul.mubr.bf16.gmra.mxu0 %v956
      %v1052 = vpop.f32.mrf.mxu0
      %v1053 = vadd.f32 0.0, %v1052
      %v1054 = vpop.f32.mrf.mxu0
      %v1055 = vpop.f32.mrf.mxu0
      %v1056 = vadd.f32 0.0, %v1055
      %v1057 = vpop.f32.mrf.mxu0
      %1058 = vdwg.mxu0
      %v1059 = vsel %vm933, %v739, 0
      %v1061 = vsel %vm933, %v740, 0
      %v1063 = vsel %vm933, %v741, 0
      %v1065 = vsel %vm933, %v742, 0
      %v1067 = vsel %vm933, %v743, 0
      %v1069 = vsel %vm933, %v744, 0
      %v1071 = vsel %vm933, %v745, 0
      %v1073 = vsel %vm933, %v746, 0
      %v1076 = vsel %vm958, %v931, 0
      %1078 = vmatprep.subr.bf16.mxu0 0
      %1079 = vmatpush1.bf16.msra.mxu0 0
      %1080 = vmatprep.subr.bf16.mxu0 0
      %1081 = vmatpush1.bf16.msra.mxu0 0
      %1082 = vmatprep.subr.bf16.mxu0 0
      %1083 = vmatpush1.bf16.msra.mxu0 0
      %1084 = vmatprep.subr.bf16.mxu0 0
      %1085 = vmatpush1.bf16.msra.mxu0 0
      %1086 = vmatprep.subr.bf16.mxu0 0
      %1087 = vmatpush1.bf16.msra.mxu0 0
      %1088 = vmatprep.subr.bf16.mxu0 0
      %1089 = vmatpush1.bf16.msra.mxu0 0
      %1090 = vmatprep.subr.bf16.mxu0 0
      %1091 = vmatpush1.bf16.msra.mxu0 0
      %1092 = vmatprep.subr.bf16.mxu0 0
      %1093 = vmatpush1.bf16.msra.mxu0 %v1076
      %1094 = vmatprep.subr.bf16.mxu0 0
      %1095 = vmatpush2.bf16.msra.mxu0 0
      %1096 = vmatprep.subr.bf16.mxu0 0
      %1097 = vmatpush2.bf16.msra.mxu0 0
      %1098 = vmatprep.subr.bf16.mxu0 0
      %1099 = vmatpush2.bf16.msra.mxu0 0
      %1100 = vmatprep.subr.bf16.mxu0 0
      %1101 = vmatpush2.bf16.msra.mxu0 0
      %1102 = vmatprep.subr.bf16.mxu0 0
      %1103 = vmatpush2.bf16.msra.mxu0 0
      %1104 = vmatprep.subr.bf16.mxu0 0
      %1105 = vmatpush2.bf16.msra.mxu0 0
      %1106 = vmatprep.subr.bf16.mxu0 0
      %1107 = vmatpush2.bf16.msra.mxu0 0
      %1108 = vmatprep.subr.bf16.mxu0 0
      %1109 = vmatpush2.bf16.msra.mxu0 0
      %1110 = vmatprep.mubr.bf16.mxu0 0
      %1111 = vmatmul.mubr.bf16.gmra.mxu0 %v1059
      %v1112 = vpop.f32.mrf.mxu0
      %v1113 = vadd.f32 %v997, %v1112
      %v1114 = vpop.f32.mrf.mxu0
      %v1115 = vpop.f32.mrf.mxu0
      %v1116 = vadd.f32 %v1000, %v1115
      %v1117 = vpop.f32.mrf.mxu0
      %1118 = vmatprep.mubr.bf16.mxu0 0
      %1119 = vmatmul.mubr.bf16.gmra.mxu0 %v1061
      %v1120 = vpop.f32.mrf.mxu0
      %v1121 = vadd.f32 %v1005, %v1120
      %v1122 = vpop.f32.mrf.mxu0
      %v1123 = vpop.f32.mrf.mxu0
      %v1124 = vadd.f32 %v1008, %v1123
      %v1125 = vpop.f32.mrf.mxu0
      %1126 = vmatprep.mubr.bf16.mxu0 0
      %1127 = vmatmul.mubr.bf16.gmra.mxu0 %v1063
      %v1128 = vpop.f32.mrf.mxu0
      %v1129 = vadd.f32 %v1013, %v1128
      %v1130 = vpop.f32.mrf.mxu0
      %v1131 = vpop.f32.mrf.mxu0
      %v1132 = vadd.f32 %v1016, %v1131
      %v1133 = vpop.f32.mrf.mxu0
      %1134 = vmatprep.mubr.bf16.mxu0 0
      %1135 = vmatmul.mubr.bf16.gmra.mxu0 %v1065
      %v1136 = vpop.f32.mrf.mxu0
      %v1137 = vadd.f32 %v1021, %v1136
      %v1138 = vpop.f32.mrf.mxu0
      %v1139 = vpop.f32.mrf.mxu0
      %v1140 = vadd.f32 %v1024, %v1139
      %v1141 = vpop.f32.mrf.mxu0
      %1142 = vmatprep.mubr.bf16.mxu0 0
      %1143 = vmatmul.mubr.bf16.gmra.mxu0 %v1067
      %v1144 = vpop.f32.mrf.mxu0
      %v1145 = vadd.f32 %v1029, %v1144
      %v1146 = vpop.f32.mrf.mxu0
      %v1147 = vpop.f32.mrf.mxu0
      %v1148 = vadd.f32 %v1032, %v1147
      %v1149 = vpop.f32.mrf.mxu0
      %1150 = vmatprep.mubr.bf16.mxu0 0
      %1151 = vmatmul.mubr.bf16.gmra.mxu0 %v1069
      %v1152 = vpop.f32.mrf.mxu0
      %v1153 = vadd.f32 %v1037, %v1152
      %v1154 = vpop.f32.mrf.mxu0
      %v1155 = vpop.f32.mrf.mxu0
      %v1156 = vadd.f32 %v1040, %v1155
      %v1157 = vpop.f32.mrf.mxu0
      %1158 = vmatprep.mubr.bf16.mxu0 0
      %1159 = vmatmul.mubr.bf16.gmra.mxu0 %v1071
      %v1160 = vpop.f32.mrf.mxu0
      %v1161 = vadd.f32 %v1045, %v1160
      %v1162 = vpop.f32.mrf.mxu0
      %v1163 = vpop.f32.mrf.mxu0
      %v1164 = vadd.f32 %v1048, %v1163
      %v1165 = vpop.f32.mrf.mxu0
      %1166 = vmatprep.mubr.bf16.mxu0 0
      %1167 = vmatmul.mubr.bf16.gmra.mxu0 %v1073
      %v1168 = vpop.f32.mrf.mxu0
      %v1169 = vadd.f32 %v1053, %v1168
      %v1170 = vpop.f32.mrf.mxu0
      %v1171 = vpop.f32.mrf.mxu0
      %v1172 = vadd.f32 %v1056, %v1171
      %v1173 = vpop.f32.mrf.mxu0
      %1174 = vdwg.mxu0
      %v1175 = vld [vmem:[%s3 + $0x8] sm:$0xf]
      %v1177 = vsel %vm933, %v875, 0
      %v1180 = vsel %vm933, %v878, 0
      %v1183 = vsel %vm933, %v881, 0
      %v1186 = vsel %vm933, %v884, 0
      %v1189 = vsel %vm933, %v887, 0
      %v1192 = vsel %vm933, %v890, 0
      %v1195 = vsel %vm933, %v893, 0
      %v1198 = vsel %vm933, %v896, 0
      %v1201 = vsel %vm958, %v1175, 0
      %1203 = vmatprep.subr.bf16.mxu0 0
      %1204 = vmatpush1.bf16.msra.mxu0 0
      %1205 = vmatprep.subr.bf16.mxu0 0
      %1206 = vmatpush1.bf16.msra.mxu0 0
      %1207 = vmatprep.subr.bf16.mxu0 0
      %1208 = vmatpush1.bf16.msra.mxu0 0
      %1209 = vmatprep.subr.bf16.mxu0 0
      %1210 = vmatpush1.bf16.msra.mxu0 0
      %1211 = vmatprep.subr.bf16.mxu0 0
      %1212 = vmatpush1.bf16.msra.mxu0 0
      %1213 = vmatprep.subr.bf16.mxu0 0
      %1214 = vmatpush1.bf16.msra.mxu0 0
      %1215 = vmatprep.subr.bf16.mxu0 0
      %1216 = vmatpush1.bf16.msra.mxu0 0
      %1217 = vmatprep.subr.bf16.mxu0 0
      %1218 = vmatpush1.bf16.msra.mxu0 %v1201
      %1219 = vmatprep.subr.bf16.mxu0 0
      %1220 = vmatpush2.bf16.msra.mxu0 0
      %1221 = vmatprep.subr.bf16.mxu0 0
      %1222 = vmatpush2.bf16.msra.mxu0 0
      %1223 = vmatprep.subr.bf16.mxu0 0
      %1224 = vmatpush2.bf16.msra.mxu0 0
      %1225 = vmatprep.subr.bf16.mxu0 0
      %1226 = vmatpush2.bf16.msra.mxu0 0
      %1227 = vmatprep.subr.bf16.mxu0 0
      %1228 = vmatpush2.bf16.msra.mxu0 0
      %1229 = vmatprep.subr.bf16.mxu0 0
      %1230 = vmatpush2.bf16.msra.mxu0 0
      %1231 = vmatprep.subr.bf16.mxu0 0
      %1232 = vmatpush2.bf16.msra.mxu0 0
      %1233 = vmatprep.subr.bf16.mxu0 0
      %1234 = vmatpush2.bf16.msra.mxu0 0
      %1235 = vmatprep.mubr.bf16.mxu0 0
      %1236 = vmatmul.mubr.bf16.gmra.mxu0 %v1177
      %v1237 = vpop.f32.mrf.mxu0
      %v1238 = vadd.f32 0.0, %v1237
      %v1239 = vpop.f32.mrf.mxu0
      %v1240 = vpop.f32.mrf.mxu0
      %v1241 = vadd.f32 0.0, %v1240
      %v1242 = vpop.f32.mrf.mxu0
      %1243 = vmatprep.mubr.bf16.mxu0 0
      %1244 = vmatmul.mubr.bf16.gmra.mxu0 %v1180
      %v1245 = vpop.f32.mrf.mxu0
      %v1246 = vadd.f32 0.0, %v1245
      %v1247 = vpop.f32.mrf.mxu0
      %v1248 = vpop.f32.mrf.mxu0
      %v1249 = vadd.f32 0.0, %v1248
      %v1250 = vpop.f32.mrf.mxu0
      %1251 = vmatprep.mubr.bf16.mxu0 0
      %1252 = vmatmul.mubr.bf16.gmra.mxu0 %v1183
      %v1253 = vpop.f32.mrf.mxu0
      %v1254 = vadd.f32 0.0, %v1253
      %v1255 = vpop.f32.mrf.mxu0
      %v1256 = vpop.f32.mrf.mxu0
      %v1257 = vadd.f32 0.0, %v1256
      %v1258 = vpop.f32.mrf.mxu0
      %1259 = vmatprep.mubr.bf16.mxu0 0
      %1260 = vmatmul.mubr.bf16.gmra.mxu0 %v1186
      %v1261 = vpop.f32.mrf.mxu0
      %v1262 = vadd.f32 0.0, %v1261
      %v1263 = vpop.f32.mrf.mxu0
      %v1264 = vpop.f32.mrf.mxu0
      %v1265 = vadd.f32 0.0, %v1264
      %v1266 = vpop.f32.mrf.mxu0
      %1267 = vmatprep.mubr.bf16.mxu0 0
      %1268 = vmatmul.mubr.bf16.gmra.mxu0 %v1189
      %v1269 = vpop.f32.mrf.mxu0
      %v1270 = vadd.f32 0.0, %v1269
      %v1271 = vpop.f32.mrf.mxu0
      %v1272 = vpop.f32.mrf.mxu0
      %v1273 = vadd.f32 0.0, %v1272
      %v1274 = vpop.f32.mrf.mxu0
      %1275 = vmatprep.mubr.bf16.mxu0 0
      %1276 = vmatmul.mubr.bf16.gmra.mxu0 %v1192
      %v1277 = vpop.f32.mrf.mxu0
      %v1278 = vadd.f32 0.0, %v1277
      %v1279 = vpop.f32.mrf.mxu0
      %v1280 = vpop.f32.mrf.mxu0
      %v1281 = vadd.f32 0.0, %v1280
      %v1282 = vpop.f32.mrf.mxu0
      %1283 = vmatprep.mubr.bf16.mxu0 0
      %1284 = vmatmul.mubr.bf16.gmra.mxu0 %v1195
      %v1285 = vpop.f32.mrf.mxu0
      %v1286 = vadd.f32 0.0, %v1285
      %v1287 = vpop.f32.mrf.mxu0
      %v1288 = vpop.f32.mrf.mxu0
      %v1289 = vadd.f32 0.0, %v1288
      %v1290 = vpop.f32.mrf.mxu0
      %1291 = vmatprep.mubr.bf16.mxu0 0
      %1292 = vmatmul.mubr.bf16.gmra.mxu0 %v1198
      %v1293 = vpop.f32.mrf.mxu0
      %v1294 = vadd.f32 0.0, %v1293
      %v1295 = vpop.f32.mrf.mxu0
      %v1296 = vpop.f32.mrf.mxu0
      %v1297 = vadd.f32 0.0, %v1296
      %v1298 = vpop.f32.mrf.mxu0
      %1299 = vdwg.mxu0
      %v1300 = vadd.f32 %v1113, %v1238
      %v1301 = vadd.f32 %v1116, %v1241
      %v1302 = vadd.f32 %v1121, %v1246
      %v1303 = vadd.f32 %v1124, %v1249
      %v1304 = vadd.f32 %v1129, %v1254
      %v1305 = vadd.f32 %v1132, %v1257
      %v1306 = vadd.f32 %v1137, %v1262
      %v1307 = vadd.f32 %v1140, %v1265
      %v1308 = vadd.f32 %v1145, %v1270
      %v1309 = vadd.f32 %v1148, %v1273
      %v1310 = vadd.f32 %v1153, %v1278
      %v1311 = vadd.f32 %v1156, %v1281
      %v1312 = vadd.f32 %v1161, %v1286
      %v1313 = vadd.f32 %v1164, %v1289
      %v1314 = vadd.f32 %v1169, %v1294
      %v1315 = vadd.f32 %v1172, %v1297
      %v1316 = vld [vmem:[%s3 + $0xc] sm:$0xf]
      %v1317 = vsel %vm933, %v747, 0
      %v1320 = vsel %vm958, %v1316, 0
      %1322 = vmatprep.subr.bf16.mxu0 0
      %1323 = vmatpush1.bf16.msra.mxu0 0
      %1324 = vmatprep.subr.bf16.mxu0 0
      %1325 = vmatpush1.bf16.msra.mxu0 0
      %1326 = vmatprep.subr.bf16.mxu0 0
      %1327 = vmatpush1.bf16.msra.mxu0 0
      %1328 = vmatprep.subr.bf16.mxu0 0
      %1329 = vmatpush1.bf16.msra.mxu0 0
      %1330 = vmatprep.subr.bf16.mxu0 0
      %1331 = vmatpush1.bf16.msra.mxu0 0
      %1332 = vmatprep.subr.bf16.mxu0 0
      %1333 = vmatpush1.bf16.msra.mxu0 0
      %1334 = vmatprep.subr.bf16.mxu0 0
      %1335 = vmatpush1.bf16.msra.mxu0 0
      %1336 = vmatprep.subr.bf16.mxu0 0
      %1337 = vmatpush1.bf16.msra.mxu0 %v1320
      %1338 = vmatprep.subr.bf16.mxu0 0
      %1339 = vmatpush2.bf16.msra.mxu0 0
      %1340 = vmatprep.subr.bf16.mxu0 0
      %1341 = vmatpush2.bf16.msra.mxu0 0
      %1342 = vmatprep.subr.bf16.mxu0 0
      %1343 = vmatpush2.bf16.msra.mxu0 0
      %1344 = vmatprep.subr.bf16.mxu0 0
      %1345 = vmatpush2.bf16.msra.mxu0 0
      %1346 = vmatprep.subr.bf16.mxu0 0
      %1347 = vmatpush2.bf16.msra.mxu0 0
      %1348 = vmatprep.subr.bf16.mxu0 0
      %1349 = vmatpush2.bf16.msra.mxu0 0
      %1350 = vmatprep.subr.bf16.mxu0 0
      %1351 = vmatpush2.bf16.msra.mxu0 0
      %1352 = vmatprep.subr.bf16.mxu0 0
      %1353 = vmatpush2.bf16.msra.mxu0 0
      %1354 = vmatprep.mubr.bf16.mxu0 0
      %1355 = vmatmul.mubr.bf16.gmra.mxu0 %v1061
      %v1356 = vpop.f32.mrf.mxu0
      %v1357 = vadd.f32 0.0, %v1356
      %v1358 = vpop.f32.mrf.mxu0
      %v1359 = vpop.f32.mrf.mxu0
      %v1360 = vadd.f32 0.0, %v1359
      %v1361 = vpop.f32.mrf.mxu0
      %1362 = vmatprep.mubr.bf16.mxu0 0
      %1363 = vmatmul.mubr.bf16.gmra.mxu0 %v1063
      %v1364 = vpop.f32.mrf.mxu0
      %v1365 = vadd.f32 0.0, %v1364
      %v1366 = vpop.f32.mrf.mxu0
      %v1367 = vpop.f32.mrf.mxu0
      %v1368 = vadd.f32 0.0, %v1367
      %v1369 = vpop.f32.mrf.mxu0
      %1370 = vmatprep.mubr.bf16.mxu0 0
      %1371 = vmatmul.mubr.bf16.gmra.mxu0 %v1065
      %v1372 = vpop.f32.mrf.mxu0
      %v1373 = vadd.f32 0.0, %v1372
      %v1374 = vpop.f32.mrf.mxu0
      %v1375 = vpop.f32.mrf.mxu0
      %v1376 = vadd.f32 0.0, %v1375
      %v1377 = vpop.f32.mrf.mxu0
      %1378 = vmatprep.mubr.bf16.mxu0 0
      %1379 = vmatmul.mubr.bf16.gmra.mxu0 %v1067
      %v1380 = vpop.f32.mrf.mxu0
      %v1381 = vadd.f32 0.0, %v1380
      %v1382 = vpop.f32.mrf.mxu0
      %v1383 = vpop.f32.mrf.mxu0
      %v1384 = vadd.f32 0.0, %v1383
      %v1385 = vpop.f32.mrf.mxu0
      %1386 = vmatprep.mubr.bf16.mxu0 0
      %1387 = vmatmul.mubr.bf16.gmra.mxu0 %v1069
      %v1388 = vpop.f32.mrf.mxu0
      %v1389 = vadd.f32 0.0, %v1388
      %v1390 = vpop.f32.mrf.mxu0
      %v1391 = vpop.f32.mrf.mxu0
      %v1392 = vadd.f32 0.0, %v1391
      %v1393 = vpop.f32.mrf.mxu0
      %1394 = vmatprep.mubr.bf16.mxu0 0
      %1395 = vmatmul.mubr.bf16.gmra.mxu0 %v1071
      %v1396 = vpop.f32.mrf.mxu0
      %v1397 = vadd.f32 0.0, %v1396
      %v1398 = vpop.f32.mrf.mxu0
      %v1399 = vpop.f32.mrf.mxu0
      %v1400 = vadd.f32 0.0, %v1399
      %v1401 = vpop.f32.mrf.mxu0
      %1402 = vmatprep.mubr.bf16.mxu0 0
      %1403 = vmatmul.mubr.bf16.gmra.mxu0 %v1073
      %v1404 = vpop.f32.mrf.mxu0
      %v1405 = vadd.f32 0.0, %v1404
      %v1406 = vpop.f32.mrf.mxu0
      %v1407 = vpop.f32.mrf.mxu0
      %v1408 = vadd.f32 0.0, %v1407
      %v1409 = vpop.f32.mrf.mxu0
      %1410 = vmatprep.mubr.bf16.mxu0 0
      %1411 = vmatmul.mubr.bf16.gmra.mxu0 %v1317
      %v1412 = vpop.f32.mrf.mxu0
      %v1413 = vadd.f32 0.0, %v1412
      %v1414 = vpop.f32.mrf.mxu0
      %v1415 = vpop.f32.mrf.mxu0
      %v1416 = vadd.f32 0.0, %v1415
      %v1417 = vpop.f32.mrf.mxu0
      %1418 = vdwg.mxu0
      %v1419 = vadd.f32 %v1300, %v1357
      %v1420 = vadd.f32 %v1301, %v1360
      %v1421 = vadd.f32 %v1302, %v1365
      %v1422 = vadd.f32 %v1303, %v1368
      %v1423 = vadd.f32 %v1304, %v1373
      %v1424 = vadd.f32 %v1305, %v1376
      %v1425 = vadd.f32 %v1306, %v1381
      %v1426 = vadd.f32 %v1307, %v1384
      %v1427 = vadd.f32 %v1308, %v1389
      %v1428 = vadd.f32 %v1309, %v1392
      %v1429 = vadd.f32 %v1310, %v1397
      %v1430 = vadd.f32 %v1311, %v1400
      %v1431 = vadd.f32 %v1312, %v1405
      %v1432 = vadd.f32 %v1313, %v1408
      %v1433 = vadd.f32 %v1314, %v1413
      %v1434 = vadd.f32 %v1315, %v1416
      %v1435 = vld [vmem:[%s3 + $0x10] sm:$0xf]
      %v1437 = vsel %vm933, %v908, 0
      %v1440 = vsel %vm958, %v1435, 0
      %1442 = vmatprep.subr.bf16.mxu0 0
      %1443 = vmatpush1.bf16.msra.mxu0 0
      %1444 = vmatprep.subr.bf16.mxu0 0
      %1445 = vmatpush1.bf16.msra.mxu0 0
      %1446 = vmatprep.subr.bf16.mxu0 0
      %1447 = vmatpush1.bf16.msra.mxu0 0
      %1448 = vmatprep.subr.bf16.mxu0 0
      %1449 = vmatpush1.bf16.msra.mxu0 0
      %1450 = vmatprep.subr.bf16.mxu0 0
      %1451 = vmatpush1.bf16.msra.mxu0 0
      %1452 = vmatprep.subr.bf16.mxu0 0
      %1453 = vmatpush1.bf16.msra.mxu0 0
      %1454 = vmatprep.subr.bf16.mxu0 0
      %1455 = vmatpush1.bf16.msra.mxu0 0
      %1456 = vmatprep.subr.bf16.mxu0 0
      %1457 = vmatpush1.bf16.msra.mxu0 %v1440
      %1458 = vmatprep.subr.bf16.mxu0 0
      %1459 = vmatpush2.bf16.msra.mxu0 0
      %1460 = vmatprep.subr.bf16.mxu0 0
      %1461 = vmatpush2.bf16.msra.mxu0 0
      %1462 = vmatprep.subr.bf16.mxu0 0
      %1463 = vmatpush2.bf16.msra.mxu0 0
      %1464 = vmatprep.subr.bf16.mxu0 0
      %1465 = vmatpush2.bf16.msra.mxu0 0
      %1466 = vmatprep.subr.bf16.mxu0 0
      %1467 = vmatpush2.bf16.msra.mxu0 0
      %1468 = vmatprep.subr.bf16.mxu0 0
      %1469 = vmatpush2.bf16.msra.mxu0 0
      %1470 = vmatprep.subr.bf16.mxu0 0
      %1471 = vmatpush2.bf16.msra.mxu0 0
      %1472 = vmatprep.subr.bf16.mxu0 0
      %1473 = vmatpush2.bf16.msra.mxu0 0
      %1474 = vmatprep.mubr.bf16.mxu0 0
      %1475 = vmatmul.mubr.bf16.gmra.mxu0 %v938
      %v1476 = vpop.f32.mrf.mxu0
      %v1477 = vadd.f32 0.0, %v1476
      %v1478 = vpop.f32.mrf.mxu0
      %v1479 = vpop.f32.mrf.mxu0
      %v1480 = vadd.f32 0.0, %v1479
      %v1481 = vpop.f32.mrf.mxu0
      %1482 = vmatprep.mubr.bf16.mxu0 0
      %1483 = vmatmul.mubr.bf16.gmra.mxu0 %v941
      %v1484 = vpop.f32.mrf.mxu0
      %v1485 = vadd.f32 0.0, %v1484
      %v1486 = vpop.f32.mrf.mxu0
      %v1487 = vpop.f32.mrf.mxu0
      %v1488 = vadd.f32 0.0, %v1487
      %v1489 = vpop.f32.mrf.mxu0
      %1490 = vmatprep.mubr.bf16.mxu0 0
      %1491 = vmatmul.mubr.bf16.gmra.mxu0 %v944
      %v1492 = vpop.f32.mrf.mxu0
      %v1493 = vadd.f32 0.0, %v1492
      %v1494 = vpop.f32.mrf.mxu0
      %v1495 = vpop.f32.mrf.mxu0
      %v1496 = vadd.f32 0.0, %v1495
      %v1497 = vpop.f32.mrf.mxu0
      %1498 = vmatprep.mubr.bf16.mxu0 0
      %1499 = vmatmul.mubr.bf16.gmra.mxu0 %v947
      %v1500 = vpop.f32.mrf.mxu0
      %v1501 = vadd.f32 0.0, %v1500
      %v1502 = vpop.f32.mrf.mxu0
      %v1503 = vpop.f32.mrf.mxu0
      %v1504 = vadd.f32 0.0, %v1503
      %v1505 = vpop.f32.mrf.mxu0
      %1506 = vmatprep.mubr.bf16.mxu0 0
      %1507 = vmatmul.mubr.bf16.gmra.mxu0 %v950
      %v1508 = vpop.f32.mrf.mxu0
      %v1509 = vadd.f32 0.0, %v1508
      %v1510 = vpop.f32.mrf.mxu0
      %v1511 = vpop.f32.mrf.mxu0
      %v1512 = vadd.f32 0.0, %v1511
      %v1513 = vpop.f32.mrf.mxu0
      %1514 = vmatprep.mubr.bf16.mxu0 0
      %1515 = vmatmul.mubr.bf16.gmra.mxu0 %v953
      %v1516 = vpop.f32.mrf.mxu0
      %v1517 = vadd.f32 0.0, %v1516
      %v1518 = vpop.f32.mrf.mxu0
      %v1519 = vpop.f32.mrf.mxu0
      %v1520 = vadd.f32 0.0, %v1519
      %v1521 = vpop.f32.mrf.mxu0
      %1522 = vmatprep.mubr.bf16.mxu0 0
      %1523 = vmatmul.mubr.bf16.gmra.mxu0 %v956
      %v1524 = vpop.f32.mrf.mxu0
      %v1525 = vadd.f32 0.0, %v1524
      %v1526 = vpop.f32.mrf.mxu0
      %v1527 = vpop.f32.mrf.mxu0
      %v1528 = vadd.f32 0.0, %v1527
      %v1529 = vpop.f32.mrf.mxu0
      %1530 = vmatprep.mubr.bf16.mxu0 0
      %1531 = vmatmul.mubr.bf16.gmra.mxu0 %v1437
      %v1532 = vpop.f32.mrf.mxu0
      %v1533 = vadd.f32 0.0, %v1532
      %v1534 = vpop.f32.mrf.mxu0
      %v1535 = vpop.f32.mrf.mxu0
      %v1536 = vadd.f32 0.0, %v1535
      %v1537 = vpop.f32.mrf.mxu0
      %1538 = vdwg.mxu0
      %v1539 = vadd.f32 %v1419, %v1477
      %v1540 = vadd.f32 %v1420, %v1480
      %v1541 = vadd.f32 %v1421, %v1485
      %v1542 = vadd.f32 %v1422, %v1488
      %v1543 = vadd.f32 %v1423, %v1493
      %v1544 = vadd.f32 %v1424, %v1496
      %v1545 = vadd.f32 %v1425, %v1501
      %v1546 = vadd.f32 %v1426, %v1504
      %v1547 = vadd.f32 %v1427, %v1509
      %v1548 = vadd.f32 %v1428, %v1512
      %v1549 = vadd.f32 %v1429, %v1517
      %v1550 = vadd.f32 %v1430, %v1520
      %v1551 = vadd.f32 %v1431, %v1525
      %v1552 = vadd.f32 %v1432, %v1528
      %v1553 = vadd.f32 %v1433, %v1533
      %v1554 = vadd.f32 %v1434, %v1536
      %v1555 = vld [vmem:[%s3 + $0x14] sm:$0xf]
      %v1557 = vsel %vm933, %v913, 0
      %v1560 = vsel %vm958, %v1555, 0
      %1562 = vmatprep.subr.bf16.mxu0 0
      %1563 = vmatpush1.bf16.msra.mxu0 0
      %1564 = vmatprep.subr.bf16.mxu0 0
      %1565 = vmatpush1.bf16.msra.mxu0 0
      %1566 = vmatprep.subr.bf16.mxu0 0
      %1567 = vmatpush1.bf16.msra.mxu0 0
      %1568 = vmatprep.subr.bf16.mxu0 0
      %1569 = vmatpush1.bf16.msra.mxu0 0
      %1570 = vmatprep.subr.bf16.mxu0 0
      %1571 = vmatpush1.bf16.msra.mxu0 0
      %1572 = vmatprep.subr.bf16.mxu0 0
      %1573 = vmatpush1.bf16.msra.mxu0 0
      %1574 = vmatprep.subr.bf16.mxu0 0
      %1575 = vmatpush1.bf16.msra.mxu0 0
      %1576 = vmatprep.subr.bf16.mxu0 0
      %1577 = vmatpush1.bf16.msra.mxu0 %v1560
      %1578 = vmatprep.subr.bf16.mxu0 0
      %1579 = vmatpush2.bf16.msra.mxu0 0
      %1580 = vmatprep.subr.bf16.mxu0 0
      %1581 = vmatpush2.bf16.msra.mxu0 0
      %1582 = vmatprep.subr.bf16.mxu0 0
      %1583 = vmatpush2.bf16.msra.mxu0 0
      %1584 = vmatprep.subr.bf16.mxu0 0
      %1585 = vmatpush2.bf16.msra.mxu0 0
      %1586 = vmatprep.subr.bf16.mxu0 0
      %1587 = vmatpush2.bf16.msra.mxu0 0
      %1588 = vmatprep.subr.bf16.mxu0 0
      %1589 = vmatpush2.bf16.msra.mxu0 0
      %1590 = vmatprep.subr.bf16.mxu0 0
      %1591 = vmatpush2.bf16.msra.mxu0 0
      %1592 = vmatprep.subr.bf16.mxu0 0
      %1593 = vmatpush2.bf16.msra.mxu0 0
      %1594 = vmatprep.mubr.bf16.mxu0 0
      %1595 = vmatmul.mubr.bf16.gmra.mxu0 %v1180
      %v1596 = vpop.f32.mrf.mxu0
      %v1597 = vadd.f32 0.0, %v1596
      %v1598 = vpop.f32.mrf.mxu0
      %v1599 = vpop.f32.mrf.mxu0
      %v1600 = vadd.f32 0.0, %v1599
      %v1601 = vpop.f32.mrf.mxu0
      %1602 = vmatprep.mubr.bf16.mxu0 0
      %1603 = vmatmul.mubr.bf16.gmra.mxu0 %v1183
      %v1604 = vpop.f32.mrf.mxu0
      %v1605 = vadd.f32 0.0, %v1604
      %v1606 = vpop.f32.mrf.mxu0
      %v1607 = vpop.f32.mrf.mxu0
      %v1608 = vadd.f32 0.0, %v1607
      %v1609 = vpop.f32.mrf.mxu0
      %1610 = vmatprep.mubr.bf16.mxu0 0
      %1611 = vmatmul.mubr.bf16.gmra.mxu0 %v1186
      %v1612 = vpop.f32.mrf.mxu0
      %v1613 = vadd.f32 0.0, %v1612
      %v1614 = vpop.f32.mrf.mxu0
      %v1615 = vpop.f32.mrf.mxu0
      %v1616 = vadd.f32 0.0, %v1615
      %v1617 = vpop.f32.mrf.mxu0
      %1618 = vmatprep.mubr.bf16.mxu0 0
      %1619 = vmatmul.mubr.bf16.gmra.mxu0 %v1189
      %v1620 = vpop.f32.mrf.mxu0
      %v1621 = vadd.f32 0.0, %v1620
      %v1622 = vpop.f32.mrf.mxu0
      %v1623 = vpop.f32.mrf.mxu0
      %v1624 = vadd.f32 0.0, %v1623
      %v1625 = vpop.f32.mrf.mxu0
      %1626 = vmatprep.mubr.bf16.mxu0 0
      %1627 = vmatmul.mubr.bf16.gmra.mxu0 %v1192
      %v1628 = vpop.f32.mrf.mxu0
      %v1629 = vadd.f32 0.0, %v1628
      %v1630 = vpop.f32.mrf.mxu0
      %v1631 = vpop.f32.mrf.mxu0
      %v1632 = vadd.f32 0.0, %v1631
      %v1633 = vpop.f32.mrf.mxu0
      %1634 = vmatprep.mubr.bf16.mxu0 0
      %1635 = vmatmul.mubr.bf16.gmra.mxu0 %v1195
      %v1636 = vpop.f32.mrf.mxu0
      %v1637 = vadd.f32 0.0, %v1636
      %v1638 = vpop.f32.mrf.mxu0
      %v1639 = vpop.f32.mrf.mxu0
      %v1640 = vadd.f32 0.0, %v1639
      %v1641 = vpop.f32.mrf.mxu0
      %1642 = vmatprep.mubr.bf16.mxu0 0
      %1643 = vmatmul.mubr.bf16.gmra.mxu0 %v1198
      %v1644 = vpop.f32.mrf.mxu0
      %v1645 = vadd.f32 0.0, %v1644
      %v1646 = vpop.f32.mrf.mxu0
      %v1647 = vpop.f32.mrf.mxu0
      %v1648 = vadd.f32 0.0, %v1647
      %v1649 = vpop.f32.mrf.mxu0
      %1650 = vmatprep.mubr.bf16.mxu0 0
      %1651 = vmatmul.mubr.bf16.gmra.mxu0 %v1557
      %v1652 = vpop.f32.mrf.mxu0
      %v1653 = vadd.f32 0.0, %v1652
      %v1654 = vpop.f32.mrf.mxu0
      %v1655 = vpop.f32.mrf.mxu0
      %v1656 = vadd.f32 0.0, %v1655
      %v1657 = vpop.f32.mrf.mxu0
      %1658 = vdwg.mxu0
      %v1659 = vadd.f32 %v1539, %v1597
      %v1660 = vadd.f32 %v1540, %v1600
      %v1661 = vadd.f32 %v1541, %v1605
      %v1662 = vadd.f32 %v1542, %v1608
      %v1663 = vadd.f32 %v1543, %v1613
      %v1664 = vadd.f32 %v1544, %v1616
      %v1665 = vadd.f32 %v1545, %v1621
      %v1666 = vadd.f32 %v1546, %v1624
      %v1667 = vadd.f32 %v1547, %v1629
      %v1668 = vadd.f32 %v1548, %v1632
      %v1669 = vadd.f32 %v1549, %v1637
      %v1670 = vadd.f32 %v1550, %v1640
      %v1671 = vadd.f32 %v1551, %v1645
      %v1672 = vadd.f32 %v1552, %v1648
      %v1673 = vadd.f32 %v1553, %v1653
      %v1674 = vadd.f32 %v1554, %v1656
      %v1675 = vld [vmem:[%s3 + $0x18] sm:$0xf]
      %v1676 = vsel %vm933, %v748, 0
      %v1679 = vsel %vm958, %v1675, 0
      %1681 = vmatprep.subr.bf16.mxu0 0
      %1682 = vmatpush1.bf16.msra.mxu0 0
      %1683 = vmatprep.subr.bf16.mxu0 0
      %1684 = vmatpush1.bf16.msra.mxu0 0
      %1685 = vmatprep.subr.bf16.mxu0 0
      %1686 = vmatpush1.bf16.msra.mxu0 0
      %1687 = vmatprep.subr.bf16.mxu0 0
      %1688 = vmatpush1.bf16.msra.mxu0 0
      %1689 = vmatprep.subr.bf16.mxu0 0
      %1690 = vmatpush1.bf16.msra.mxu0 0
      %1691 = vmatprep.subr.bf16.mxu0 0
      %1692 = vmatpush1.bf16.msra.mxu0 0
      %1693 = vmatprep.subr.bf16.mxu0 0
      %1694 = vmatpush1.bf16.msra.mxu0 0
      %1695 = vmatprep.subr.bf16.mxu0 0
      %1696 = vmatpush1.bf16.msra.mxu0 %v1679
      %1697 = vmatprep.subr.bf16.mxu0 0
      %1698 = vmatpush2.bf16.msra.mxu0 0
      %1699 = vmatprep.subr.bf16.mxu0 0
      %1700 = vmatpush2.bf16.msra.mxu0 0
      %1701 = vmatprep.subr.bf16.mxu0 0
      %1702 = vmatpush2.bf16.msra.mxu0 0
      %1703 = vmatprep.subr.bf16.mxu0 0
      %1704 = vmatpush2.bf16.msra.mxu0 0
      %1705 = vmatprep.subr.bf16.mxu0 0
      %1706 = vmatpush2.bf16.msra.mxu0 0
      %1707 = vmatprep.subr.bf16.mxu0 0
      %1708 = vmatpush2.bf16.msra.mxu0 0
      %1709 = vmatprep.subr.bf16.mxu0 0
      %1710 = vmatpush2.bf16.msra.mxu0 0
      %1711 = vmatprep.subr.bf16.mxu0 0
      %1712 = vmatpush2.bf16.msra.mxu0 0
      %1713 = vmatprep.mubr.bf16.mxu0 0
      %1714 = vmatmul.mubr.bf16.gmra.mxu0 %v1063
      %v1715 = vpop.f32.mrf.mxu0
      %v1716 = vadd.f32 0.0, %v1715
      %v1717 = vpop.f32.mrf.mxu0
      %v1718 = vpop.f32.mrf.mxu0
      %v1719 = vadd.f32 0.0, %v1718
      %v1720 = vpop.f32.mrf.mxu0
      %1721 = vmatprep.mubr.bf16.mxu0 0
      %1722 = vmatmul.mubr.bf16.gmra.mxu0 %v1065
      %v1723 = vpop.f32.mrf.mxu0
      %v1724 = vadd.f32 0.0, %v1723
      %v1725 = vpop.f32.mrf.mxu0
      %v1726 = vpop.f32.mrf.mxu0
      %v1727 = vadd.f32 0.0, %v1726
      %v1728 = vpop.f32.mrf.mxu0
      %1729 = vmatprep.mubr.bf16.mxu0 0
      %1730 = vmatmul.mubr.bf16.gmra.mxu0 %v1067
      %v1731 = vpop.f32.mrf.mxu0
      %v1732 = vadd.f32 0.0, %v1731
      %v1733 = vpop.f32.mrf.mxu0
      %v1734 = vpop.f32.mrf.mxu0
      %v1735 = vadd.f32 0.0, %v1734
      %v1736 = vpop.f32.mrf.mxu0
      %1737 = vmatprep.mubr.bf16.mxu0 0
      %1738 = vmatmul.mubr.bf16.gmra.mxu0 %v1069
      %v1739 = vpop.f32.mrf.mxu0
      %v1740 = vadd.f32 0.0, %v1739
      %v1741 = vpop.f32.mrf.mxu0
      %v1742 = vpop.f32.mrf.mxu0
      %v1743 = vadd.f32 0.0, %v1742
      %v1744 = vpop.f32.mrf.mxu0
      %1745 = vmatprep.mubr.bf16.mxu0 0
      %1746 = vmatmul.mubr.bf16.gmra.mxu0 %v1071
      %v1747 = vpop.f32.mrf.mxu0
      %v1748 = vadd.f32 0.0, %v1747
      %v1749 = vpop.f32.mrf.mxu0
      %v1750 = vpop.f32.mrf.mxu0
      %v1751 = vadd.f32 0.0, %v1750
      %v1752 = vpop.f32.mrf.mxu0
      %1753 = vmatprep.mubr.bf16.mxu0 0
      %1754 = vmatmul.mubr.bf16.gmra.mxu0 %v1073
      %v1755 = vpop.f32.mrf.mxu0
      %v1756 = vadd.f32 0.0, %v1755
      %v1757 = vpop.f32.mrf.mxu0
      %v1758 = vpop.f32.mrf.mxu0
      %v1759 = vadd.f32 0.0, %v1758
      %v1760 = vpop.f32.mrf.mxu0
      %1761 = vmatprep.mubr.bf16.mxu0 0
      %1762 = vmatmul.mubr.bf16.gmra.mxu0 %v1317
      %v1763 = vpop.f32.mrf.mxu0
      %v1764 = vadd.f32 0.0, %v1763
      %v1765 = vpop.f32.mrf.mxu0
      %v1766 = vpop.f32.mrf.mxu0
      %v1767 = vadd.f32 0.0, %v1766
      %v1768 = vpop.f32.mrf.mxu0
      %1769 = vmatprep.mubr.bf16.mxu0 0
      %1770 = vmatmul.mubr.bf16.gmra.mxu0 %v1676
      %v1771 = vpop.f32.mrf.mxu0
      %v1772 = vadd.f32 0.0, %v1771
      %v1773 = vpop.f32.mrf.mxu0
      %v1774 = vpop.f32.mrf.mxu0
      %v1775 = vadd.f32 0.0, %v1774
      %v1776 = vpop.f32.mrf.mxu0
      %1777 = vdwg.mxu0
      %v1778 = vadd.f32 %v1659, %v1716
      %v1779 = vadd.f32 %v1660, %v1719
      %v1780 = vadd.f32 %v1661, %v1724
      %v1781 = vadd.f32 %v1662, %v1727
      %v1782 = vadd.f32 %v1663, %v1732
      %v1783 = vadd.f32 %v1664, %v1735
      %v1784 = vadd.f32 %v1665, %v1740
      %v1785 = vadd.f32 %v1666, %v1743
      %v1786 = vadd.f32 %v1667, %v1748
      %v1787 = vadd.f32 %v1668, %v1751
      %v1788 = vadd.f32 %v1669, %v1756
      %v1789 = vadd.f32 %v1670, %v1759
      %v1790 = vadd.f32 %v1671, %v1764
      %v1791 = vadd.f32 %v1672, %v1767
      %v1792 = vadd.f32 %v1673, %v1772
      %v1793 = vadd.f32 %v1674, %v1775
      %v1794 = vld [vmem:[%s3 + $0x1c] sm:$0xf]
      %v1796 = vsel %vm933, %v925, 0
      %v1799 = vsel %vm958, %v1794, 0
      %1801 = vmatprep.subr.bf16.mxu0 0
      %1802 = vmatpush1.bf16.msra.mxu0 0
      %1803 = vmatprep.subr.bf16.mxu0 0
      %1804 = vmatpush1.bf16.msra.mxu0 0
      %1805 = vmatprep.subr.bf16.mxu0 0
      %1806 = vmatpush1.bf16.msra.mxu0 0
      %1807 = vmatprep.subr.bf16.mxu0 0
      %1808 = vmatpush1.bf16.msra.mxu0 0
      %1809 = vmatprep.subr.bf16.mxu0 0
      %1810 = vmatpush1.bf16.msra.mxu0 0
      %1811 = vmatprep.subr.bf16.mxu0 0
      %1812 = vmatpush1.bf16.msra.mxu0 0
      %1813 = vmatprep.subr.bf16.mxu0 0
      %1814 = vmatpush1.bf16.msra.mxu0 0
      %1815 = vmatprep.subr.bf16.mxu0 0
      %1816 = vmatpush1.bf16.msra.mxu0 %v1799
      %1817 = vmatprep.subr.bf16.mxu0 0
      %1818 = vmatpush2.bf16.msra.mxu0 0
      %1819 = vmatprep.subr.bf16.mxu0 0
      %1820 = vmatpush2.bf16.msra.mxu0 0
      %1821 = vmatprep.subr.bf16.mxu0 0
      %1822 = vmatpush2.bf16.msra.mxu0 0
      %1823 = vmatprep.subr.bf16.mxu0 0
      %1824 = vmatpush2.bf16.msra.mxu0 0
      %1825 = vmatprep.subr.bf16.mxu0 0
      %1826 = vmatpush2.bf16.msra.mxu0 0
      %1827 = vmatprep.subr.bf16.mxu0 0
      %1828 = vmatpush2.bf16.msra.mxu0 0
      %1829 = vmatprep.subr.bf16.mxu0 0
      %1830 = vmatpush2.bf16.msra.mxu0 0
      %1831 = vmatprep.subr.bf16.mxu0 0
      %1832 = vmatpush2.bf16.msra.mxu0 0
      %1833 = vmatprep.mubr.bf16.mxu0 0
      %1834 = vmatmul.mubr.bf16.gmra.mxu0 %v941
      %v1835 = vpop.f32.mrf.mxu0
      %v1836 = vadd.f32 0.0, %v1835
      %v1837 = vpop.f32.mrf.mxu0
      %v1838 = vpop.f32.mrf.mxu0
      %v1839 = vadd.f32 0.0, %v1838
      %v1840 = vpop.f32.mrf.mxu0
      %1841 = vmatprep.mubr.bf16.mxu0 0
      %1842 = vmatmul.mubr.bf16.gmra.mxu0 %v944
      %v1843 = vpop.f32.mrf.mxu0
      %v1844 = vadd.f32 0.0, %v1843
      %v1845 = vpop.f32.mrf.mxu0
      %v1846 = vpop.f32.mrf.mxu0
      %v1847 = vadd.f32 0.0, %v1846
      %v1848 = vpop.f32.mrf.mxu0
      %1849 = vmatprep.mubr.bf16.mxu0 0
      %1850 = vmatmul.mubr.bf16.gmra.mxu0 %v947
      %v1851 = vpop.f32.mrf.mxu0
      %v1852 = vadd.f32 0.0, %v1851
      %v1853 = vpop.f32.mrf.mxu0
      %v1854 = vpop.f32.mrf.mxu0
      %v1855 = vadd.f32 0.0, %v1854
      %v1856 = vpop.f32.mrf.mxu0
      %1857 = vmatprep.mubr.bf16.mxu0 0
      %1858 = vmatmul.mubr.bf16.gmra.mxu0 %v950
      %v1859 = vpop.f32.mrf.mxu0
      %v1860 = vadd.f32 0.0, %v1859
      %v1861 = vpop.f32.mrf.mxu0
      %v1862 = vpop.f32.mrf.mxu0
      %v1863 = vadd.f32 0.0, %v1862
      %v1864 = vpop.f32.mrf.mxu0
      %1865 = vmatprep.mubr.bf16.mxu0 0
      %1866 = vmatmul.mubr.bf16.gmra.mxu0 %v953
      %v1867 = vpop.f32.mrf.mxu0
      %v1868 = vadd.f32 0.0, %v1867
      %v1869 = vpop.f32.mrf.mxu0
      %v1870 = vpop.f32.mrf.mxu0
      %v1871 = vadd.f32 0.0, %v1870
      %v1872 = vpop.f32.mrf.mxu0
      %1873 = vmatprep.mubr.bf16.mxu0 0
      %1874 = vmatmul.mubr.bf16.gmra.mxu0 %v956
      %v1875 = vpop.f32.mrf.mxu0
      %v1876 = vadd.f32 0.0, %v1875
      %v1877 = vpop.f32.mrf.mxu0
      %v1878 = vpop.f32.mrf.mxu0
      %v1879 = vadd.f32 0.0, %v1878
      %v1880 = vpop.f32.mrf.mxu0
      %1881 = vmatprep.mubr.bf16.mxu0 0
      %1882 = vmatmul.mubr.bf16.gmra.mxu0 %v1437
      %v1883 = vpop.f32.mrf.mxu0
      %v1884 = vadd.f32 0.0, %v1883
      %v1885 = vpop.f32.mrf.mxu0
      %v1886 = vpop.f32.mrf.mxu0
      %v1887 = vadd.f32 0.0, %v1886
      %v1888 = vpop.f32.mrf.mxu0
      %1889 = vmatprep.mubr.bf16.mxu0 0
      %1890 = vmatmul.mubr.bf16.gmra.mxu0 %v1796
      %v1891 = vpop.f32.mrf.mxu0
      %v1892 = vadd.f32 0.0, %v1891
      %v1893 = vpop.f32.mrf.mxu0
      %v1894 = vpop.f32.mrf.mxu0
      %v1895 = vadd.f32 0.0, %v1894
      %v1896 = vpop.f32.mrf.mxu0
      %1897 = vdwg.mxu0
      %v1898 = vadd.f32 %v1778, %v1836
      %v1899 = vadd.f32 %v1779, %v1839
      %v1900 = vadd.f32 %v1780, %v1844
      %v1901 = vadd.f32 %v1781, %v1847
      %v1902 = vadd.f32 %v1782, %v1852
      %v1903 = vadd.f32 %v1783, %v1855
      %v1904 = vadd.f32 %v1784, %v1860
      %v1905 = vadd.f32 %v1785, %v1863
      %v1906 = vadd.f32 %v1786, %v1868
      %v1907 = vadd.f32 %v1787, %v1871
      %v1908 = vadd.f32 %v1788, %v1876
      %v1909 = vadd.f32 %v1789, %v1879
      %v1910 = vadd.f32 %v1790, %v1884
      %v1911 = vadd.f32 %v1791, %v1887
      %v1912 = vadd.f32 %v1792, %v1892
      %v1913 = vadd.f32 %v1793, %v1895
      %v1914 = vld [vmem:[%s3 + $0x20] sm:$0xf]
      %v1916 = vsel %vm933, %v930, 0
      %v1919 = vsel %vm958, %v1914, 0
      %1921 = vmatprep.subr.bf16.mxu0 0
      %1922 = vmatpush1.bf16.msra.mxu0 0
      %1923 = vmatprep.subr.bf16.mxu0 0
      %1924 = vmatpush1.bf16.msra.mxu0 0
      %1925 = vmatprep.subr.bf16.mxu0 0
      %1926 = vmatpush1.bf16.msra.mxu0 0
      %1927 = vmatprep.subr.bf16.mxu0 0
      %1928 = vmatpush1.bf16.msra.mxu0 0
      %1929 = vmatprep.subr.bf16.mxu0 0
      %1930 = vmatpush1.bf16.msra.mxu0 0
      %1931 = vmatprep.subr.bf16.mxu0 0
      %1932 = vmatpush1.bf16.msra.mxu0 0
      %1933 = vmatprep.subr.bf16.mxu0 0
      %1934 = vmatpush1.bf16.msra.mxu0 0
      %1935 = vmatprep.subr.bf16.mxu0 0
      %1936 = vmatpush1.bf16.msra.mxu0 %v1919
      %1937 = vmatprep.subr.bf16.mxu0 0
      %1938 = vmatpush2.bf16.msra.mxu0 0
      %1939 = vmatprep.subr.bf16.mxu0 0
      %1940 = vmatpush2.bf16.msra.mxu0 0
      %1941 = vmatprep.subr.bf16.mxu0 0
      %1942 = vmatpush2.bf16.msra.mxu0 0
      %1943 = vmatprep.subr.bf16.mxu0 0
      %1944 = vmatpush2.bf16.msra.mxu0 0
      %1945 = vmatprep.subr.bf16.mxu0 0
      %1946 = vmatpush2.bf16.msra.mxu0 0
      %1947 = vmatprep.subr.bf16.mxu0 0
      %1948 = vmatpush2.bf16.msra.mxu0 0
      %1949 = vmatprep.subr.bf16.mxu0 0
      %1950 = vmatpush2.bf16.msra.mxu0 0
      %1951 = vmatprep.subr.bf16.mxu0 0
      %1952 = vmatpush2.bf16.msra.mxu0 0
      %1953 = vmatprep.mubr.bf16.mxu0 0
      %1954 = vmatmul.mubr.bf16.gmra.mxu0 %v1183
      %v1955 = vpop.f32.mrf.mxu0
      %v1956 = vadd.f32 0.0, %v1955
      %v1957 = vpop.f32.mrf.mxu0
      %v1958 = vpop.f32.mrf.mxu0
      %v1959 = vadd.f32 0.0, %v1958
      %v1960 = vpop.f32.mrf.mxu0
      %1961 = vmatprep.mubr.bf16.mxu0 0
      %1962 = vmatmul.mubr.bf16.gmra.mxu0 %v1186
      %v1963 = vpop.f32.mrf.mxu0
      %v1964 = vadd.f32 0.0, %v1963
      %v1965 = vpop.f32.mrf.mxu0
      %v1966 = vpop.f32.mrf.mxu0
      %v1967 = vadd.f32 0.0, %v1966
      %v1968 = vpop.f32.mrf.mxu0
      %1969 = vmatprep.mubr.bf16.mxu0 0
      %1970 = vmatmul.mubr.bf16.gmra.mxu0 %v1189
      %v1971 = vpop.f32.mrf.mxu0
      %v1972 = vadd.f32 0.0, %v1971
      %v1973 = vpop.f32.mrf.mxu0
      %v1974 = vpop.f32.mrf.mxu0
      %v1975 = vadd.f32 0.0, %v1974
      %v1976 = vpop.f32.mrf.mxu0
      %1977 = vmatprep.mubr.bf16.mxu0 0
      %1978 = vmatmul.mubr.bf16.gmra.mxu0 %v1192
      %v1979 = vpop.f32.mrf.mxu0
      %v1980 = vadd.f32 0.0, %v1979
      %v1981 = vpop.f32.mrf.mxu0
      %v1982 = vpop.f32.mrf.mxu0
      %v1983 = vadd.f32 0.0, %v1982
      %v1984 = vpop.f32.mrf.mxu0
      %1985 = vmatprep.mubr.bf16.mxu0 0
      %1986 = vmatmul.mubr.bf16.gmra.mxu0 %v1195
      %v1987 = vpop.f32.mrf.mxu0
      %v1988 = vadd.f32 0.0, %v1987
      %v1989 = vpop.f32.mrf.mxu0
      %v1990 = vpop.f32.mrf.mxu0
      %v1991 = vadd.f32 0.0, %v1990
      %v1992 = vpop.f32.mrf.mxu0
      %1993 = vmatprep.mubr.bf16.mxu0 0
      %1994 = vmatmul.mubr.bf16.gmra.mxu0 %v1198
      %v1995 = vpop.f32.mrf.mxu0
      %v1996 = vadd.f32 0.0, %v1995
      %v1997 = vpop.f32.mrf.mxu0
      %v1998 = vpop.f32.mrf.mxu0
      %v1999 = vadd.f32 0.0, %v1998
      %v2000 = vpop.f32.mrf.mxu0
      %2001 = vmatprep.mubr.bf16.mxu0 0
      %2002 = vmatmul.mubr.bf16.gmra.mxu0 %v1557
      %v2003 = vpop.f32.mrf.mxu0
      %v2004 = vadd.f32 0.0, %v2003
      %v2005 = vpop.f32.mrf.mxu0
      %v2006 = vpop.f32.mrf.mxu0
      %v2007 = vadd.f32 0.0, %v2006
      %v2008 = vpop.f32.mrf.mxu0
      %2009 = vmatprep.mubr.bf16.mxu0 0
      %2010 = vmatmul.mubr.bf16.gmra.mxu0 %v1916
      %v2011 = vpop.f32.mrf.mxu0
      %v2012 = vadd.f32 0.0, %v2011
      %v2013 = vpop.f32.mrf.mxu0
      %v2014 = vpop.f32.mrf.mxu0
      %v2015 = vadd.f32 0.0, %v2014
      %v2016 = vpop.f32.mrf.mxu0
      %2017 = vdwg.mxu0
      %v2018 = vadd.f32 %v1898, %v1956
      %v2019 = vadd.f32 %v1899, %v1959
      %v2020 = vadd.f32 %v1900, %v1964
      %v2021 = vadd.f32 %v1901, %v1967
      %v2022 = vadd.f32 %v1902, %v1972
      %v2023 = vadd.f32 %v1903, %v1975
      %v2024 = vadd.f32 %v1904, %v1980
      %v2025 = vadd.f32 %v1905, %v1983
      %v2026 = vadd.f32 %v1906, %v1988
      %v2027 = vadd.f32 %v1907, %v1991
      %v2028 = vadd.f32 %v1908, %v1996
      %v2029 = vadd.f32 %v1909, %v1999
      %v2030 = vadd.f32 %v1910, %v2004
      %v2031 = vadd.f32 %v1911, %v2007
      %v2032 = vadd.f32 %v1912, %v2012
      %v2033 = vadd.f32 %v1913, %v2015
      %v2034 = vsel %vm933, %v2018, 0.0
      %v2035 = vsel %vm933, %v2019, 0.0
      %v2036 = vadd.f32 %v2034, %v2035
      %v2037 = vsel %vm933, %v2020, 0.0
      %v2038 = vadd.f32 %v2036, %v2037
      %v2039 = vsel %vm933, %v2021, 0.0
      %v2040 = vadd.f32 %v2038, %v2039
      %v2041 = vsel %vm933, %v2022, 0.0
      %v2042 = vadd.f32 %v2040, %v2041
      %v2043 = vsel %vm933, %v2023, 0.0
      %v2044 = vadd.f32 %v2042, %v2043
      %v2045 = vsel %vm933, %v2024, 0.0
      %v2046 = vadd.f32 %v2044, %v2045
      %v2047 = vsel %vm933, %v2025, 0.0
      %v2048 = vadd.f32 %v2046, %v2047
      %v2049 = vsel %vm933, %v2026, 0.0
      %v2050 = vadd.f32 %v2048, %v2049
      %v2051 = vsel %vm933, %v2027, 0.0
      %v2052 = vadd.f32 %v2050, %v2051
      %v2053 = vsel %vm933, %v2028, 0.0
      %v2054 = vadd.f32 %v2052, %v2053
      %v2055 = vsel %vm933, %v2029, 0.0
      %v2056 = vadd.f32 %v2054, %v2055
      %v2057 = vsel %vm933, %v2030, 0.0
      %v2058 = vadd.f32 %v2056, %v2057
      %v2059 = vsel %vm933, %v2031, 0.0
      %v2060 = vadd.f32 %v2058, %v2059
      %v2061 = vsel %vm933, %v2032, 0.0
      %v2062 = vadd.f32 %v2060, %v2061
      %v2063 = vsel %vm933, %v2033, 0.0
      %v2064 = vadd.f32 %v2062, %v2063
      %v2065 = vrot.slane %v2064, 4
      %v2066 = vadd.f32 %v2064, %v2065
      %v2067 = vrot.slane %v2066, 2
      %v2068 = vadd.f32 %v2066, %v2067
      %v2069 = vrot.slane %v2068, 1
      %v2070 = vadd.f32 %v2068, %v2069
      %vm2071 = vcmask 57344
      %2072 = vst.msk [vmem:[%s503] sm:$0x1] %vm2071, %v2070
      %v2073 = vmul.f32 %v2018, %v2018
      %v2074 = vmul.f32 %v2019, %v2019
      %v2075 = vmul.f32 %v2020, %v2020
      %v2076 = vmul.f32 %v2021, %v2021
      %v2077 = vmul.f32 %v2022, %v2022
      %v2078 = vmul.f32 %v2023, %v2023
      %v2079 = vmul.f32 %v2024, %v2024
      %v2080 = vmul.f32 %v2025, %v2025
      %v2081 = vmul.f32 %v2026, %v2026
      %v2082 = vmul.f32 %v2027, %v2027
      %v2083 = vmul.f32 %v2028, %v2028
      %v2084 = vmul.f32 %v2029, %v2029
      %v2085 = vmul.f32 %v2030, %v2030
      %v2086 = vmul.f32 %v2031, %v2031
      %v2087 = vmul.f32 %v2032, %v2032
      %v2088 = vmul.f32 %v2033, %v2033
      %v2089 = vsel %vm933, %v2073, 0.0
      %v2090 = vsel %vm933, %v2074, 0.0
      %v2091 = vadd.f32 %v2089, %v2090
      %v2092 = vsel %vm933, %v2075, 0.0
      %v2093 = vadd.f32 %v2091, %v2092
      %v2094 = vsel %vm933, %v2076, 0.0
      %v2095 = vadd.f32 %v2093, %v2094
      %v2096 = vsel %vm933, %v2077, 0.0
      %v2097 = vadd.f32 %v2095, %v2096
      %v2098 = vsel %vm933, %v2078, 0.0
      %v2099 = vadd.f32 %v2097, %v2098
      %v2100 = vsel %vm933, %v2079, 0.0
      %v2101 = vadd.f32 %v2099, %v2100
      %v2102 = vsel %vm933, %v2080, 0.0
      %v2103 = vadd.f32 %v2101, %v2102
      %v2104 = vsel %vm933, %v2081, 0.0
      %v2105 = vadd.f32 %v2103, %v2104
      %v2106 = vsel %vm933, %v2082, 0.0
      %v2107 = vadd.f32 %v2105, %v2106
      %v2108 = vsel %vm933, %v2083, 0.0
      %v2109 = vadd.f32 %v2107, %v2108
      %v2110 = vsel %vm933, %v2084, 0.0
      %v2111 = vadd.f32 %v2109, %v2110
      %v2112 = vsel %vm933, %v2085, 0.0
      %v2113 = vadd.f32 %v2111, %v2112
      %v2114 = vsel %vm933, %v2086, 0.0
      %v2115 = vadd.f32 %v2113, %v2114
      %v2116 = vsel %vm933, %v2087, 0.0
      %v2117 = vadd.f32 %v2115, %v2116
      %v2118 = vsel %vm933, %v2088, 0.0
      %v2119 = vadd.f32 %v2117, %v2118
      %v2120 = vrot.slane %v2119, 4
      %v2121 = vadd.f32 %v2119, %v2120
      %v2122 = vrot.slane %v2121, 2
      %v2123 = vadd.f32 %v2121, %v2122
      %v2124 = vrot.slane %v2123, 1
      %v2125 = vadd.f32 %v2123, %v2124
      %2126 = vst.msk [vmem:[%s510] sm:$0x1] %vm2071, %v2125
      %v2127 = vpack.c.bf16 %v2019, %v2018
      %v2128 = vpack.c.bf16 %v2021, %v2020
      %v2129 = vpack.c.bf16 %v2023, %v2022
      %v2130 = vpack.c.bf16 %v2025, %v2024
      %v2131 = vpack.c.bf16 %v2027, %v2026
      %v2132 = vpack.c.bf16 %v2029, %v2028
      %v2133 = vpack.c.bf16 %v2031, %v2030
      %v2134 = vpack.c.bf16 %v2033, %v2032
      %v2143 = vunpack.c.l.b16 %v2127
      %v2144 = vunpack.c.h.b16 %v2127
      %v2145 = vunpack.c.l.b16 %v2128
      %v2146 = vunpack.c.h.b16 %v2128
      %v2147 = vunpack.c.l.b16 %v2129
      %v2148 = vunpack.c.h.b16 %v2129
      %v2149 = vunpack.c.l.b16 %v2130
      %v2150 = vunpack.c.h.b16 %v2130
      %v2151 = vunpack.c.l.b16 %v2131
      %v2152 = vunpack.c.h.b16 %v2131
      %v2153 = vunpack.c.l.b16 %v2132
      %v2154 = vunpack.c.h.b16 %v2132
      %v2155 = vunpack.c.l.b16 %v2133
      %v2156 = vunpack.c.h.b16 %v2133
      %v2157 = vunpack.c.l.b16 %v2134
      %v2158 = vunpack.c.h.b16 %v2134
      %v2159 = vpack.c.b16 %v2143, %v2143
      %v2160 = vpack.c.b16 %v2144, %v2144
      %v2161 = vpack.c.b16 %v2145, %v2145
      %v2162 = vpack.c.b16 %v2146, %v2146
      %v2163 = vpack.c.b16 %v2147, %v2147
      %v2164 = vpack.c.b16 %v2148, %v2148
      %v2165 = vpack.c.b16 %v2149, %v2149
      %v2166 = vpack.c.b16 %v2150, %v2150
      %v2167 = vpack.c.b16 %v2151, %v2151
      %v2168 = vpack.c.b16 %v2152, %v2152
      %v2169 = vpack.c.b16 %v2153, %v2153
      %v2170 = vpack.c.b16 %v2154, %v2154
      %v2171 = vpack.c.b16 %v2155, %v2155
      %v2172 = vpack.c.b16 %v2156, %v2156
      %v2173 = vpack.c.b16 %v2157, %v2157
      %v2174 = vpack.c.b16 %v2158, %v2158
      %vm2191 = vcmask 60416
      %2192 = vst.msk [vmem:[%s495] sm:$0xf] %vm2191, %v2159
      %2193 = vst.msk [vmem:[%s495 + $0x4] sm:$0xf] %vm2191, %v2160
      %2194 = vst.msk [vmem:[%s495 + $0x8] sm:$0xf] %vm2191, %v2161
      %2195 = vst.msk [vmem:[%s495 + $0xc] sm:$0xf] %vm2191, %v2162
      %2196 = vst.msk [vmem:[%s495 + $0x10] sm:$0xf] %vm2191, %v2163
      %2197 = vst.msk [vmem:[%s495 + $0x14] sm:$0xf] %vm2191, %v2164
      %2198 = vst.msk [vmem:[%s495 + $0x18] sm:$0xf] %vm2191, %v2165
      %2199 = vst.msk [vmem:[%s495 + $0x1c] sm:$0xf] %vm2191, %v2166
      %2200 = vst.msk [vmem:[%s495 + $0x20] sm:$0xf] %vm2191, %v2167
      %2201 = vst.msk [vmem:[%s495 + $0x24] sm:$0xf] %vm2191, %v2168
      %2202 = vst.msk [vmem:[%s495 + $0x28] sm:$0xf] %vm2191, %v2169
      %2203 = vst.msk [vmem:[%s495 + $0x2c] sm:$0xf] %vm2191, %v2170
      %2204 = vst.msk [vmem:[%s495 + $0x30] sm:$0xf] %vm2191, %v2171
      %2205 = vst.msk [vmem:[%s495 + $0x34] sm:$0xf] %vm2191, %v2172
      %2206 = vst.msk [vmem:[%s495 + $0x38] sm:$0xf] %vm2191, %v2173
      %2207 = vst.msk [vmem:[%s495 + $0x3c] sm:$0xf] %vm2191, %v2174
      %s2208 = smul.u32 8, %s25
      %p2209 = scmp.lt.s32.totalorder %s24, 1
      %s2210 = scalar_select %p2209, %s24, 1
      %p2211 = scmp.lt.s32.totalorder %s2208, 15
      %s2212 = scalar_select %p2211, %s2208, 15
      %s2213 = smul.addr %s2212, 2
      %s2214 = smul.addr %s2210, 32
      %s2215 = sadd.s32 %s2213, %s2214
      %s2216 = smul.addr %s2215, 4
      %s2217 = scalar_lea.vmem %s6, %s2216
      %p2218 = scmp.lt.s32.totalorder %s24, 1
      %s2219 = scalar_select %p2218, %s24, 1
      %p2220 = scmp.lt.s32.totalorder %s25, 1
      %s2221 = scalar_select %p2220, %s25, 1
      %s2222 = smul.addr %s2219, 2
      %s2223 = sadd.s32 %s2221, %s2222
      %s2224 = scalar_lea.vmem %s7, %s2223
      %p2225 = scmp.lt.s32.totalorder %s24, 1
      %s2226 = scalar_select %p2225, %s24, 1
      %p2227 = scmp.lt.s32.totalorder %s25, 1
      %s2228 = scalar_select %p2227, %s25, 1
      %s2229 = smul.addr %s2226, 2
      %s2230 = sadd.s32 %s2228, %s2229
      %s2231 = scalar_lea.vmem %s8, %s2230
      // Predicated region
      $region45: #{bottleneck.5} parent=43 // pred_check
        %p2232 = pneg %p215
      $region46: #{bottleneck.5} parent=43 // pred_check_branch
        %2234 = sbr.rel (%p2232) target = $region48
      $region47: #{bottleneck.5} parent=43 // pred_region
        %s2235 = smul.u32 8, %s25
      $region48: #{bottleneck.5} parent=43 // pred_fallthru
        _
      // Predicated region
      $region49: #{bottleneck.5} parent=43 // pred_check
        %p2236 = pneg %p243
      $region50: #{bottleneck.5} parent=43 // pred_check_branch
        %2238 = sbr.rel (%p2236) target = $region52
      $region51: #{bottleneck.5} parent=43 // pred_region
        _
      $region52: #{bottleneck.5} parent=43 // pred_fallthru
        _
      // Predicated region
      $region53: #{bottleneck.5} parent=43 // pred_check
        %p2239 = pneg %p271
      $region54: #{bottleneck.5} parent=43 // pred_check_branch
        %2241 = sbr.rel (%p2239) target = $region56
      $region55: #{bottleneck.5} parent=43 // pred_region
        _
      $region56: #{bottleneck.5} parent=43 // pred_fallthru
        _
    $region44: #{bottleneck.5} parent=5 // pred_fallthru
      _
    %p2242 = scmp.le.s32.totalorder 2, %s15
    // Predicated region
    $region57: #{bottleneck.5} parent=5 // pred_check
      %p2243 = pneg %p2242
    $region58: #{bottleneck.5} parent=5 // pred_check_branch
      %2245 = sbr.rel (%p2243) target = $region60
    $region59: #{bottleneck.5} parent=5 // pred_region
      %s2246 = ssub.s32 %s15, 2
      // Predicated region
      $region61: #{bottleneck.5} parent=59 // pred_check
        %p2247 = pneg %p221
      $region62: #{bottleneck.5} parent=59 // pred_check_branch
        %2249 = sbr.rel (%p2247) target = $region64
      $region63: #{bottleneck.5} parent=59 // pred_region
        %s2250 = smul.u32 8, %s27
        %p2251 = scmp.lt.s32.totalorder %s26, 1
        %s2252 = scalar_select %p2251, %s26, 1
        %p2253 = scmp.lt.s32.totalorder %s2250, 15
        %s2254 = scalar_select %p2253, %s2250, 15
        %s2255 = smul.addr %s2254, 2
        %s2256 = smul.addr %s2252, 32
        %s2257 = sadd.s32 %s2255, %s2256
        %s2258 = smul.addr %s2257, 4
        %s2259 = scalar_lea.vmem %s6, %s2258
      $region64: #{bottleneck.5} parent=59 // pred_fallthru
        _
      // Predicated region
      $region65: #{bottleneck.5} parent=59 // pred_check
        %p2260 = pneg %p249
      $region66: #{bottleneck.5} parent=59 // pred_check_branch
        %2262 = sbr.rel (%p2260) target = $region68
      $region67: #{bottleneck.5} parent=59 // pred_region
        %p2263 = scmp.lt.s32.totalorder %s26, 1
        %s2264 = scalar_select %p2263, %s26, 1
        %p2265 = scmp.lt.s32.totalorder %s27, 1
        %s2266 = scalar_select %p2265, %s27, 1
        %s2267 = smul.addr %s2264, 2
        %s2268 = sadd.s32 %s2266, %s2267
        %s2269 = scalar_lea.vmem %s7, %s2268
      $region68: #{bottleneck.5} parent=59 // pred_fallthru
        _
      // Predicated region
      $region69: #{bottleneck.5} parent=59 // pred_check
        %p2270 = pneg %p277
      $region70: #{bottleneck.5} parent=59 // pred_check_branch
        %2272 = sbr.rel (%p2270) target = $region72
      $region71: #{bottleneck.5} parent=59 // pred_region
        %p2273 = scmp.lt.s32.totalorder %s26, 1
        %s2274 = scalar_select %p2273, %s26, 1
        %p2275 = scmp.lt.s32.totalorder %s27, 1
        %s2276 = scalar_select %p2275, %s27, 1
        %s2277 = smul.addr %s2274, 2
        %s2278 = sadd.s32 %s2276, %s2277
        %s2279 = scalar_lea.vmem %s8, %s2278
      $region72: #{bottleneck.5} parent=59 // pred_fallthru
        _
    $region60: #{bottleneck.5} parent=5 // pred_fallthru
      _
  $region6: #{bottleneck.5} parent=0 // loop_footer
    %s19 = sadd.s32 1, %s15
  $region7: #{bottleneck.5} parent=0 // loop_footer_branch
    %14 = sbr.rel target = $region3
  $region8: #{bottleneck.5} parent=0 // loop_exit
    _

</llo_original>
